<compile_context>
chip_gen: v6e
topology: v6e:2x2x1
jax: 0.10.0
libtpu: 0.0.40
codegen_flags: <defaults>
</compile_context>

<pallas_src>
import math

import jax
import jax.numpy as jnp
from jax.experimental import pallas as pl
from jax.experimental.pallas import tpu as pltpu

_BF16 = jnp.bfloat16
_VMEM_LIMIT_CACHE = [None]


def _vmem_limit_bytes():
    """Generation-aware scoped-VMEM limit: ~3/4 of physical VMEM, capped at 100 MiB
    (v5e/v6e 128 MiB -> 96 MiB, v7x 64 MiB -> 48 MiB). Falls back to 48 MiB."""
    if _VMEM_LIMIT_CACHE[0] is None:
        try:
            cap = int(pltpu.get_tpu_info().vmem_capacity_bytes)
        except Exception:  # unknown chip / attribute -> conservative default
            cap = 64 * 1024 * 1024
        _VMEM_LIMIT_CACHE[0] = max(32 << 20, min((cap * 3) // 4, 100 << 20))
    return _VMEM_LIMIT_CACHE[0]


def _cparams(semantics=("parallel",)):
    return pltpu.CompilerParams(
        dimension_semantics=semantics, vmem_limit_bytes=_vmem_limit_bytes()
    )


# ----------------------------------------------------------------------------- #
# In-kernel helpers
# ----------------------------------------------------------------------------- #
def _zero_border(pad_ref, Ho, Wo, Cin, dt=_BF16):
    """Zero only the 1-pixel halo of a (Ho+2, Wo+2, Cin) pad scratch (per step)."""
    zr = jnp.zeros((1, Wo + 2, Cin), dt)
    zc = jnp.zeros((Ho + 2, 1, Cin), dt)
    pad_ref[0:1, :, :] = zr
    pad_ref[Ho + 1:Ho + 2, :, :] = zr
    pad_ref[:, 0:1, :] = zc
    pad_ref[:, Wo + 1:Wo + 2, :] = zc


def _conv3x3_from_pad(pad_ref, w_ref, Ho, Wo, Cin, *, dil=1, pad_amt=None):
    """3x3 (possibly dilated) conv over a zero-padded bf16 VMEM scratch.

    Cin < 128 : tap-folded im2col -> single K=9*Cin MXU matmul.
    Cin >= 128: nine K=Cin matmuls accumulated in f32 (K already saturates MXU
                depth; avoids the 9x patch buffer and its concat copies).
    Returns float32 (Ho*Wo, Cout).
    """
    HW = Ho * Wo
    p = dil if pad_amt is None else pad_amt
    base = p - dil
    if Cin < 128:
        taps = [pad_ref[base + kh * dil: base + kh * dil + Ho,
                        base + kw * dil: base + kw * dil + Wo, :]
                for kh in range(3) for kw in range(3)]
        patch = jnp.concatenate(taps, axis=-1).reshape(HW, 9 * Cin)
        return jnp.dot(patch, w_ref[...], preferred_element_type=jnp.float32)
    acc = None
    t = -1
    for kh in range(3):
        for kw in range(3):
            t += 1
            # Taps whose window lies entirely in the zero padding contribute 0.
            if abs(kh - 1) * dil >= Ho or abs(kw - 1) * dil >= Wo:
                continue
            tap = pad_ref[base + kh * dil: base + kh * dil + Ho,
                          base + kw * dil: base + kw * dil + Wo, :].reshape(HW, Cin)
            c = jnp.dot(tap, w_ref[t * Cin:(t + 1) * Cin, :],
                        preferred_element_type=jnp.float32)
            acc = c if acc is None else acc + c
    return acc


# ----------------------------------------------------------------------------- #
# Fused [maxpool] -> double conv -> [SE(skip) add] -> [1x1 projection] kernel
# ----------------------------------------------------------------------------- #
def fused_double_conv_block(x, dc, *, pool=False, se=None, skip=None, proj=None,
                            out_dtype=_BF16):
    B = x.shape[0]
    if pool:
        _, H2, W2, Cin = x.shape
        assert H2 % 2 == 0 and W2 % 2 == 0, "maxpool expects even H, W"
        Ho, Wo = H2 // 2, W2 // 2
        x_in = x.reshape(B, Ho, 2, Wo, 2, Cin)            # free metadata reshape
        x_spec = pl.BlockSpec((1, Ho, 2, Wo, 2, Cin), lambda i: (i, 0, 0, 0, 0, 0))
    else:
        _, Ho, Wo, Cin = x.shape
        x_in = x
        x_spec = pl.BlockSpec((1, Ho, Wo, Cin), lambda i: (i, 0, 0, 0))

    Cm = dc["c1"]["w"].shape[-1]
    Cout = dc["c2"]["w"].shape[-1]
    w1r = dc["c1"]["w"].reshape(9 * Cin, Cm).astype(_BF16)
    b1r = dc["c1"]["b"].reshape(1, Cm).astype(jnp.float32)
    w2r = dc["c2"]["w"].reshape(9 * Cm, Cout).astype(_BF16)
    b2r = dc["c2"]["b"].reshape(1, Cout).astype(jnp.float32)

    inputs = [x_in, w1r, b1r, w2r, b2r]
    in_specs = [
        x_spec,
        pl.BlockSpec((9 * Cin, Cm), lambda i: (0, 0)),
        pl.BlockSpec((1, Cm), lambda i: (0, 0)),
        pl.BlockSpec((9 * Cm, Cout), lambda i: (0, 0)),
        pl.BlockSpec((1, Cout), lambda i: (0, 0)),
    ]

    has_se = se is not None
    if has_se:
        assert skip.shape[-1] == Cout
        Cr = se["w1"].shape[-1]
        inputs += [
            skip.astype(_BF16),
            se["w1"].astype(jnp.float32),
            se["b1"].reshape(1, Cr).astype(jnp.float32),
            se["w2"].astype(jnp.float32),
            se["b2"].reshape(1, Cout).astype(jnp.float32),
        ]
        in_specs += [
            pl.BlockSpec((1, Ho, Wo, Cout), lambda i: (i, 0, 0, 0)),
            pl.BlockSpec((Cout, Cr), lambda i: (0, 0)),
            pl.BlockSpec((1, Cr), lambda i: (0, 0)),
            pl.BlockSpec((Cr, Cout), lambda i: (0, 0)),
            pl.BlockSpec((1, Cout), lambda i: (0, 0)),
        ]

    has_proj = proj is not None
    if has_proj:
        Cp = proj["w"].shape[-1]
        Cfin = max(Cp, 8)                      # lane-pad tiny class dims; wrapper slices
        wo = proj["w"].reshape(Cout, Cp)
        bo = proj["b"].reshape(1, Cp)
        if Cfin != Cp:
            wo = jnp.pad(wo, ((0, 0), (0, Cfin - Cp)))
            bo = jnp.pad(bo, ((0, 0), (0, Cfin - Cp)))
        inputs += [wo.astype(_BF16), bo.astype(jnp.float32)]
        in_specs += [
            pl.BlockSpec((Cout, Cfin), lambda i: (0, 0)),
            pl.BlockSpec((1, Cfin), lambda i: (0, 0)),
        ]
    else:
        Cfin = Cout

    def kernel(*refs):
        it = iter(refs)
        x_ref = next(it)
        w1_ref = next(it); b1_ref = next(it)
        w2_ref = next(it); b2_ref = next(it)
        if has_se:
            skip_ref = next(it)
            sw1 = next(it); sb1 = next(it); sw2 = next(it); sb2 = next(it)
        if has_proj:
            wo_ref = next(it); bo_ref = next(it)
        o_ref = next(it)
        pad1 = next(it); pad2 = next(it)

        if pool:
            xv5 = x_ref[0]                                # (Ho, 2, Wo, 2, Cin)
            xv = jnp.maximum(
                jnp.maximum(xv5[:, 0, :, 0, :], xv5[:, 0, :, 1, :]),
                jnp.maximum(xv5[:, 1, :, 0, :], xv5[:, 1, :, 1, :]),
            )
        else:
            xv = x_ref[0]                                 # (Ho, Wo, Cin)

        # ---- conv1 (3x3, pad 1): border-only zero each step, interior rewritten
        _zero_border(pad1, Ho, Wo, Cin)
        pad1[1:Ho + 1, 1:Wo + 1, :] = xv.astype(_BF16)
        h = _conv3x3_from_pad(pad1, w1_ref, Ho, Wo, Cin) + b1_ref[...]
        h = jnp.maximum(h, 0.0)

        # ---- conv2 (3x3, pad 1)
        _zero_border(pad2, Ho, Wo, Cm)
        pad2[1:Ho + 1, 1:Wo + 1, :] = h.reshape(Ho, Wo, Cm).astype(_BF16)
        y = _conv3x3_from_pad(pad2, w2_ref, Ho, Wo, Cm) + b2_ref[...]
        y = jnp.maximum(y, 0.0)                           # (Ho*Wo, Cout) f32

        # ---- fused SE(skip) + y epilogue
        if has_se:
            sv = skip_ref[0].astype(jnp.float32).reshape(Ho * Wo, Cout)
            s = jnp.sum(sv, axis=0, keepdims=True) * (1.0 / (Ho * Wo))
            hh = jnp.maximum(
                jnp.dot(s, sw1[...], preferred_element_type=jnp.float32) + sb1[...],
                0.0)
            z = jax.nn.sigmoid(
                jnp.dot(hh, sw2[...], preferred_element_type=jnp.float32) + sb2[...])
            y = sv * z + y

        # ---- fused 1x1 projection (outconv), no activation
        if has_proj:
            y = jnp.dot(y.astype(_BF16), wo_ref[...],
                        preferred_element_type=jnp.float32) + bo_ref[...]

        o_ref[0] = y.reshape(Ho, Wo, Cfin).astype(o_ref.dtype)

    return pl.pallas_call(
        kernel,
        out_shape=jax.ShapeDtypeStruct((B, Ho, Wo, Cfin), out_dtype),
        grid=(B,),
        in_specs=in_specs,
        out_specs=pl.BlockSpec((1, Ho, Wo, Cfin), lambda i: (i, 0, 0, 0)),
        scratch_shapes=[
            pltpu.VMEM((Ho + 2, Wo + 2, Cin), _BF16),
            pltpu.VMEM((Ho + 2, Wo + 2, Cm), _BF16),
        ],
        compiler_params=_cparams(),
    )(*inputs)


# ----------------------------------------------------------------------------- #
# Fused down2 -> down3 -> down4 chain (three 3x3 conv + ReLU, one pallas_call,
# three outputs; x3/x4 never round-trip HBM inside the chain)
# ----------------------------------------------------------------------------- #
def fused_down_chain(x, p2, p3, p4):
    B, H, W, C2 = x.shape
    C3 = p2["w"].shape[-1]
    C4 = p3["w"].shape[-1]
    C5 = p4["w"].shape[-1]
    w2 = p2["w"].reshape(9 * C2, C3).astype(_BF16)
    b2 = p2["b"].reshape(1, C3).astype(jnp.float32)
    w3 = p3["w"].reshape(9 * C3, C4).astype(_BF16)
    b3 = p3["b"].reshape(1, C4).astype(jnp.float32)
    w4 = p4["w"].reshape(9 * C4, C5).astype(_BF16)
    b4 = p4["b"].reshape(1, C5).astype(jnp.float32)

    def kernel(x_ref, w2_ref, b2_ref, w3_ref, b3_ref, w4_ref, b4_ref,
               x3_ref, x4_ref, x5_ref, pad2, pad3, pad4):
        _zero_border(pad2, H, W, C2)
        pad2[1:H + 1, 1:W + 1, :] = x_ref[0].astype(_BF16)
        y3 = jnp.maximum(_conv3x3_from_pad(pad2, w2_ref, H, W, C2) + b2_ref[...], 0.0)
        y3b = y3.reshape(H, W, C3).astype(_BF16)
        x3_ref[0] = y3b

        _zero_border(pad3, H, W, C3)
        pad3[1:H + 1, 1:W + 1, :] = y3b
        y4 = jnp.maximum(_conv3x3_from_pad(pad3, w3_ref, H, W, C3) + b3_ref[...], 0.0)
        y4b = y4.reshape(H, W, C4).astype(_BF16)
        x4_ref[0] = y4b

        _zero_border(pad4, H, W, C4)
        pad4[1:H + 1, 1:W + 1, :] = y4b
        y5 = jnp.maximum(_conv3x3_from_pad(pad4, w4_ref, H, W, C4) + b4_ref[...], 0.0)
        x5_ref[0] = y5.reshape(H, W, C5).astype(_BF16)

    def wspec(shape):
        return pl.BlockSpec(shape, lambda i: (0, 0))

    return pl.pallas_call(
        kernel,
        out_shape=(jax.ShapeDtypeStruct((B, H, W, C3), _BF16),
                   jax.ShapeDtypeStruct((B, H, W, C4), _BF16),
                   jax.ShapeDtypeStruct((B, H, W, C5), _BF16)),
        grid=(B,),
        in_specs=[
            pl.BlockSpec((1, H, W, C2), lambda i: (i, 0, 0, 0)),
            wspec((9 * C2, C3)), wspec((1, C3)),
            wspec((9 * C3, C4)), wspec((1, C4)),
            wspec((9 * C4, C5)), wspec((1, C5)),
        ],
        out_specs=(
            pl.BlockSpec((1, H, W, C3), lambda i: (i, 0, 0, 0)),
            pl.BlockSpec((1, H, W, C4), lambda i: (i, 0, 0, 0)),
            pl.BlockSpec((1, H, W, C5), lambda i: (i, 0, 0, 0)),
        ),
        scratch_shapes=[
            pltpu.VMEM((H + 2, W + 2, C2), _BF16),
            pltpu.VMEM((H + 2, W + 2, C3), _BF16),
            pltpu.VMEM((H + 2, W + 2, C4), _BF16),
        ],
        compiler_params=_cparams(),
    )(x, w2, b2, w3, b3, w4, b4)


# ----------------------------------------------------------------------------- #
# Fused ASPP + SE(skip)-add kernel: se4(x4) + ASPP(x5) in one pallas_call.
# Per-branch accumulation of the 1x1 projection (no 640-channel HBM concat).
# ----------------------------------------------------------------------------- #
def aspp_se_add(x, skip, ap, sp, *, out_dtype=_BF16):
    B, H, W, Cin = x.shape
    Cb = ap["b0"]["w"].shape[-1]
    assert skip.shape[-1] == Cb
    HW = H * W
    rates = (6, 12, 18)
    PAD = max(rates)

    w0 = ap["b0"]["w"].reshape(Cin, Cb).astype(_BF16)
    b0 = ap["b0"]["b"].reshape(1, Cb).astype(jnp.float32)
    wd1 = ap["b1"]["w"].reshape(9 * Cin, Cb).astype(_BF16)
    bd1 = ap["b1"]["b"].reshape(1, Cb).astype(jnp.float32)
    wd2 = ap["b2"]["w"].reshape(9 * Cin, Cb).astype(_BF16)
    bd2 = ap["b2"]["b"].reshape(1, Cb).astype(jnp.float32)
    wd3 = ap["b3"]["w"].reshape(9 * Cin, Cb).astype(_BF16)
    bd3 = ap["b3"]["b"].reshape(1, Cb).astype(jnp.float32)
    wp = ap["wp"].astype(_BF16)
    bp = ap["bp"].reshape(1, Cb).astype(jnp.float32)
    wpr = ap["proj"]["w"].reshape(5 * Cb, Cb).astype(_BF16)
    bpr = ap["proj"]["b"].reshape(1, Cb).astype(jnp.float32)
    Cr = sp["w1"].shape[-1]
    sw1 = sp["w1"].astype(jnp.float32)
    sb1 = sp["b1"].reshape(1, Cr).astype(jnp.float32)
    sw2 = sp["w2"].astype(jnp.float32)
    sb2 = sp["b2"].reshape(1, Cb).astype(jnp.float32)

    def kernel(x_ref, skip_ref, w0_ref, b0_ref, wd1_ref, bd1_ref, wd2_ref, bd2_ref,
               wd3_ref, bd3_ref, wp_ref, bp_ref, wpr_ref, bpr_ref,
               sw1_ref, sb1_ref, sw2_ref, sb2_ref, o_ref, pad):
        xv = x_ref[0].astype(_BF16)                      # (H, W, Cin)

        # Big PAD slab: zero ONCE. Scratch persists across grid steps and the
        # interior is rewritten every step; batch axis is "arbitrary" for this
        # kernel so program_id(0)==0 is guaranteed to execute first.
        @pl.when(pl.program_id(0) == 0)
        def _():
            pad[...] = jnp.zeros((H + 2 * PAD, W + 2 * PAD, Cin), _BF16)

        pad[PAD:PAD + H, PAD:PAD + W, :] = xv
        xflat = xv.reshape(HW, Cin)

        # 1x1 branch -> projection slice 0
        t = jnp.maximum(
            jnp.dot(xflat, w0_ref[...], preferred_element_type=jnp.float32)
            + b0_ref[...], 0.0)
        acc = jnp.dot(t.astype(_BF16), wpr_ref[0:Cb, :],
                      preferred_element_type=jnp.float32)

        # dilated 3x3 branches (rates 6/12/18) -> projection slices 1..3
        for bi, (d, w_ref, b_ref) in enumerate(
                zip(rates, (wd1_ref, wd2_ref, wd3_ref), (bd1_ref, bd2_ref, bd3_ref))):
            t = jnp.maximum(
                _conv3x3_from_pad(pad, w_ref, H, W, Cin, dil=d, pad_amt=PAD)
                + b_ref[...], 0.0)
            acc = acc + jnp.dot(t.astype(_BF16),
                                wpr_ref[(bi + 1) * Cb:(bi + 2) * Cb, :],
                                preferred_element_type=jnp.float32)

        # image-pooling branch -> projection slice 4 (broadcast over HW)
        g = jnp.sum(xflat.astype(jnp.float32), axis=0, keepdims=True) * (1.0 / HW)
        g = jnp.maximum(
            jnp.dot(g.astype(_BF16), wp_ref[...],
                    preferred_element_type=jnp.float32) + bp_ref[...], 0.0)
        acc = acc + jnp.dot(g.astype(_BF16), wpr_ref[4 * Cb:5 * Cb, :],
                            preferred_element_type=jnp.float32)

        x5 = jnp.maximum(acc + bpr_ref[...], 0.0)        # fused 1x1 proj + ReLU

        # fused SE(skip) + x5 epilogue
        sv = skip_ref[0].astype(jnp.float32).reshape(HW, Cb)
        s = jnp.sum(sv, axis=0, keepdims=True) * (1.0 / HW)
        hh = jnp.maximum(
            jnp.dot(s, sw1_ref[...], preferred_element_type=jnp.float32)
            + sb1_ref[...], 0.0)
        z = jax.nn.sigmoid(
            jnp.dot(hh, sw2_ref[...], preferred_element_type=jnp.float32)
            + sb2_ref[...])
        y = sv * z + x5
        o_ref[0] = y.reshape(H, W, Cb).astype(o_ref.dtype)

    def wspec(shape):
        return pl.BlockSpec(shape, lambda i: (0, 0))

    in_specs = [
        pl.BlockSpec((1, H, W, Cin), lambda i: (i, 0, 0, 0)),
        pl.BlockSpec((1, H, W, Cb), lambda i: (i, 0, 0, 0)),
        wspec((Cin, Cb)), wspec((1, Cb)),
        wspec((9 * Cin, Cb)), wspec((1, Cb)),
        wspec((9 * Cin, Cb)), wspec((1, Cb)),
        wspec((9 * Cin, Cb)), wspec((1, Cb)),
        wspec((Cin, Cb)), wspec((1, Cb)),
        wspec((5 * Cb, Cb)), wspec((1, Cb)),
        wspec((Cb, Cr)), wspec((1, Cr)),
        wspec((Cr, Cb)), wspec((1, Cb)),
    ]

    return pl.pallas_call(
        kernel,
        out_shape=jax.ShapeDtypeStruct((B, H, W, Cb), out_dtype),
        grid=(B,),
        in_specs=in_specs,
        out_specs=pl.BlockSpec((1, H, W, Cb), lambda i: (i, 0, 0, 0)),
        scratch_shapes=[pltpu.VMEM((H + 2 * PAD, W + 2 * PAD, Cin), _BF16)],
        compiler_params=_cparams(("arbitrary",)),   # required for the one-time zero
    )(x, skip.astype(_BF16), w0, b0, wd1, bd1, wd2, bd2, wd3, bd3, wp, bp, wpr, bpr,
      sw1, sb1, sw2, sb2)


# ----------------------------------------------------------------------------- #
# Parameter init (deterministic, He-style scaling)
# ----------------------------------------------------------------------------- #
def _conv_init(key, k, cin, cout):
    w = jax.random.normal(key, (k, k, cin, cout), jnp.float32) / math.sqrt(k * k * cin)
    return {"w": w, "b": jnp.zeros((cout,), jnp.float32)}


def _dconv_init(key, cin, cout):
    k1, k2 = jax.random.split(key)
    return {"c1": _conv_init(k1, 3, cin, cout), "c2": _conv_init(k2, 3, cout, cout)}


def _se_init(key, c, r=8):
    cr = max(c // r, 1)
    k1, k2 = jax.random.split(key)
    return {
        "w1": jax.random.normal(k1, (c, cr), jnp.float32) / math.sqrt(c),
        "b1": jnp.zeros((cr,), jnp.float32),
        "w2": jax.random.normal(k2, (cr, c), jnp.float32) / math.sqrt(cr),
        "b2": jnp.zeros((c,), jnp.float32),
    }


def init_params(key, n_channels, n_classes):
    ks = jax.random.split(key, 16)
    ak = jax.random.split(ks[6], 6)
    return {
        "inc": _dconv_init(ks[0], n_channels, 16),
        "down1": _dconv_init(ks[1], 16, 32),
        "down2": _conv_init(ks[2], 3, 32, 64),     # DeformConv2D(32, 64)
        "down3": _conv_init(ks[3], 3, 64, 128),    # DeformConv2D(64, 128)
        "down4": _conv_init(ks[4], 3, 128, 256),   # DeformConv2D(128, 256)
        "aspp": {
            "b0": _conv_init(ak[0], 1, 256, 128),
            "b1": _conv_init(ak[1], 3, 256, 128),
            "b2": _conv_init(ak[2], 3, 256, 128),
            "b3": _conv_init(ak[3], 3, 256, 128),
            "wp": jax.random.normal(ak[4], (256, 128), jnp.float32) / math.sqrt(256.0),
            "bp": jnp.zeros((128,), jnp.float32),
            "proj": _conv_init(ak[5], 1, 5 * 128, 128),
        },
        "se1": _se_init(ks[7], 16),
        "se2": _se_init(ks[8], 32),
        "se3": _se_init(ks[9], 64),
        "se4": _se_init(ks[10], 128),
        "up2": _dconv_init(ks[11], 128, 64),
        "up3": _dconv_init(ks[12], 64, 32),
        "up4": _dconv_init(ks[13], 16, 16),        # see TODO: up4 applied to 16-ch x1
        "out": _conv_init(ks[14], 1, 16, n_classes),
    }


# ----------------------------------------------------------------------------- #
# forensics_net forward (literal transcription of the reference forward())
# ----------------------------------------------------------------------------- #
def forensics_net_forward(x_nchw, P):
    n_classes = P["out"]["w"].shape[-1]
    x = jnp.transpose(x_nchw, (0, 2, 3, 1)).astype(_BF16)          # NCHW -> NHWC bf16
    x1 = fused_double_conv_block(x, P["inc"])                      # (B, H,   W,   16)
    x2 = fused_double_conv_block(x1, P["down1"], pool=True)        # (B, H/2, W/2, 32)
    x3, x4, x5 = fused_down_chain(x2, P["down2"], P["down3"], P["down4"])  # 64/128/256
    x6 = aspp_se_add(x5, x4, P["aspp"], P["se4"])                  # se4(x4) + aspp(x5)
    x7 = fused_double_conv_block(x6, P["up2"], se=P["se3"], skip=x3)   # se3(x3)+up2(x6)
    x8 = fused_double_conv_block(x7, P["up3"], se=P["se2"], skip=x2)   # se2(x2)+up3(x7)
    del x8  # dead w.r.t. the returned output, kept per the literal reference forward
    # literal: x9 = up4(x1); x9 = se1(x1) + x9; out = outconv(x9)  (all fused)
    out = fused_double_conv_block(x1, P["up4"], se=P["se1"], skip=x1,
                                  proj=P["out"], out_dtype=jnp.float32)
    out = out[..., :n_classes]                # strip the lane-padding of the class dim
    return jnp.transpose(out, (0, 3, 1, 2))                        # NHWC -> NCHW


if __name__ == "__main__":
    n_channels, n_classes = 3, 2
    root = jax.random.PRNGKey(0)
    kp, kx = jax.random.split(root)
    params = init_params(kp, n_channels, n_classes)
    x = jax.random.normal(kx, (2, n_channels, 16, 16), jnp.float32)

    out = jax.block_until_ready(forensics_net_forward(x, params))

    assert out.shape == (2, n_classes, 16, 16), out.shape
    assert bool(jnp.all(jnp.isfinite(out)))
    print("KERNEL_OK")
</pallas_src>

<mosaic_0001>
module attributes {stable_mosaic.version = 11 : i64} {
  func.func @kernel(%arg0: i32, %arg1: memref<1x16x16x3xbf16, #tpu.memory_space<vmem>>, %arg2: memref<27x16xbf16, #tpu.memory_space<vmem>>, %arg3: memref<1x16xf32, #tpu.memory_space<vmem>>, %arg4: memref<144x16xbf16, #tpu.memory_space<vmem>>, %arg5: memref<1x16xf32, #tpu.memory_space<vmem>>, %arg6: memref<1x16x16x16xbf16, #tpu.memory_space<vmem>>, %arg7: memref<18x18x3xbf16, #tpu.memory_space<vmem>>, %arg8: memref<18x18x16xbf16, #tpu.memory_space<vmem>>) attributes {dimension_semantics = [#tpu.dimension_semantics<parallel>], iteration_bounds = array<i64: 2>, scalar_prefetch = 0 : i64, scratch_operands = 2 : i64, tpu.core_type = #tpu.core_type<tc>, window_params = [{transform_indices = @transform_0, window_bounds = array<i64: 1, 16, 16, 3>}, {pipeline_mode = #tpu.pipeline_mode<synchronous>, transform_indices = @transform_1, window_bounds = array<i64: 27, 16>}, {pipeline_mode = #tpu.pipeline_mode<synchronous>, transform_indices = @transform_2, window_bounds = array<i64: 1, 16>}, {pipeline_mode = #tpu.pipeline_mode<synchronous>, transform_indices = @transform_3, window_bounds = array<i64: 144, 16>}, {pipeline_mode = #tpu.pipeline_mode<synchronous>, transform_indices = @transform_4, window_bounds = array<i64: 1, 16>}, {transform_indices = @transform_5, window_bounds = array<i64: 1, 16, 16, 16>}]} {
    %c0 = arith.constant 0 : index
    %c0_0 = arith.constant 0 : index
    %c0_1 = arith.constant 0 : index
    %c0_2 = arith.constant 0 : index
    %0 = vector.load %arg1[%c0, %c0_0, %c0_1, %c0_2] : memref<1x16x16x3xbf16, #tpu.memory_space<vmem>>, vector<1x16x16x3xbf16>
    %1 = vector.shape_cast %0 : vector<1x16x16x3xbf16> to vector<16x16x3xbf16>
    %cst = arith.constant 0.000000e+00 : bf16
    %2 = vector.broadcast %cst : bf16 to vector<1x18x3xbf16>
    %cst_3 = arith.constant 0.000000e+00 : bf16
    %3 = vector.broadcast %cst_3 : bf16 to vector<18x1x3xbf16>
    %c0_4 = arith.constant 0 : index
    %c0_5 = arith.constant 0 : index
    %c0_6 = arith.constant 0 : index
    %4 = vector.load %arg7[%c0_4, %c0_5, %c0_6] : memref<18x18x3xbf16, #tpu.memory_space<vmem>>, vector<1x18x3xbf16>
    tpu.vector_store %arg7[%c0_4, %c0_5, %c0_6], %2 {strides = array<i32>} : memref<18x18x3xbf16, #tpu.memory_space<vmem>>, vector<1x18x3xbf16>,
    %c17 = arith.constant 17 : index
    %c0_7 = arith.constant 0 : index
    %c0_8 = arith.constant 0 : index
    %5 = vector.load %arg7[%c17, %c0_7, %c0_8] : memref<18x18x3xbf16, #tpu.memory_space<vmem>>, vector<1x18x3xbf16>
    tpu.vector_store %arg7[%c17, %c0_7, %c0_8], %2 {strides = array<i32>} : memref<18x18x3xbf16, #tpu.memory_space<vmem>>, vector<1x18x3xbf16>,
    %c0_9 = arith.constant 0 : index
    %c0_10 = arith.constant 0 : index
    %c0_11 = arith.constant 0 : index
    %6 = vector.load %arg7[%c0_9, %c0_10, %c0_11] : memref<18x18x3xbf16, #tpu.memory_space<vmem>>, vector<18x1x3xbf16>
    tpu.vector_store %arg7[%c0_9, %c0_10, %c0_11], %3 {strides = array<i32>} : memref<18x18x3xbf16, #tpu.memory_space<vmem>>, vector<18x1x3xbf16>,
    %c0_12 = arith.constant 0 : index
    %c17_13 = arith.constant 17 : index
    %c0_14 = arith.constant 0 : index
    %7 = vector.load %arg7[%c0_12, %c17_13, %c0_14] : memref<18x18x3xbf16, #tpu.memory_space<vmem>>, vector<18x1x3xbf16>
    tpu.vector_store %arg7[%c0_12, %c17_13, %c0_14], %3 {strides = array<i32>} : memref<18x18x3xbf16, #tpu.memory_space<vmem>>, vector<18x1x3xbf16>,
    %c1 = arith.constant 1 : index
    %c1_15 = arith.constant 1 : index
    %c0_16 = arith.constant 0 : index
    %8 = vector.load %arg7[%c1, %c1_15, %c0_16] : memref<18x18x3xbf16, #tpu.memory_space<vmem>>, vector<16x16x3xbf16>
    tpu.vector_store %arg7[%c1, %c1_15, %c0_16], %1 {strides = array<i32>} : memref<18x18x3xbf16, #tpu.memory_space<vmem>>, vector<16x16x3xbf16>,
    %c0_17 = arith.constant 0 : index
    %c0_18 = arith.constant 0 : index
    %c0_19 = arith.constant 0 : index
    %9 = vector.load %arg7[%c0_17, %c0_18, %c0_19] : memref<18x18x3xbf16, #tpu.memory_space<vmem>>, vector<16x16x3xbf16>
    %c0_20 = arith.constant 0 : index
    %c1_21 = arith.constant 1 : index
    %c0_22 = arith.constant 0 : index
    %10 = vector.load %arg7[%c0_20, %c1_21, %c0_22] : memref<18x18x3xbf16, #tpu.memory_space<vmem>>, vector<16x16x3xbf16>
    %c0_23 = arith.constant 0 : index
    %c2 = arith.constant 2 : index
    %c0_24 = arith.constant 0 : index
    %11 = vector.load %arg7[%c0_23, %c2, %c0_24] : memref<18x18x3xbf16, #tpu.memory_space<vmem>>, vector<16x16x3xbf16>
    %c1_25 = arith.constant 1 : index
    %c0_26 = arith.constant 0 : index
    %c0_27 = arith.constant 0 : index
    %12 = vector.load %arg7[%c1_25, %c0_26, %c0_27] : memref<18x18x3xbf16, #tpu.memory_space<vmem>>, vector<16x16x3xbf16>
    %c1_28 = arith.constant 1 : index
    %c1_29 = arith.constant 1 : index
    %c0_30 = arith.constant 0 : index
    %13 = vector.load %arg7[%c1_28, %c1_29, %c0_30] : memref<18x18x3xbf16, #tpu.memory_space<vmem>>, vector<16x16x3xbf16>
    %c1_31 = arith.constant 1 : index
    %c2_32 = arith.constant 2 : index
    %c0_33 = arith.constant 0 : index
    %14 = vector.load %arg7[%c1_31, %c2_32, %c0_33] : memref<18x18x3xbf16, #tpu.memory_space<vmem>>, vector<16x16x3xbf16>
    %c2_34 = arith.constant 2 : index
    %c0_35 = arith.constant 0 : index
    %c0_36 = arith.constant 0 : index
    %15 = vector.load %arg7[%c2_34, %c0_35, %c0_36] : memref<18x18x3xbf16, #tpu.memory_space<vmem>>, vector<16x16x3xbf16>
    %c2_37 = arith.constant 2 : index
    %c1_38 = arith.constant 1 : index
    %c0_39 = arith.constant 0 : index
    %16 = vector.load %arg7[%c2_37, %c1_38, %c0_39] : memref<18x18x3xbf16, #tpu.memory_space<vmem>>, vector<16x16x3xbf16>
    %c2_40 = arith.constant 2 : index
    %c2_41 = arith.constant 2 : index
    %c0_42 = arith.constant 0 : index
    %17 = vector.load %arg7[%c2_40, %c2_41, %c0_42] : memref<18x18x3xbf16, #tpu.memory_space<vmem>>, vector<16x16x3xbf16>
    %18 = tpu.concatenate %9, %10, %11, %12, %13, %14, %15, %16, %17 in 2 : vector<16x16x3xbf16>, vector<16x16x3xbf16>, vector<16x16x3xbf16>, vector<16x16x3xbf16>, vector<16x16x3xbf16>, vector<16x16x3xbf16>, vector<16x16x3xbf16>, vector<16x16x3xbf16>, vector<16x16x3xbf16> -> vector<16x16x27xbf16>
    %19 = vector.shape_cast %18 : vector<16x16x27xbf16> to vector<256x27xbf16>
    %c0_43 = arith.constant 0 : index
    %c0_44 = arith.constant 0 : index
    %20 = vector.load %arg2[%c0_43, %c0_44] : memref<27x16xbf16, #tpu.memory_space<vmem>>, vector<27x16xbf16>
    %cst_45 = arith.constant dense<0.000000e+00> : vector<256x16xf32>
    %21 = tpu.matmul %19, %20, %cst_45 {dimension_numbers = #tpu.dot_dimension_numbers<[1], [0], [0], [1], [0, 0, 1, 1], [], []>} : vector<256x27xbf16>, vector<27x16xbf16>, vector<256x16xf32> -> vector<256x16xf32>
    %c0_46 = arith.constant 0 : index
    %c0_47 = arith.constant 0 : index
    %22 = vector.load %arg3[%c0_46, %c0_47] : memref<1x16xf32, #tpu.memory_space<vmem>>, vector<1x16xf32>
    %23 = vector.broadcast %22 : vector<1x16xf32> to vector<256x16xf32>
    %24 = arith.addf %21, %23 : vector<256x16xf32>
    %cst_48 = arith.constant 0.000000e+00 : f32
    %25 = vector.broadcast %cst_48 : f32 to vector<256x16xf32>
    %26 = arith.maximumf %24, %25 : vector<256x16xf32>
    %cst_49 = arith.constant 0.000000e+00 : bf16
    %27 = vector.broadcast %cst_49 : bf16 to vector<1x18x16xbf16>
    %cst_50 = arith.constant 0.000000e+00 : bf16
    %28 = vector.broadcast %cst_50 : bf16 to vector<18x1x16xbf16>
    %c0_51 = arith.constant 0 : index
    %c0_52 = arith.constant 0 : index
    %c0_53 = arith.constant 0 : index
    %29 = vector.load %arg8[%c0_51, %c0_52, %c0_53] : memref<18x18x16xbf16, #tpu.memory_space<vmem>>, vector<1x18x16xbf16>
    tpu.vector_store %arg8[%c0_51, %c0_52, %c0_53], %27 {strides = array<i32>} : memref<18x18x16xbf16, #tpu.memory_space<vmem>>, vector<1x18x16xbf16>,
    %c17_54 = arith.constant 17 : index
    %c0_55 = arith.constant 0 : index
    %c0_56 = arith.constant 0 : index
    %30 = vector.load %arg8[%c17_54, %c0_55, %c0_56] : memref<18x18x16xbf16, #tpu.memory_space<vmem>>, vector<1x18x16xbf16>
    tpu.vector_store %arg8[%c17_54, %c0_55, %c0_56], %27 {strides = array<i32>} : memref<18x18x16xbf16, #tpu.memory_space<vmem>>, vector<1x18x16xbf16>,
    %c0_57 = arith.constant 0 : index
    %c0_58 = arith.constant 0 : index
    %c0_59 = arith.constant 0 : index
    %31 = vector.load %arg8[%c0_57, %c0_58, %c0_59] : memref<18x18x16xbf16, #tpu.memory_space<vmem>>, vector<18x1x16xbf16>
    tpu.vector_store %arg8[%c0_57, %c0_58, %c0_59], %28 {strides = array<i32>} : memref<18x18x16xbf16, #tpu.memory_space<vmem>>, vector<18x1x16xbf16>,
    %c0_60 = arith.constant 0 : index
    %c17_61 = arith.constant 17 : index
    %c0_62 = arith.constant 0 : index
    %32 = vector.load %arg8[%c0_60, %c17_61, %c0_62] : memref<18x18x16xbf16, #tpu.memory_space<vmem>>, vector<18x1x16xbf16>
    tpu.vector_store %arg8[%c0_60, %c17_61, %c0_62], %28 {strides = array<i32>} : memref<18x18x16xbf16, #tpu.memory_space<vmem>>, vector<18x1x16xbf16>,
    %33 = vector.shape_cast %26 : vector<256x16xf32> to vector<16x16x16xf32>
    %34 = arith.truncf %33 : vector<16x16x16xf32> to vector<16x16x16xbf16>
    %c1_63 = arith.constant 1 : index
    %c1_64 = arith.constant 1 : index
    %c0_65 = arith.constant 0 : index
    %35 = vector.load %arg8[%c1_63, %c1_64, %c0_65] : memref<18x18x16xbf16, #tpu.memory_space<vmem>>, vector<16x16x16xbf16>
    tpu.vector_store %arg8[%c1_63, %c1_64, %c0_65], %34 {strides = array<i32>} : memref<18x18x16xbf16, #tpu.memory_space<vmem>>, vector<16x16x16xbf16>,
    %c0_66 = arith.constant 0 : index
    %c0_67 = arith.constant 0 : index
    %c0_68 = arith.constant 0 : index
    %36 = vector.load %arg8[%c0_66, %c0_67, %c0_68] : memref<18x18x16xbf16, #tpu.memory_space<vmem>>, vector<16x16x16xbf16>
    %c0_69 = arith.constant 0 : index
    %c1_70 = arith.constant 1 : index
    %c0_71 = arith.constant 0 : index
    %37 = vector.load %arg8[%c0_69, %c1_70, %c0_71] : memref<18x18x16xbf16, #tpu.memory_space<vmem>>, vector<16x16x16xbf16>
    %c0_72 = arith.constant 0 : index
    %c2_73 = arith.constant 2 : index
    %c0_74 = arith.constant 0 : index
    %38 = vector.load %arg8[%c0_72, %c2_73, %c0_74] : memref<18x18x16xbf16, #tpu.memory_space<vmem>>, vector<16x16x16xbf16>
    %c1_75 = arith.constant 1 : index
    %c0_76 = arith.constant 0 : index
    %c0_77 = arith.constant 0 : index
    %39 = vector.load %arg8[%c1_75, %c0_76, %c0_77] : memref<18x18x16xbf16, #tpu.memory_space<vmem>>, vector<16x16x16xbf16>
    %c1_78 = arith.constant 1 : index
    %c1_79 = arith.constant 1 : index
    %c0_80 = arith.constant 0 : index
    %40 = vector.load %arg8[%c1_78, %c1_79, %c0_80] : memref<18x18x16xbf16, #tpu.memory_space<vmem>>, vector<16x16x16xbf16>
    %c1_81 = arith.constant 1 : index
    %c2_82 = arith.constant 2 : index
    %c0_83 = arith.constant 0 : index
    %41 = vector.load %arg8[%c1_81, %c2_82, %c0_83] : memref<18x18x16xbf16, #tpu.memory_space<vmem>>, vector<16x16x16xbf16>
    %c2_84 = arith.constant 2 : index
    %c0_85 = arith.constant 0 : index
    %c0_86 = arith.constant 0 : index
    %42 = vector.load %arg8[%c2_84, %c0_85, %c0_86] : memref<18x18x16xbf16, #tpu.memory_space<vmem>>, vector<16x16x16xbf16>
    %c2_87 = arith.constant 2 : index
    %c1_88 = arith.constant 1 : index
    %c0_89 = arith.constant 0 : index
    %43 = vector.load %arg8[%c2_87, %c1_88, %c0_89] : memref<18x18x16xbf16, #tpu.memory_space<vmem>>, vector<16x16x16xbf16>
    %c2_90 = arith.constant 2 : index
    %c2_91 = arith.constant 2 : index
    %c0_92 = arith.constant 0 : index
    %44 = vector.load %arg8[%c2_90, %c2_91, %c0_92] : memref<18x18x16xbf16, #tpu.memory_space<vmem>>, vector<16x16x16xbf16>
    %45 = tpu.concatenate %36, %37, %38, %39, %40, %41, %42, %43, %44 in 2 : vector<16x16x16xbf16>, vector<16x16x16xbf16>, vector<16x16x16xbf16>, vector<16x16x16xbf16>, vector<16x16x16xbf16>, vector<16x16x16xbf16>, vector<16x16x16xbf16>, vector<16x16x16xbf16>, vector<16x16x16xbf16> -> vector<16x16x144xbf16>
    %46 = vector.shape_cast %45 : vector<16x16x144xbf16> to vector<256x144xbf16>
    %c0_93 = arith.constant 0 : index
    %c0_94 = arith.constant 0 : index
    %47 = vector.load %arg4[%c0_93, %c0_94] : memref<144x16xbf16, #tpu.memory_space<vmem>>, vector<144x16xbf16>
    %cst_95 = arith.constant dense<0.000000e+00> : vector<256x16xf32>
    %48 = tpu.matmul %46, %47, %cst_95 {dimension_numbers = #tpu.dot_dimension_numbers<[1], [0], [0], [1], [0, 0, 1, 1], [], []>} : vector<256x144xbf16>, vector<144x16xbf16>, vector<256x16xf32> -> vector<256x16xf32>
    %c0_96 = arith.constant 0 : index
    %c0_97 = arith.constant 0 : index
    %49 = vector.load %arg5[%c0_96, %c0_97] : memref<1x16xf32, #tpu.memory_space<vmem>>, vector<1x16xf32>
    %50 = vector.broadcast %49 : vector<1x16xf32> to vector<256x16xf32>
    %51 = arith.addf %48, %50 : vector<256x16xf32>
    %cst_98 = arith.constant 0.000000e+00 : f32
    %52 = vector.broadcast %cst_98 : f32 to vector<256x16xf32>
    %53 = arith.maximumf %51, %52 : vector<256x16xf32>
    %54 = vector.shape_cast %53 : vector<256x16xf32> to vector<16x16x16xf32>
    %55 = arith.truncf %54 : vector<16x16x16xf32> to vector<16x16x16xbf16>
    %c0_99 = arith.constant 0 : index
    %c0_100 = arith.constant 0 : index
    %c0_101 = arith.constant 0 : index
    %c0_102 = arith.constant 0 : index
    %56 = vector.load %arg6[%c0_99, %c0_100, %c0_101, %c0_102] : memref<1x16x16x16xbf16, #tpu.memory_space<vmem>>, vector<1x16x16x16xbf16>
    %57 = vector.shape_cast %56 : vector<1x16x16x16xbf16> to vector<16x16x16xbf16>
    %58 = vector.shape_cast %55 : vector<16x16x16xbf16> to vector<1x16x16x16xbf16>
    tpu.vector_store %arg6[%c0_99, %c0_100, %c0_101, %c0_102], %58 {strides = array<i32>} : memref<1x16x16x16xbf16, #tpu.memory_space<vmem>>, vector<1x16x16x16xbf16>,
    return
  }
  func.func @transform_0(%arg0: i32) -> (i32, i32, i32, i32) {
    %c0_i32 = arith.constant 0 : i32
    %c0_i32_0 = arith.constant 0 : i32
    %c0_i32_1 = arith.constant 0 : i32
    %c0_i32_2 = arith.constant 0 : i32
    return %arg0, %c0_i32, %c0_i32_0, %c0_i32_1 : i32, i32, i32, i32
  }
  func.func @transform_1(%arg0: i32) -> (i32, i32) {
    %c0_i32 = arith.constant 0 : i32
    %c0_i32_0 = arith.constant 0 : i32
    %c0_i32_1 = arith.constant 0 : i32
    return %c0_i32, %c0_i32_0 : i32, i32
  }
  func.func @transform_2(%arg0: i32) -> (i32, i32) {
    %c0_i32 = arith.constant 0 : i32
    %c0_i32_0 = arith.constant 0 : i32
    %c0_i32_1 = arith.constant 0 : i32
    return %c0_i32, %c0_i32_0 : i32, i32
  }
  func.func @transform_3(%arg0: i32) -> (i32, i32) {
    %c0_i32 = arith.constant 0 : i32
    %c0_i32_0 = arith.constant 0 : i32
    %c0_i32_1 = arith.constant 0 : i32
    return %c0_i32, %c0_i32_0 : i32, i32
  }
  func.func @transform_4(%arg0: i32) -> (i32, i32) {
    %c0_i32 = arith.constant 0 : i32
    %c0_i32_0 = arith.constant 0 : i32
    %c0_i32_1 = arith.constant 0 : i32
    return %c0_i32, %c0_i32_0 : i32, i32
  }
  func.func @transform_5(%arg0: i32) -> (i32, i32, i32, i32) {
    %c0_i32 = arith.constant 0 : i32
    %c0_i32_0 = arith.constant 0 : i32
    %c0_i32_1 = arith.constant 0 : i32
    %c0_i32_2 = arith.constant 0 : i32
    return %arg0, %c0_i32, %c0_i32_0, %c0_i32_1 : i32, i32, i32, i32
  }
}

</mosaic_0001>

<llo_original>
// kernel: tpu_custom_call.1
$region0: #{tpu_custom_call.1}
  #allocation0 [shape = 'u32[]', space=smem, size = 0x4, offset = 0x4, fixed_abs, tag = 'smem constant byte address 0x4 - core index']
  #allocation1 [shape = 'u32[144,128]{1,0:T(1,128)}', space=vmem, size = 0x12000, scoped, tag = 'internal scratch']
  #allocation2 [shape = 'bf16[18,18,3]{2,1,0:T(8,128)(2,1)}', space=vmem, size = 0x1b000, scoped, tag = 'scratch operand']
  #allocation3 [shape = 'bf16[18,18,16]{2,1,0:T(8,128)(2,1)}', space=vmem, size = 0x1b000, scoped, tag = 'scratch operand']
  %s0 = inlined_call_operand.vmem [shape: bf16[2,16,16,3], index: 0, kind: input, shape index: {}]
  %s1 = inlined_call_operand.vmem [shape: bf16[27,16], index: 1, kind: input, shape index: {}]
  %s2 = inlined_call_operand.vmem [shape: f32[1,16], index: 2, kind: input, shape index: {}]
  %s3 = inlined_call_operand.vmem [shape: bf16[144,16], index: 3, kind: input, shape index: {}]
  %s4 = inlined_call_operand.vmem [shape: f32[1,16], index: 4, kind: input, shape index: {}]
  %s5 = inlined_call_operand.hbm [shape: bf16[2,16,16,16], index: 5, kind: output, shape index: {}]
  %s6 = sld [smem:[#allocation0]]
  $region53: #{tpu_custom_call.1} parent=0
    _
  %s8 = ssub.s32 1, %s6
  %s9 = scalar_select 0, %s8, %s6
  $region1: #{tpu_custom_call.1} parent=0
    #allocation4 [shape = 'u8[131072]{0}', space=vmem, size = 0x20000, scoped, tag = 'output window, operand 0']
    #allocation5 [shape = 's32[2]{0}', space=sflag, size = 0x8, scoped, tag = 'scoped memory for tpu_custom_call.1']
    %10 = vsyncpa [#allocation5], 0
    %s11 = scalar_lea.sflag [#allocation5], 1
    %12 = vsyncpa %s11, 0
    loop: start=0, step=1, limit=4
    $region2: #{tpu_custom_call.1} parent=1 // loop_pre_header
      _
    $region3: #{tpu_custom_call.1} parent=1 // loop_header
      %s14 = sphi 0, %s18
      %p15 = scmp.ge.s32.totalorder %s14, 4
      %s24 = sphi 0, %s26
      %s27 = sphi 0, %s24
      %s28 = sphi 0, %s27
      %s44 = sphi 0, %s28
      %s48 = sphi 0, %s48
      %s50 = sphi 0, %s48
      %s51 = sphi 0, %s50
      %s65 = sphi 0, %s51
      %s69 = sphi 0, %s69
      %s71 = sphi 0, %s69
      %s72 = sphi 0, %s71
      %s86 = sphi 0, %s72
      %s90 = sphi 0, %s90
      %s92 = sphi 0, %s90
      %s93 = sphi 0, %s92
      %s107 = sphi 0, %s93
      %s111 = sphi 0, %s111
      %s113 = sphi 0, %s111
      %s114 = sphi 0, %s113
      %s128 = sphi 0, %s114
      %s134 = sphi 0, %s136
      %s137 = sphi 0, %s134
      %s138 = sphi 0, %s137
      %s154 = sphi 0, %s138
    $region4: #{tpu_custom_call.1} parent=1 // loop_header_branch
      %17 = sbr.rel (%p15) target = $region8
    $region5: #{tpu_custom_call.1} parent=1 // loop_body
      %s19 = ssub.s32 %s14, 1
      %s20 = ssub.s32 %s14, 2
      %s21 = sadd.s32 %s14, 1
      %s22 = ssub.s32 %s14, %s21
      %p23 = scmp.eq.s32.totalorder %s22, 0
      %s25 = sadd.s32 %s24, 1
      %s26 = scalar_select %p23, %s24, %s25
      %p29 = pneg %p23
      %p30 = scmp.eq.s32.totalorder %s14, 1
      %p31 = por %p29, %p30
      %p32 = scmp.ne.s32.totalorder %s24, %s27
      %p33 = scmp.eq.s32.totalorder %s14, 0
      %p34 = por %p32, %p33
      %p35 = scmp.ne.s32.totalorder %s24, %s27
      %p36 = scmp.eq.s32.totalorder %s19, 1
      %p37 = por %p35, %p36
      %p38 = scmp.ne.s32.totalorder %s27, %s28
      %p39 = scmp.eq.s32.totalorder %s19, 0
      %p40 = por %p38, %p39
      %p41 = scmp.ne.s32.totalorder %s27, %s28
      %p42 = scmp.eq.s32.totalorder %s20, 1
      %p43 = por %p41, %p42
      %p45 = scmp.ne.s32.totalorder %s28, %s44
      %p46 = scmp.eq.s32.totalorder %s20, 0
      %p47 = por %p45, %p46
      %s49 = sadd.s32 %s48, 1
      %p52 = scmp.eq.s32.totalorder %s14, 1
      %p53 = scmp.ne.s32.totalorder %s48, %s50
      %p54 = scmp.eq.s32.totalorder %s14, 0
      %p55 = por %p53, %p54
      %p56 = scmp.ne.s32.totalorder %s48, %s50
      %p57 = scmp.eq.s32.totalorder %s19, 1
      %p58 = por %p56, %p57
      %p59 = scmp.ne.s32.totalorder %s50, %s51
      %p60 = scmp.eq.s32.totalorder %s19, 0
      %p61 = por %p59, %p60
      %p62 = scmp.ne.s32.totalorder %s50, %s51
      %p63 = scmp.eq.s32.totalorder %s20, 1
      %p64 = por %p62, %p63
      %p66 = scmp.ne.s32.totalorder %s51, %s65
      %p67 = scmp.eq.s32.totalorder %s20, 0
      %p68 = por %p66, %p67
      %s70 = sadd.s32 %s69, 1
      %p73 = scmp.eq.s32.totalorder %s14, 1
      %p74 = scmp.ne.s32.totalorder %s69, %s71
      %p75 = scmp.eq.s32.totalorder %s14, 0
      %p76 = por %p74, %p75
      %p77 = scmp.ne.s32.totalorder %s69, %s71
      %p78 = scmp.eq.s32.totalorder %s19, 1
      %p79 = por %p77, %p78
      %p80 = scmp.ne.s32.totalorder %s71, %s72
      %p81 = scmp.eq.s32.totalorder %s19, 0
      %p82 = por %p80, %p81
      %p83 = scmp.ne.s32.totalorder %s71, %s72
      %p84 = scmp.eq.s32.totalorder %s20, 1
      %p85 = por %p83, %p84
      %p87 = scmp.ne.s32.totalorder %s72, %s86
      %p88 = scmp.eq.s32.totalorder %s20, 0
      %p89 = por %p87, %p88
      %s91 = sadd.s32 %s90, 1
      %p94 = scmp.eq.s32.totalorder %s14, 1
      %p95 = scmp.ne.s32.totalorder %s90, %s92
      %p96 = scmp.eq.s32.totalorder %s14, 0
      %p97 = por %p95, %p96
      %p98 = scmp.ne.s32.totalorder %s90, %s92
      %p99 = scmp.eq.s32.totalorder %s19, 1
      %p100 = por %p98, %p99
      %p101 = scmp.ne.s32.totalorder %s92, %s93
      %p102 = scmp.eq.s32.totalorder %s19, 0
      %p103 = por %p101, %p102
      %p104 = scmp.ne.s32.totalorder %s92, %s93
      %p105 = scmp.eq.s32.totalorder %s20, 1
      %p106 = por %p104, %p105
      %p108 = scmp.ne.s32.totalorder %s93, %s107
      %p109 = scmp.eq.s32.totalorder %s20, 0
      %p110 = por %p108, %p109
      %s112 = sadd.s32 %s111, 1
      %p115 = scmp.eq.s32.totalorder %s14, 1
      %p116 = scmp.ne.s32.totalorder %s111, %s113
      %p117 = scmp.eq.s32.totalorder %s14, 0
      %p118 = por %p116, %p117
      %p119 = scmp.ne.s32.totalorder %s111, %s113
      %p120 = scmp.eq.s32.totalorder %s19, 1
      %p121 = por %p119, %p120
      %p122 = scmp.ne.s32.totalorder %s113, %s114
      %p123 = scmp.eq.s32.totalorder %s19, 0
      %p124 = por %p122, %p123
      %p125 = scmp.ne.s32.totalorder %s113, %s114
      %p126 = scmp.eq.s32.totalorder %s20, 1
      %p127 = por %p125, %p126
      %p129 = scmp.ne.s32.totalorder %s114, %s128
      %p130 = scmp.eq.s32.totalorder %s20, 0
      %p131 = por %p129, %p130
      %s132 = ssub.s32 %s14, %s21
      %p133 = scmp.eq.s32.totalorder %s132, 0
      %s135 = sadd.s32 %s134, 1
      %s136 = scalar_select %p133, %s134, %s135
      %p139 = pneg %p133
      %p140 = scmp.eq.s32.totalorder %s14, 1
      %p141 = por %p139, %p140
      %p142 = scmp.ne.s32.totalorder %s134, %s137
      %p143 = scmp.eq.s32.totalorder %s14, 0
      %p144 = por %p142, %p143
      %p145 = scmp.ne.s32.totalorder %s134, %s137
      %p146 = scmp.eq.s32.totalorder %s19, 1
      %p147 = por %p145, %p146
      %p148 = scmp.ne.s32.totalorder %s137, %s138
      %p149 = scmp.eq.s32.totalorder %s19, 0
      %p150 = por %p148, %p149
      %p151 = scmp.ne.s32.totalorder %s137, %s138
      %p152 = scmp.eq.s32.totalorder %s20, 1
      %p153 = por %p151, %p152
      %p155 = scmp.ne.s32.totalorder %s138, %s154
      %p156 = scmp.eq.s32.totalorder %s20, 0
      %p157 = por %p155, %p156
      %p158 = scmp.le.s32.totalorder 1, %s14
      %p159 = scmp.lt.s32.totalorder %s14, 3
      %p160 = pnand %p158, %p159
      %p161 = pneg %p160
      // Predicated region
      $region9: #{tpu_custom_call.1} parent=5 // pred_check
        _
      $region10: #{tpu_custom_call.1} parent=5 // pred_check_branch
        %163 = sbr.rel (%p160) target = $region12
      $region11: #{tpu_custom_call.1} parent=5 // pred_region
        %s164 = ssub.s32 %s14, 1
        // Predicated region
        $region13: #{tpu_custom_call.1} parent=11 // pred_check
          %p165 = pneg %p61
        $region14: #{tpu_custom_call.1} parent=11 // pred_check_branch
          %167 = sbr.rel (%p165) target = $region16
        $region15: #{tpu_custom_call.1} parent=11 // pred_region
          _
        $region16: #{tpu_custom_call.1} parent=11 // pred_fallthru
          _
        // Predicated region
        $region17: #{tpu_custom_call.1} parent=11 // pred_check
          %p168 = pneg %p82
        $region18: #{tpu_custom_call.1} parent=11 // pred_check_branch
          %170 = sbr.rel (%p168) target = $region20
        $region19: #{tpu_custom_call.1} parent=11 // pred_region
          _
        $region20: #{tpu_custom_call.1} parent=11 // pred_fallthru
          _
        // Predicated region
        $region21: #{tpu_custom_call.1} parent=11 // pred_check
          %p171 = pneg %p103
        $region22: #{tpu_custom_call.1} parent=11 // pred_check_branch
          %173 = sbr.rel (%p171) target = $region24
        $region23: #{tpu_custom_call.1} parent=11 // pred_region
          _
        $region24: #{tpu_custom_call.1} parent=11 // pred_fallthru
          _
        // Predicated region
        $region25: #{tpu_custom_call.1} parent=11 // pred_check
          %p174 = pneg %p124
        $region26: #{tpu_custom_call.1} parent=11 // pred_check_branch
          %176 = sbr.rel (%p174) target = $region28
        $region27: #{tpu_custom_call.1} parent=11 // pred_region
          _
        $region28: #{tpu_custom_call.1} parent=11 // pred_fallthru
          _
      $region12: #{tpu_custom_call.1} parent=5 // pred_fallthru
        _
      %p177 = scmp.lt.s32.totalorder %s14, 2
      // Predicated region
      $region29: #{tpu_custom_call.1} parent=5 // pred_check
        %p178 = pneg %p177
      $region30: #{tpu_custom_call.1} parent=5 // pred_check_branch
        %180 = sbr.rel (%p178) target = $region32
      $region31: #{tpu_custom_call.1} parent=5 // pred_region
        // Predicated region
        $region33: #{tpu_custom_call.1} parent=31 // pred_check
          %p181 = pneg %p34
        $region34: #{tpu_custom_call.1} parent=31 // pred_check_branch
          %183 = sbr.rel (%p181) target = $region36
        $region35: #{tpu_custom_call.1} parent=31 // pred_region
          %p184 = scmp.lt.s32.totalorder %s14, 1
          %s185 = scalar_select %p184, %s14, 1
          %s186 = smul.addr %s185, 32
          %s187 = smul.addr %s186, 4
          %s188 = scalar_lea.vmem %s0, %s187
        $region36: #{tpu_custom_call.1} parent=31 // pred_fallthru
          _
      $region32: #{tpu_custom_call.1} parent=5 // pred_fallthru
        _
      %p189 = scmp.le.s32.totalorder 1, %s14
      %p190 = scmp.lt.s32.totalorder %s14, 3
      %p191 = pnand %p189, %p190
      %p192 = pneg %p191
      // Predicated region
      $region37: #{tpu_custom_call.1} parent=5 // pred_check
        _
      $region38: #{tpu_custom_call.1} parent=5 // pred_check_branch
        %194 = sbr.rel (%p191) target = $region40
      $region39: #{tpu_custom_call.1} parent=5 // pred_region
        %s195 = ssub.s32 %s14, 1
        %p196 = scmp.lt.s32.totalorder %s19, 1
        %s197 = scalar_select %p196, %s19, 1
        %s198 = smul.addr %s197, 32
        %s199 = smul.addr %s198, 4
        %s200 = scalar_lea.vmem %s0, %s199
        %p201 = pneg %p40
        %p202 = pneg %p37
        %p203 = pneg %p61
        %p204 = pneg %p58
        %p205 = pneg %p82
        %p206 = pneg %p79
        %p207 = pneg %p103
        %p208 = pneg %p100
        %p209 = pneg %p124
        %p210 = pneg %p121
        %p211 = pneg %p150
        %p212 = pneg %p147
        %s213 = sand.u32 %s137, 1
        %s214 = scalar_lea.sflag [#allocation5], %s213
        %s215 = sand.u32 %s137, 1
        %s216 = smul.addr %s215, 128
        %s217 = scalar_lea.vmem [#allocation4], %s216
        %p218 = scmp.lt.s32.totalorder %s19, 1
        %s219 = scalar_select %p218, %s19, 1
        %s220 = smul.addr %s219, 32
        %s221 = smul.addr %s220, 4
        %s222 = scalar_lea.vmem %s0, %s221
        %v224 = vld [vmem:[%s222] sm:$0xf]
        %v225 = vld [vmem:[%s222 + $0x4] sm:$0xf]
        %v226 = vld [vmem:[%s222 + $0x8] sm:$0xf]
        %v227 = vld [vmem:[%s222 + $0xc] sm:$0xf]
        %v228 = vld [vmem:[%s222 + $0x10] sm:$0xf]
        %v229 = vld [vmem:[%s222 + $0x14] sm:$0xf]
        %v230 = vld [vmem:[%s222 + $0x18] sm:$0xf]
        %v231 = vld [vmem:[%s222 + $0x1c] sm:$0xf]
        %v232 = vld [vmem:[%s222 + $0x20] sm:$0xf]
        %v233 = vld [vmem:[%s222 + $0x24] sm:$0xf]
        %v234 = vld [vmem:[%s222 + $0x28] sm:$0xf]
        %v235 = vld [vmem:[%s222 + $0x2c] sm:$0xf]
        %v236 = vld [vmem:[%s222 + $0x30] sm:$0xf]
        %v237 = vld [vmem:[%s222 + $0x34] sm:$0xf]
        %v238 = vld [vmem:[%s222 + $0x38] sm:$0xf]
        %v239 = vld [vmem:[%s222 + $0x3c] sm:$0xf]
        %v240 = vld [vmem:[%s222 + $0x40] sm:$0xf]
        %v241 = vld [vmem:[%s222 + $0x44] sm:$0xf]
        %v242 = vld [vmem:[%s222 + $0x48] sm:$0xf]
        %v243 = vld [vmem:[%s222 + $0x4c] sm:$0xf]
        %v244 = vld [vmem:[%s222 + $0x50] sm:$0xf]
        %v245 = vld [vmem:[%s222 + $0x54] sm:$0xf]
        %v246 = vld [vmem:[%s222 + $0x58] sm:$0xf]
        %v247 = vld [vmem:[%s222 + $0x5c] sm:$0xf]
        %v248 = vld [vmem:[%s222 + $0x60] sm:$0xf]
        %v249 = vld [vmem:[%s222 + $0x64] sm:$0xf]
        %v250 = vld [vmem:[%s222 + $0x68] sm:$0xf]
        %v251 = vld [vmem:[%s222 + $0x6c] sm:$0xf]
        %v252 = vld [vmem:[%s222 + $0x70] sm:$0xf]
        %v253 = vld [vmem:[%s222 + $0x74] sm:$0xf]
        %v254 = vld [vmem:[%s222 + $0x78] sm:$0xf]
        %v255 = vld [vmem:[%s222 + $0x7c] sm:$0xf]
        %vm256 = vcmask 19456
        %257 = vst.msk [vmem:[#allocation2] sm:$0xf] %vm256, 0
        %258 = vst.msk [vmem:[#allocation2 + $0x4] sm:$0xf] %vm256, 0
        %vm259 = vcmask 16384
        %260 = vst.msk [vmem:[#allocation2 + $0x8] sm:$0x1] %vm259, 0
        %s261 = scalar_lea.vmem [#allocation2], 204
        %262 = vst.msk [vmem:[%s261] sm:$0xf] %vm256, 0
        %263 = vst.msk [vmem:[%s261 + $0x4] sm:$0xf] %vm256, 0
        %264 = vst.msk [vmem:[%s261 + $0x8] sm:$0x1] %vm259, 0
        %vm265 = vcmask 16384
        %vm266 = vsmask.f32 256
        %vm267 = vmand %vm265, %vm266
        %v268 = vld [vmem:[#allocation2] sm:$0x1]
        %v269 = vsel %vm267, 0, %v268
        %270 = vst [vmem:[#allocation2] sm:$0x1] %v269
        %v271 = vld [vmem:[#allocation2 + $0xc] sm:$0x1]
        %v272 = vsel %vm267, 0, %v271
        %273 = vst [vmem:[#allocation2 + $0xc] sm:$0x1] %v272
        %v274 = vld [vmem:[#allocation2 + $0x18] sm:$0x1]
        %v275 = vsel %vm267, 0, %v274
        %276 = vst [vmem:[#allocation2 + $0x18] sm:$0x1] %v275
        %v277 = vld [vmem:[#allocation2 + $0x24] sm:$0x1]
        %v278 = vsel %vm267, 0, %v277
        %279 = vst [vmem:[#allocation2 + $0x24] sm:$0x1] %v278
        %v280 = vld [vmem:[#allocation2 + $0x30] sm:$0x1]
        %v281 = vsel %vm267, 0, %v280
        %282 = vst [vmem:[#allocation2 + $0x30] sm:$0x1] %v281
        %v283 = vld [vmem:[#allocation2 + $0x3c] sm:$0x1]
        %v284 = vsel %vm267, 0, %v283
        %285 = vst [vmem:[#allocation2 + $0x3c] sm:$0x1] %v284
        %v286 = vld [vmem:[#allocation2 + $0x48] sm:$0x1]
        %v287 = vsel %vm267, 0, %v286
        %288 = vst [vmem:[#allocation2 + $0x48] sm:$0x1] %v287
        %v289 = vld [vmem:[#allocation2 + $0x54] sm:$0x1]
        %v290 = vsel %vm267, 0, %v289
        %291 = vst [vmem:[#allocation2 + $0x54] sm:$0x1] %v290
        %v292 = vld [vmem:[#allocation2 + $0x60] sm:$0x1]
        %v293 = vsel %vm267, 0, %v292
        %294 = vst [vmem:[#allocation2 + $0x60] sm:$0x1] %v293
        %v295 = vld [vmem:[#allocation2 + $0x6c] sm:$0x1]
        %v296 = vsel %vm267, 0, %v295
        %297 = vst [vmem:[#allocation2 + $0x6c] sm:$0x1] %v296
        %v298 = vld [vmem:[#allocation2 + $0x78] sm:$0x1]
        %v299 = vsel %vm267, 0, %v298
        %300 = vst [vmem:[#allocation2 + $0x78] sm:$0x1] %v299
        %v301 = vld [vmem:[#allocation2 + $0x84] sm:$0x1]
        %v302 = vsel %vm267, 0, %v301
        %303 = vst [vmem:[#allocation2 + $0x84] sm:$0x1] %v302
        %v304 = vld [vmem:[#allocation2 + $0x90] sm:$0x1]
        %v305 = vsel %vm267, 0, %v304
        %306 = vst [vmem:[#allocation2 + $0x90] sm:$0x1] %v305
        %v307 = vld [vmem:[#allocation2 + $0x9c] sm:$0x1]
        %v308 = vsel %vm267, 0, %v307
        %309 = vst [vmem:[#allocation2 + $0x9c] sm:$0x1] %v308
        %v310 = vld [vmem:[#allocation2 + $0xa8] sm:$0x1]
        %v311 = vsel %vm267, 0, %v310
        %312 = vst [vmem:[#allocation2 + $0xa8] sm:$0x1] %v311
        %v313 = vld [vmem:[#allocation2 + $0xb4] sm:$0x1]
        %v314 = vsel %vm267, 0, %v313
        %315 = vst [vmem:[#allocation2 + $0xb4] sm:$0x1] %v314
        %v316 = vld [vmem:[#allocation2 + $0xc0] sm:$0x1]
        %v317 = vsel %vm267, 0, %v316
        %318 = vst [vmem:[#allocation2 + $0xc0] sm:$0x1] %v317
        %v319 = vld [vmem:[#allocation2 + $0xcc] sm:$0x1]
        %v320 = vsel %vm267, 0, %v319
        %321 = vst [vmem:[#allocation2 + $0xcc] sm:$0x1] %v320
        %vm322 = vsmask.f32 7938
        %vm323 = vmand %vm265, %vm322
        %v324 = vld [vmem:[#allocation2 + $0x8] sm:$0x1]
        %v325 = vsel %vm323, 0, %v324
        %326 = vst [vmem:[#allocation2 + $0x8] sm:$0x1] %v325
        %v327 = vld [vmem:[#allocation2 + $0x14] sm:$0x1]
        %v328 = vsel %vm323, 0, %v327
        %329 = vst [vmem:[#allocation2 + $0x14] sm:$0x1] %v328
        %v330 = vld [vmem:[#allocation2 + $0x20] sm:$0x1]
        %v331 = vsel %vm323, 0, %v330
        %332 = vst [vmem:[#allocation2 + $0x20] sm:$0x1] %v331
        %v333 = vld [vmem:[#allocation2 + $0x2c] sm:$0x1]
        %v334 = vsel %vm323, 0, %v333
        %335 = vst [vmem:[#allocation2 + $0x2c] sm:$0x1] %v334
        %v336 = vld [vmem:[#allocation2 + $0x38] sm:$0x1]
        %v337 = vsel %vm323, 0, %v336
        %338 = vst [vmem:[#allocation2 + $0x38] sm:$0x1] %v337
        %v339 = vld [vmem:[#allocation2 + $0x44] sm:$0x1]
        %v340 = vsel %vm323, 0, %v339
        %341 = vst [vmem:[#allocation2 + $0x44] sm:$0x1] %v340
        %v342 = vld [vmem:[#allocation2 + $0x50] sm:$0x1]
        %v343 = vsel %vm323, 0, %v342
        %344 = vst [vmem:[#allocation2 + $0x50] sm:$0x1] %v343
        %v345 = vld [vmem:[#allocation2 + $0x5c] sm:$0x1]
        %v346 = vsel %vm323, 0, %v345
        %347 = vst [vmem:[#allocation2 + $0x5c] sm:$0x1] %v346
        %v348 = vld [vmem:[#allocation2 + $0x68] sm:$0x1]
        %v349 = vsel %vm323, 0, %v348
        %350 = vst [vmem:[#allocation2 + $0x68] sm:$0x1] %v349
        %v351 = vld [vmem:[#allocation2 + $0x74] sm:$0x1]
        %v352 = vsel %vm323, 0, %v351
        %353 = vst [vmem:[#allocation2 + $0x74] sm:$0x1] %v352
        %v354 = vld [vmem:[#allocation2 + $0x80] sm:$0x1]
        %v355 = vsel %vm323, 0, %v354
        %356 = vst [vmem:[#allocation2 + $0x80] sm:$0x1] %v355
        %v357 = vld [vmem:[#allocation2 + $0x8c] sm:$0x1]
        %v358 = vsel %vm323, 0, %v357
        %359 = vst [vmem:[#allocation2 + $0x8c] sm:$0x1] %v358
        %v360 = vld [vmem:[#allocation2 + $0x98] sm:$0x1]
        %v361 = vsel %vm323, 0, %v360
        %362 = vst [vmem:[#allocation2 + $0x98] sm:$0x1] %v361
        %v363 = vld [vmem:[#allocation2 + $0xa4] sm:$0x1]
        %v364 = vsel %vm323, 0, %v363
        %365 = vst [vmem:[#allocation2 + $0xa4] sm:$0x1] %v364
        %v366 = vld [vmem:[#allocation2 + $0xb0] sm:$0x1]
        %v367 = vsel %vm323, 0, %v366
        %368 = vst [vmem:[#allocation2 + $0xb0] sm:$0x1] %v367
        %v369 = vld [vmem:[#allocation2 + $0xbc] sm:$0x1]
        %v370 = vsel %vm323, 0, %v369
        %371 = vst [vmem:[#allocation2 + $0xbc] sm:$0x1] %v370
        %v372 = vld [vmem:[#allocation2 + $0xc8] sm:$0x1]
        %v373 = vsel %vm323, 0, %v372
        %374 = vst [vmem:[#allocation2 + $0xc8] sm:$0x1] %v373
        %v375 = vld [vmem:[#allocation2 + $0xd4] sm:$0x1]
        %v376 = vsel %vm323, 0, %v375
        %377 = vst [vmem:[#allocation2 + $0xd4] sm:$0x1] %v376
        %vm378 = vsmask.f32 4368
        %vm379 = vmor %vm266, %vm378
        %v381 = vshrl.u32 %v224, 16
        %v383 = vrot.slane %v381, 7
        %v384 = vshll.u32 %v224, 16
        %v386 = vor.u32 %v383, %v384
        %v387 = vrot.slane %v383, 4
        %v389 = vshrl.u32 %v225, 16
        %v391 = vrot.slane %v389, 7
        %v392 = vshll.u32 %v225, 16
        %v394 = vor.u32 %v391, %v392
        %v395 = vsel %vm379, %v387, %v394
        %v396 = vrot.slane %v391, 4
        %v398 = vshrl.u32 %v226, 16
        %v400 = vrot.slane %v398, 7
        %v401 = vshll.u32 %v226, 16
        %v403 = vor.u32 %v400, %v401
        %v404 = vrot.slane %v400, 4
        %v406 = vshrl.u32 %v227, 16
        %v408 = vrot.slane %v406, 7
        %v409 = vshll.u32 %v227, 16
        %v411 = vor.u32 %v408, %v409
        %v412 = vsel %vm379, %v404, %v411
        %v413 = vrot.slane %v408, 4
        %v415 = vshrl.u32 %v228, 16
        %v417 = vrot.slane %v415, 7
        %v418 = vshll.u32 %v228, 16
        %v420 = vor.u32 %v417, %v418
        %v421 = vrot.slane %v417, 4
        %v423 = vshrl.u32 %v229, 16
        %v425 = vrot.slane %v423, 7
        %v426 = vshll.u32 %v229, 16
        %v428 = vor.u32 %v425, %v426
        %v429 = vsel %vm379, %v421, %v428
        %v430 = vrot.slane %v425, 4
        %v432 = vshrl.u32 %v230, 16
        %v434 = vrot.slane %v432, 7
        %v435 = vshll.u32 %v230, 16
        %v437 = vor.u32 %v434, %v435
        %v438 = vrot.slane %v434, 4
        %v440 = vshrl.u32 %v231, 16
        %v442 = vrot.slane %v440, 7
        %v443 = vshll.u32 %v231, 16
        %v445 = vor.u32 %v442, %v443
        %v446 = vsel %vm379, %v438, %v445
        %v447 = vrot.slane %v442, 4
        %v449 = vshrl.u32 %v232, 16
        %v451 = vrot.slane %v449, 7
        %v452 = vshll.u32 %v232, 16
        %v454 = vor.u32 %v451, %v452
        %v455 = vrot.slane %v451, 4
        %v457 = vshrl.u32 %v233, 16
        %v459 = vrot.slane %v457, 7
        %v460 = vshll.u32 %v233, 16
        %v462 = vor.u32 %v459, %v460
        %v463 = vsel %vm379, %v455, %v462
        %v464 = vrot.slane %v459, 4
        %v466 = vshrl.u32 %v234, 16
        %v468 = vrot.slane %v466, 7
        %v469 = vshll.u32 %v234, 16
        %v471 = vor.u32 %v468, %v469
        %v472 = vrot.slane %v468, 4
        %v474 = vshrl.u32 %v235, 16
        %v476 = vrot.slane %v474, 7
        %v477 = vshll.u32 %v235, 16
        %v479 = vor.u32 %v476, %v477
        %v480 = vsel %vm379, %v472, %v479
        %v481 = vrot.slane %v476, 4
        %v483 = vshrl.u32 %v236, 16
        %v485 = vrot.slane %v483, 7
        %v486 = vshll.u32 %v236, 16
        %v488 = vor.u32 %v485, %v486
        %v489 = vrot.slane %v485, 4
        %v491 = vshrl.u32 %v237, 16
        %v493 = vrot.slane %v491, 7
        %v494 = vshll.u32 %v237, 16
        %v496 = vor.u32 %v493, %v494
        %v497 = vsel %vm379, %v489, %v496
        %v498 = vrot.slane %v493, 4
        %v500 = vshrl.u32 %v238, 16
        %v502 = vrot.slane %v500, 7
        %v503 = vshll.u32 %v238, 16
        %v505 = vor.u32 %v502, %v503
        %v506 = vrot.slane %v502, 4
        %v508 = vshrl.u32 %v239, 16
        %v510 = vrot.slane %v508, 7
        %v511 = vshll.u32 %v239, 16
        %v513 = vor.u32 %v510, %v511
        %v514 = vsel %vm379, %v506, %v513
        %v515 = vrot.slane %v510, 4
        %v517 = vshrl.u32 %v240, 16
        %v519 = vrot.slane %v517, 7
        %v520 = vshll.u32 %v240, 16
        %v522 = vor.u32 %v519, %v520
        %v523 = vrot.slane %v519, 4
        %v525 = vshrl.u32 %v241, 16
        %v527 = vrot.slane %v525, 7
        %v528 = vshll.u32 %v241, 16
        %v530 = vor.u32 %v527, %v528
        %v531 = vsel %vm379, %v523, %v530
        %v532 = vrot.slane %v527, 4
        %v534 = vshrl.u32 %v242, 16
        %v536 = vrot.slane %v534, 7
        %v537 = vshll.u32 %v242, 16
        %v539 = vor.u32 %v536, %v537
        %v540 = vrot.slane %v536, 4
        %v542 = vshrl.u32 %v243, 16
        %v544 = vrot.slane %v542, 7
        %v545 = vshll.u32 %v243, 16
        %v547 = vor.u32 %v544, %v545
        %v548 = vsel %vm379, %v540, %v547
        %v549 = vrot.slane %v544, 4
        %v551 = vshrl.u32 %v244, 16
        %v553 = vrot.slane %v551, 7
        %v554 = vshll.u32 %v244, 16
        %v556 = vor.u32 %v553, %v554
        %v557 = vrot.slane %v553, 4
        %v559 = vshrl.u32 %v245, 16
        %v561 = vrot.slane %v559, 7
        %v562 = vshll.u32 %v245, 16
        %v564 = vor.u32 %v561, %v562
        %v565 = vsel %vm379, %v557, %v564
        %v566 = vrot.slane %v561, 4
        %v568 = vshrl.u32 %v246, 16
        %v570 = vrot.slane %v568, 7
        %v571 = vshll.u32 %v246, 16
        %v573 = vor.u32 %v570, %v571
        %v574 = vrot.slane %v570, 4
        %v576 = vshrl.u32 %v247, 16
        %v578 = vrot.slane %v576, 7
        %v579 = vshll.u32 %v247, 16
        %v581 = vor.u32 %v578, %v579
        %v582 = vsel %vm379, %v574, %v581
        %v583 = vrot.slane %v578, 4
        %v585 = vshrl.u32 %v248, 16
        %v587 = vrot.slane %v585, 7
        %v588 = vshll.u32 %v248, 16
        %v590 = vor.u32 %v587, %v588
        %v591 = vrot.slane %v587, 4
        %v593 = vshrl.u32 %v249, 16
        %v595 = vrot.slane %v593, 7
        %v596 = vshll.u32 %v249, 16
        %v598 = vor.u32 %v595, %v596
        %v599 = vsel %vm379, %v591, %v598
        %v600 = vrot.slane %v595, 4
        %v602 = vshrl.u32 %v250, 16
        %v604 = vrot.slane %v602, 7
        %v605 = vshll.u32 %v250, 16
        %v607 = vor.u32 %v604, %v605
        %v608 = vrot.slane %v604, 4
        %v610 = vshrl.u32 %v251, 16
        %v612 = vrot.slane %v610, 7
        %v613 = vshll.u32 %v251, 16
        %v615 = vor.u32 %v612, %v613
        %v616 = vsel %vm379, %v608, %v615
        %v617 = vrot.slane %v612, 4
        %v619 = vshrl.u32 %v252, 16
        %v621 = vrot.slane %v619, 7
        %v622 = vshll.u32 %v252, 16
        %v624 = vor.u32 %v621, %v622
        %v625 = vrot.slane %v621, 4
        %v627 = vshrl.u32 %v253, 16
        %v629 = vrot.slane %v627, 7
        %v630 = vshll.u32 %v253, 16
        %v632 = vor.u32 %v629, %v630
        %v633 = vsel %vm379, %v625, %v632
        %v634 = vrot.slane %v629, 4
        %v636 = vshrl.u32 %v254, 16
        %v638 = vrot.slane %v636, 7
        %v639 = vshll.u32 %v254, 16
        %v641 = vor.u32 %v638, %v639
        %v642 = vrot.slane %v638, 4
        %v644 = vshrl.u32 %v255, 16
        %v646 = vrot.slane %v644, 7
        %v647 = vshll.u32 %v255, 16
        %v649 = vor.u32 %v646, %v647
        %v650 = vsel %vm379, %v642, %v649
        %v651 = vrot.slane %v646, 4
        %s700 = scalar_lea.vmem [#allocation2], 12
        %vm701 = vcmask 19456
        %vm702 = vmand %vm701, %vm322
        %v703 = vld [vmem:[%s700] sm:$0xf]
        %v704 = vsel %vm702, %v386, %v703
        %705 = vst [vmem:[%s700] sm:$0xf] %v704
        %706 = vst.msk [vmem:[%s700 + $0x4] sm:$0xf] %vm256, %v395
        %v707 = vld [vmem:[%s700 + $0x8] sm:$0x1]
        %v708 = vsel %vm267, %v396, %v707
        %709 = vst [vmem:[%s700 + $0x8] sm:$0x1] %v708
        %v710 = vld [vmem:[%s700 + $0xc] sm:$0xf]
        %v711 = vsel %vm702, %v403, %v710
        %712 = vst [vmem:[%s700 + $0xc] sm:$0xf] %v711
        %713 = vst.msk [vmem:[%s700 + $0x10] sm:$0xf] %vm256, %v412
        %v714 = vld [vmem:[%s700 + $0x14] sm:$0x1]
        %v715 = vsel %vm267, %v413, %v714
        %716 = vst [vmem:[%s700 + $0x14] sm:$0x1] %v715
        %v717 = vld [vmem:[%s700 + $0x18] sm:$0xf]
        %v718 = vsel %vm702, %v420, %v717
        %719 = vst [vmem:[%s700 + $0x18] sm:$0xf] %v718
        %720 = vst.msk [vmem:[%s700 + $0x1c] sm:$0xf] %vm256, %v429
        %v721 = vld [vmem:[%s700 + $0x20] sm:$0x1]
        %v722 = vsel %vm267, %v430, %v721
        %723 = vst [vmem:[%s700 + $0x20] sm:$0x1] %v722
        %v724 = vld [vmem:[%s700 + $0x24] sm:$0xf]
        %v725 = vsel %vm702, %v437, %v724
        %726 = vst [vmem:[%s700 + $0x24] sm:$0xf] %v725
        %727 = vst.msk [vmem:[%s700 + $0x28] sm:$0xf] %vm256, %v446
        %v728 = vld [vmem:[%s700 + $0x2c] sm:$0x1]
        %v729 = vsel %vm267, %v447, %v728
        %730 = vst [vmem:[%s700 + $0x2c] sm:$0x1] %v729
        %v731 = vld [vmem:[%s700 + $0x30] sm:$0xf]
        %v732 = vsel %vm702, %v454, %v731
        %733 = vst [vmem:[%s700 + $0x30] sm:$0xf] %v732
        %734 = vst.msk [vmem:[%s700 + $0x34] sm:$0xf] %vm256, %v463
        %v735 = vld [vmem:[%s700 + $0x38] sm:$0x1]
        %v736 = vsel %vm267, %v464, %v735
        %737 = vst [vmem:[%s700 + $0x38] sm:$0x1] %v736
        %v738 = vld [vmem:[%s700 + $0x3c] sm:$0xf]
        %v739 = vsel %vm702, %v471, %v738
        %740 = vst [vmem:[%s700 + $0x3c] sm:$0xf] %v739
        %741 = vst.msk [vmem:[%s700 + $0x40] sm:$0xf] %vm256, %v480
        %v742 = vld [vmem:[%s700 + $0x44] sm:$0x1]
        %v743 = vsel %vm267, %v481, %v742
        %744 = vst [vmem:[%s700 + $0x44] sm:$0x1] %v743
        %v745 = vld [vmem:[%s700 + $0x48] sm:$0xf]
        %v746 = vsel %vm702, %v488, %v745
        %747 = vst [vmem:[%s700 + $0x48] sm:$0xf] %v746
        %748 = vst.msk [vmem:[%s700 + $0x4c] sm:$0xf] %vm256, %v497
        %v749 = vld [vmem:[%s700 + $0x50] sm:$0x1]
        %v750 = vsel %vm267, %v498, %v749
        %751 = vst [vmem:[%s700 + $0x50] sm:$0x1] %v750
        %v752 = vld [vmem:[%s700 + $0x54] sm:$0xf]
        %v753 = vsel %vm702, %v505, %v752
        %754 = vst [vmem:[%s700 + $0x54] sm:$0xf] %v753
        %755 = vst.msk [vmem:[%s700 + $0x58] sm:$0xf] %vm256, %v514
        %v756 = vld [vmem:[%s700 + $0x5c] sm:$0x1]
        %v757 = vsel %vm267, %v515, %v756
        %758 = vst [vmem:[%s700 + $0x5c] sm:$0x1] %v757
        %v759 = vld [vmem:[%s700 + $0x60] sm:$0xf]
        %v760 = vsel %vm702, %v522, %v759
        %761 = vst [vmem:[%s700 + $0x60] sm:$0xf] %v760
        %762 = vst.msk [vmem:[%s700 + $0x64] sm:$0xf] %vm256, %v531
        %v763 = vld [vmem:[%s700 + $0x68] sm:$0x1]
        %v764 = vsel %vm267, %v532, %v763
        %765 = vst [vmem:[%s700 + $0x68] sm:$0x1] %v764
        %v766 = vld [vmem:[%s700 + $0x6c] sm:$0xf]
        %v767 = vsel %vm702, %v539, %v766
        %768 = vst [vmem:[%s700 + $0x6c] sm:$0xf] %v767
        %769 = vst.msk [vmem:[%s700 + $0x70] sm:$0xf] %vm256, %v548
        %v770 = vld [vmem:[%s700 + $0x74] sm:$0x1]
        %v771 = vsel %vm267, %v549, %v770
        %772 = vst [vmem:[%s700 + $0x74] sm:$0x1] %v771
        %v773 = vld [vmem:[%s700 + $0x78] sm:$0xf]
        %v774 = vsel %vm702, %v556, %v773
        %775 = vst [vmem:[%s700 + $0x78] sm:$0xf] %v774
        %776 = vst.msk [vmem:[%s700 + $0x7c] sm:$0xf] %vm256, %v565
        %v777 = vld [vmem:[%s700 + $0x80] sm:$0x1]
        %v778 = vsel %vm267, %v566, %v777
        %779 = vst [vmem:[%s700 + $0x80] sm:$0x1] %v778
        %v780 = vld [vmem:[%s700 + $0x84] sm:$0xf]
        %v781 = vsel %vm702, %v573, %v780
        %782 = vst [vmem:[%s700 + $0x84] sm:$0xf] %v781
        %783 = vst.msk [vmem:[%s700 + $0x88] sm:$0xf] %vm256, %v582
        %v784 = vld [vmem:[%s700 + $0x8c] sm:$0x1]
        %v785 = vsel %vm267, %v583, %v784
        %786 = vst [vmem:[%s700 + $0x8c] sm:$0x1] %v785
        %v787 = vld [vmem:[%s700 + $0x90] sm:$0xf]
        %v788 = vsel %vm702, %v590, %v787
        %789 = vst [vmem:[%s700 + $0x90] sm:$0xf] %v788
        %790 = vst.msk [vmem:[%s700 + $0x94] sm:$0xf] %vm256, %v599
        %v791 = vld [vmem:[%s700 + $0x98] sm:$0x1]
        %v792 = vsel %vm267, %v600, %v791
        %793 = vst [vmem:[%s700 + $0x98] sm:$0x1] %v792
        %v794 = vld [vmem:[%s700 + $0x9c] sm:$0xf]
        %v795 = vsel %vm702, %v607, %v794
        %796 = vst [vmem:[%s700 + $0x9c] sm:$0xf] %v795
        %797 = vst.msk [vmem:[%s700 + $0xa0] sm:$0xf] %vm256, %v616
        %v798 = vld [vmem:[%s700 + $0xa4] sm:$0x1]
        %v799 = vsel %vm267, %v617, %v798
        %800 = vst [vmem:[%s700 + $0xa4] sm:$0x1] %v799
        %v801 = vld [vmem:[%s700 + $0xa8] sm:$0xf]
        %v802 = vsel %vm702, %v624, %v801
        %803 = vst [vmem:[%s700 + $0xa8] sm:$0xf] %v802
        %804 = vst.msk [vmem:[%s700 + $0xac] sm:$0xf] %vm256, %v633
        %v805 = vld [vmem:[%s700 + $0xb0] sm:$0x1]
        %v806 = vsel %vm267, %v634, %v805
        %807 = vst [vmem:[%s700 + $0xb0] sm:$0x1] %v806
        %v808 = vld [vmem:[%s700 + $0xb4] sm:$0xf]
        %v809 = vsel %vm702, %v641, %v808
        %810 = vst [vmem:[%s700 + $0xb4] sm:$0xf] %v809
        %811 = vst.msk [vmem:[%s700 + $0xb8] sm:$0xf] %vm256, %v650
        %v812 = vld [vmem:[%s700 + $0xbc] sm:$0x1]
        %v813 = vsel %vm267, %v651, %v812
        %814 = vst [vmem:[%s700 + $0xbc] sm:$0x1] %v813
        %v815 = vld [vmem:[#allocation2] sm:$0xf]
        %v816 = vld [vmem:[#allocation2 + $0x4] sm:$0xf]
        %v817 = vld [vmem:[#allocation2 + $0xc] sm:$0xf]
        %v818 = vld [vmem:[#allocation2 + $0x10] sm:$0xf]
        %v819 = vld [vmem:[#allocation2 + $0x18] sm:$0xf]
        %v820 = vld [vmem:[#allocation2 + $0x1c] sm:$0xf]
        %v821 = vld [vmem:[#allocation2 + $0x24] sm:$0xf]
        %v822 = vld [vmem:[#allocation2 + $0x28] sm:$0xf]
        %v823 = vld [vmem:[#allocation2 + $0x30] sm:$0xf]
        %v824 = vld [vmem:[#allocation2 + $0x34] sm:$0xf]
        %v825 = vld [vmem:[#allocation2 + $0x3c] sm:$0xf]
        %v826 = vld [vmem:[#allocation2 + $0x40] sm:$0xf]
        %v827 = vld [vmem:[#allocation2 + $0x48] sm:$0xf]
        %v828 = vld [vmem:[#allocation2 + $0x4c] sm:$0xf]
        %v829 = vld [vmem:[#allocation2 + $0x54] sm:$0xf]
        %v830 = vld [vmem:[#allocation2 + $0x58] sm:$0xf]
        %v831 = vld [vmem:[#allocation2 + $0x60] sm:$0xf]
        %v832 = vld [vmem:[#allocation2 + $0x64] sm:$0xf]
        %v833 = vld [vmem:[#allocation2 + $0x6c] sm:$0xf]
        %v834 = vld [vmem:[#allocation2 + $0x70] sm:$0xf]
        %v835 = vld [vmem:[#allocation2 + $0x78] sm:$0xf]
        %v836 = vld [vmem:[#allocation2 + $0x7c] sm:$0xf]
        %v837 = vld [vmem:[#allocation2 + $0x84] sm:$0xf]
        %v838 = vld [vmem:[#allocation2 + $0x88] sm:$0xf]
        %v839 = vld [vmem:[#allocation2 + $0x90] sm:$0xf]
        %v840 = vld [vmem:[#allocation2 + $0x94] sm:$0xf]
        %v841 = vld [vmem:[#allocation2 + $0x9c] sm:$0xf]
        %v842 = vld [vmem:[#allocation2 + $0xa0] sm:$0xf]
        %v843 = vld [vmem:[#allocation2 + $0xa8] sm:$0xf]
        %v844 = vld [vmem:[#allocation2 + $0xac] sm:$0xf]
        %v845 = vld [vmem:[#allocation2 + $0xb4] sm:$0xf]
        %v846 = vld [vmem:[#allocation2 + $0xb8] sm:$0xf]
        %v847 = vld [vmem:[#allocation2 + $0x8] sm:$0x1]
        %v848 = vld [vmem:[#allocation2 + $0x14] sm:$0x1]
        %v849 = vld [vmem:[#allocation2 + $0x20] sm:$0x1]
        %v850 = vld [vmem:[#allocation2 + $0x2c] sm:$0x1]
        %v851 = vld [vmem:[#allocation2 + $0x38] sm:$0x1]
        %v852 = vld [vmem:[#allocation2 + $0x44] sm:$0x1]
        %v853 = vld [vmem:[#allocation2 + $0x50] sm:$0x1]
        %v854 = vld [vmem:[#allocation2 + $0x5c] sm:$0x1]
        %v855 = vld [vmem:[#allocation2 + $0x68] sm:$0x1]
        %v856 = vld [vmem:[#allocation2 + $0x74] sm:$0x1]
        %v857 = vld [vmem:[#allocation2 + $0x80] sm:$0x1]
        %v858 = vld [vmem:[#allocation2 + $0x8c] sm:$0x1]
        %v859 = vld [vmem:[#allocation2 + $0x98] sm:$0x1]
        %v860 = vld [vmem:[#allocation2 + $0xa4] sm:$0x1]
        %v861 = vld [vmem:[#allocation2 + $0xb0] sm:$0x1]
        %v862 = vld [vmem:[#allocation2 + $0xbc] sm:$0x1]
        %v863 = vld [vmem:[#allocation2] sm:$0xe]
        %v864 = vld [vmem:[#allocation2 + $0xc] sm:$0xe]
        %v865 = vld [vmem:[#allocation2 + $0x18] sm:$0xe]
        %v866 = vld [vmem:[#allocation2 + $0x24] sm:$0xe]
        %v867 = vld [vmem:[#allocation2 + $0x30] sm:$0xe]
        %v868 = vld [vmem:[#allocation2 + $0x3c] sm:$0xe]
        %v869 = vld [vmem:[#allocation2 + $0x48] sm:$0xe]
        %v870 = vld [vmem:[#allocation2 + $0x54] sm:$0xe]
        %v871 = vld [vmem:[#allocation2 + $0x60] sm:$0xe]
        %v872 = vld [vmem:[#allocation2 + $0x6c] sm:$0xe]
        %v873 = vld [vmem:[#allocation2 + $0x78] sm:$0xe]
        %v874 = vld [vmem:[#allocation2 + $0x84] sm:$0xe]
        %v875 = vld [vmem:[#allocation2 + $0x90] sm:$0xe]
        %v876 = vld [vmem:[#allocation2 + $0x9c] sm:$0xe]
        %v877 = vld [vmem:[#allocation2 + $0xa8] sm:$0xe]
        %v878 = vld [vmem:[#allocation2 + $0xb4] sm:$0xe]
        %v879 = vld [vmem:[%s700] sm:$0xf]
        %v880 = vld [vmem:[%s700 + $0x4] sm:$0xf]
        %v881 = vld [vmem:[%s700 + $0xc] sm:$0xf]
        %v882 = vld [vmem:[%s700 + $0x10] sm:$0xf]
        %v883 = vld [vmem:[%s700 + $0x18] sm:$0xf]
        %v884 = vld [vmem:[%s700 + $0x1c] sm:$0xf]
        %v885 = vld [vmem:[%s700 + $0x24] sm:$0xf]
        %v886 = vld [vmem:[%s700 + $0x28] sm:$0xf]
        %v887 = vld [vmem:[%s700 + $0x30] sm:$0xf]
        %v888 = vld [vmem:[%s700 + $0x34] sm:$0xf]
        %v889 = vld [vmem:[%s700 + $0x3c] sm:$0xf]
        %v890 = vld [vmem:[%s700 + $0x40] sm:$0xf]
        %v891 = vld [vmem:[%s700 + $0x48] sm:$0xf]
        %v892 = vld [vmem:[%s700 + $0x4c] sm:$0xf]
        %v893 = vld [vmem:[%s700 + $0x54] sm:$0xf]
        %v894 = vld [vmem:[%s700 + $0x58] sm:$0xf]
        %v895 = vld [vmem:[%s700 + $0x60] sm:$0xf]
        %v896 = vld [vmem:[%s700 + $0x64] sm:$0xf]
        %v897 = vld [vmem:[%s700 + $0x6c] sm:$0xf]
        %v898 = vld [vmem:[%s700 + $0x70] sm:$0xf]
        %v899 = vld [vmem:[%s700 + $0x78] sm:$0xf]
        %v900 = vld [vmem:[%s700 + $0x7c] sm:$0xf]
        %v901 = vld [vmem:[%s700 + $0x84] sm:$0xf]
        %v902 = vld [vmem:[%s700 + $0x88] sm:$0xf]
        %v903 = vld [vmem:[%s700 + $0x90] sm:$0xf]
        %v904 = vld [vmem:[%s700 + $0x94] sm:$0xf]
        %v905 = vld [vmem:[%s700 + $0x9c] sm:$0xf]
        %v906 = vld [vmem:[%s700 + $0xa0] sm:$0xf]
        %v907 = vld [vmem:[%s700 + $0xa8] sm:$0xf]
        %v908 = vld [vmem:[%s700 + $0xac] sm:$0xf]
        %v909 = vld [vmem:[%s700 + $0xb4] sm:$0xf]
        %v910 = vld [vmem:[%s700 + $0xb8] sm:$0xf]
        %v911 = vld [vmem:[%s700 + $0x8] sm:$0x1]
        %v912 = vld [vmem:[%s700 + $0x14] sm:$0x1]
        %v913 = vld [vmem:[%s700 + $0x20] sm:$0x1]
        %v914 = vld [vmem:[%s700 + $0x2c] sm:$0x1]
        %v915 = vld [vmem:[%s700 + $0x38] sm:$0x1]
        %v916 = vld [vmem:[%s700 + $0x44] sm:$0x1]
        %v917 = vld [vmem:[%s700 + $0x50] sm:$0x1]
        %v918 = vld [vmem:[%s700 + $0x5c] sm:$0x1]
        %v919 = vld [vmem:[%s700 + $0x68] sm:$0x1]
        %v920 = vld [vmem:[%s700 + $0x74] sm:$0x1]
        %v921 = vld [vmem:[%s700 + $0x80] sm:$0x1]
        %v922 = vld [vmem:[%s700 + $0x8c] sm:$0x1]
        %v923 = vld [vmem:[%s700 + $0x98] sm:$0x1]
        %v924 = vld [vmem:[%s700 + $0xa4] sm:$0x1]
        %v925 = vld [vmem:[%s700 + $0xb0] sm:$0x1]
        %v926 = vld [vmem:[%s700 + $0xbc] sm:$0x1]
        %v927 = vld [vmem:[%s700] sm:$0xe]
        %v928 = vld [vmem:[%s700 + $0xc] sm:$0xe]
        %v929 = vld [vmem:[%s700 + $0x18] sm:$0xe]
        %v930 = vld [vmem:[%s700 + $0x24] sm:$0xe]
        %v931 = vld [vmem:[%s700 + $0x30] sm:$0xe]
        %v932 = vld [vmem:[%s700 + $0x3c] sm:$0xe]
        %v933 = vld [vmem:[%s700 + $0x48] sm:$0xe]
        %v934 = vld [vmem:[%s700 + $0x54] sm:$0xe]
        %v935 = vld [vmem:[%s700 + $0x60] sm:$0xe]
        %v936 = vld [vmem:[%s700 + $0x6c] sm:$0xe]
        %v937 = vld [vmem:[%s700 + $0x78] sm:$0xe]
        %v938 = vld [vmem:[%s700 + $0x84] sm:$0xe]
        %v939 = vld [vmem:[%s700 + $0x90] sm:$0xe]
        %v940 = vld [vmem:[%s700 + $0x9c] sm:$0xe]
        %v941 = vld [vmem:[%s700 + $0xa8] sm:$0xe]
        %v942 = vld [vmem:[%s700 + $0xb4] sm:$0xe]
        %s943 = scalar_lea.vmem [#allocation2], 24
        %v944 = vld [vmem:[%s943] sm:$0xf]
        %v945 = vld [vmem:[%s943 + $0x4] sm:$0xf]
        %v946 = vld [vmem:[%s943 + $0xc] sm:$0xf]
        %v947 = vld [vmem:[%s943 + $0x10] sm:$0xf]
        %v948 = vld [vmem:[%s943 + $0x18] sm:$0xf]
        %v949 = vld [vmem:[%s943 + $0x1c] sm:$0xf]
        %v950 = vld [vmem:[%s943 + $0x24] sm:$0xf]
        %v951 = vld [vmem:[%s943 + $0x28] sm:$0xf]
        %v952 = vld [vmem:[%s943 + $0x30] sm:$0xf]
        %v953 = vld [vmem:[%s943 + $0x34] sm:$0xf]
        %v954 = vld [vmem:[%s943 + $0x3c] sm:$0xf]
        %v955 = vld [vmem:[%s943 + $0x40] sm:$0xf]
        %v956 = vld [vmem:[%s943 + $0x48] sm:$0xf]
        %v957 = vld [vmem:[%s943 + $0x4c] sm:$0xf]
        %v958 = vld [vmem:[%s943 + $0x54] sm:$0xf]
        %v959 = vld [vmem:[%s943 + $0x58] sm:$0xf]
        %v960 = vld [vmem:[%s943 + $0x60] sm:$0xf]
        %v961 = vld [vmem:[%s943 + $0x64] sm:$0xf]
        %v962 = vld [vmem:[%s943 + $0x6c] sm:$0xf]
        %v963 = vld [vmem:[%s943 + $0x70] sm:$0xf]
        %v964 = vld [vmem:[%s943 + $0x78] sm:$0xf]
        %v965 = vld [vmem:[%s943 + $0x7c] sm:$0xf]
        %v966 = vld [vmem:[%s943 + $0x84] sm:$0xf]
        %v967 = vld [vmem:[%s943 + $0x88] sm:$0xf]
        %v968 = vld [vmem:[%s943 + $0x90] sm:$0xf]
        %v969 = vld [vmem:[%s943 + $0x94] sm:$0xf]
        %v970 = vld [vmem:[%s943 + $0x9c] sm:$0xf]
        %v971 = vld [vmem:[%s943 + $0xa0] sm:$0xf]
        %v972 = vld [vmem:[%s943 + $0xa8] sm:$0xf]
        %v973 = vld [vmem:[%s943 + $0xac] sm:$0xf]
        %v974 = vld [vmem:[%s943 + $0xb4] sm:$0xf]
        %v975 = vld [vmem:[%s943 + $0xb8] sm:$0xf]
        %v976 = vld [vmem:[%s943 + $0x8] sm:$0x1]
        %v977 = vld [vmem:[%s943 + $0x14] sm:$0x1]
        %v978 = vld [vmem:[%s943 + $0x20] sm:$0x1]
        %v979 = vld [vmem:[%s943 + $0x2c] sm:$0x1]
        %v980 = vld [vmem:[%s943 + $0x38] sm:$0x1]
        %v981 = vld [vmem:[%s943 + $0x44] sm:$0x1]
        %v982 = vld [vmem:[%s943 + $0x50] sm:$0x1]
        %v983 = vld [vmem:[%s943 + $0x5c] sm:$0x1]
        %v984 = vld [vmem:[%s943 + $0x68] sm:$0x1]
        %v985 = vld [vmem:[%s943 + $0x74] sm:$0x1]
        %v986 = vld [vmem:[%s943 + $0x80] sm:$0x1]
        %v987 = vld [vmem:[%s943 + $0x8c] sm:$0x1]
        %v988 = vld [vmem:[%s943 + $0x98] sm:$0x1]
        %v989 = vld [vmem:[%s943 + $0xa4] sm:$0x1]
        %v990 = vld [vmem:[%s943 + $0xb0] sm:$0x1]
        %v991 = vld [vmem:[%s943 + $0xbc] sm:$0x1]
        %v992 = vld [vmem:[%s943] sm:$0xe]
        %v993 = vld [vmem:[%s943 + $0xc] sm:$0xe]
        %v994 = vld [vmem:[%s943 + $0x18] sm:$0xe]
        %v995 = vld [vmem:[%s943 + $0x24] sm:$0xe]
        %v996 = vld [vmem:[%s943 + $0x30] sm:$0xe]
        %v997 = vld [vmem:[%s943 + $0x3c] sm:$0xe]
        %v998 = vld [vmem:[%s943 + $0x48] sm:$0xe]
        %v999 = vld [vmem:[%s943 + $0x54] sm:$0xe]
        %v1000 = vld [vmem:[%s943 + $0x60] sm:$0xe]
        %v1001 = vld [vmem:[%s943 + $0x6c] sm:$0xe]
        %v1002 = vld [vmem:[%s943 + $0x78] sm:$0xe]
        %v1003 = vld [vmem:[%s943 + $0x84] sm:$0xe]
        %v1004 = vld [vmem:[%s943 + $0x90] sm:$0xe]
        %v1005 = vld [vmem:[%s943 + $0x9c] sm:$0xe]
        %v1006 = vld [vmem:[%s943 + $0xa8] sm:$0xe]
        %v1007 = vld [vmem:[%s943 + $0xb4] sm:$0xe]
        %v1040 = vunpack.c.l.b16 %v815
        %v1041 = vunpack.c.l.b16 %v816
        %v1042 = vunpack.c.l.b16 %v817
        %v1043 = vunpack.c.l.b16 %v818
        %v1044 = vunpack.c.l.b16 %v819
        %v1045 = vunpack.c.l.b16 %v820
        %v1046 = vunpack.c.l.b16 %v821
        %v1047 = vunpack.c.l.b16 %v822
        %v1048 = vunpack.c.l.b16 %v823
        %v1049 = vunpack.c.l.b16 %v824
        %v1050 = vunpack.c.l.b16 %v825
        %v1051 = vunpack.c.l.b16 %v826
        %v1052 = vunpack.c.l.b16 %v827
        %v1053 = vunpack.c.l.b16 %v828
        %v1054 = vunpack.c.l.b16 %v829
        %v1055 = vunpack.c.l.b16 %v830
        %v1056 = vunpack.c.l.b16 %v831
        %v1057 = vunpack.c.l.b16 %v832
        %v1058 = vunpack.c.l.b16 %v833
        %v1059 = vunpack.c.l.b16 %v834
        %v1060 = vunpack.c.l.b16 %v835
        %v1061 = vunpack.c.l.b16 %v836
        %v1062 = vunpack.c.l.b16 %v837
        %v1063 = vunpack.c.l.b16 %v838
        %v1064 = vunpack.c.l.b16 %v839
        %v1065 = vunpack.c.l.b16 %v840
        %v1066 = vunpack.c.l.b16 %v841
        %v1067 = vunpack.c.l.b16 %v842
        %v1068 = vunpack.c.l.b16 %v843
        %v1069 = vunpack.c.l.b16 %v844
        %v1070 = vunpack.c.l.b16 %v845
        %v1071 = vunpack.c.l.b16 %v846
        %v1072 = vpack.c.b16 %v1041, %v1040
        %v1073 = vpack.c.b16 %v1043, %v1042
        %v1074 = vpack.c.b16 %v1045, %v1044
        %v1075 = vpack.c.b16 %v1047, %v1046
        %v1076 = vpack.c.b16 %v1049, %v1048
        %v1077 = vpack.c.b16 %v1051, %v1050
        %v1078 = vpack.c.b16 %v1053, %v1052
        %v1079 = vpack.c.b16 %v1055, %v1054
        %v1080 = vpack.c.b16 %v1057, %v1056
        %v1081 = vpack.c.b16 %v1059, %v1058
        %v1082 = vpack.c.b16 %v1061, %v1060
        %v1083 = vpack.c.b16 %v1063, %v1062
        %v1084 = vpack.c.b16 %v1065, %v1064
        %v1085 = vpack.c.b16 %v1067, %v1066
        %v1086 = vpack.c.b16 %v1069, %v1068
        %v1087 = vpack.c.b16 %v1071, %v1070
        %v1104 = vunpack.c.l.b16 %v847
        %v1105 = vunpack.c.l.b16 %v848
        %v1106 = vunpack.c.l.b16 %v849
        %v1107 = vunpack.c.l.b16 %v850
        %v1108 = vunpack.c.l.b16 %v851
        %v1109 = vunpack.c.l.b16 %v852
        %v1110 = vunpack.c.l.b16 %v853
        %v1111 = vunpack.c.l.b16 %v854
        %v1112 = vunpack.c.l.b16 %v855
        %v1113 = vunpack.c.l.b16 %v856
        %v1114 = vunpack.c.l.b16 %v857
        %v1115 = vunpack.c.l.b16 %v858
        %v1116 = vunpack.c.l.b16 %v859
        %v1117 = vunpack.c.l.b16 %v860
        %v1118 = vunpack.c.l.b16 %v861
        %v1119 = vunpack.c.l.b16 %v862
        %v1120 = vpack.c.b16 %v1104, %v1104
        %v1121 = vpack.c.b16 %v1105, %v1105
        %v1122 = vpack.c.b16 %v1106, %v1106
        %v1123 = vpack.c.b16 %v1107, %v1107
        %v1124 = vpack.c.b16 %v1108, %v1108
        %v1125 = vpack.c.b16 %v1109, %v1109
        %v1126 = vpack.c.b16 %v1110, %v1110
        %v1127 = vpack.c.b16 %v1111, %v1111
        %v1128 = vpack.c.b16 %v1112, %v1112
        %v1129 = vpack.c.b16 %v1113, %v1113
        %v1130 = vpack.c.b16 %v1114, %v1114
        %v1131 = vpack.c.b16 %v1115, %v1115
        %v1132 = vpack.c.b16 %v1116, %v1116
        %v1133 = vpack.c.b16 %v1117, %v1117
        %v1134 = vpack.c.b16 %v1118, %v1118
        %v1135 = vpack.c.b16 %v1119, %v1119
        %vm1136 = vsmask.f32 7424
        %v1138 = vshrl.u32 %v1072, 16
        %v1140 = vshll.u32 %v1072, 16
        %v1142 = vrot.slane %v1140, 1
        %v1143 = vor.u32 %v1138, %v1142
        %v1145 = vshll.u32 %v1120, 16
        %v1147 = vrot.slane %v1145, 1
        %v1148 = vsel %vm1136, %v1143, %v1147
        %v1150 = vshrl.u32 %v1073, 16
        %v1152 = vshll.u32 %v1073, 16
        %v1154 = vrot.slane %v1152, 1
        %v1155 = vor.u32 %v1150, %v1154
        %v1157 = vshll.u32 %v1121, 16
        %v1159 = vrot.slane %v1157, 1
        %v1160 = vsel %vm1136, %v1155, %v1159
        %v1162 = vshrl.u32 %v1074, 16
        %v1164 = vshll.u32 %v1074, 16
        %v1166 = vrot.slane %v1164, 1
        %v1167 = vor.u32 %v1162, %v1166
        %v1169 = vshll.u32 %v1122, 16
        %v1171 = vrot.slane %v1169, 1
        %v1172 = vsel %vm1136, %v1167, %v1171
        %v1174 = vshrl.u32 %v1075, 16
        %v1176 = vshll.u32 %v1075, 16
        %v1178 = vrot.slane %v1176, 1
        %v1179 = vor.u32 %v1174, %v1178
        %v1181 = vshll.u32 %v1123, 16
        %v1183 = vrot.slane %v1181, 1
        %v1184 = vsel %vm1136, %v1179, %v1183
        %v1186 = vshrl.u32 %v1076, 16
        %v1188 = vshll.u32 %v1076, 16
        %v1190 = vrot.slane %v1188, 1
        %v1191 = vor.u32 %v1186, %v1190
        %v1193 = vshll.u32 %v1124, 16
        %v1195 = vrot.slane %v1193, 1
        %v1196 = vsel %vm1136, %v1191, %v1195
        %v1198 = vshrl.u32 %v1077, 16
        %v1200 = vshll.u32 %v1077, 16
        %v1202 = vrot.slane %v1200, 1
        %v1203 = vor.u32 %v1198, %v1202
        %v1205 = vshll.u32 %v1125, 16
        %v1207 = vrot.slane %v1205, 1
        %v1208 = vsel %vm1136, %v1203, %v1207
        %v1210 = vshrl.u32 %v1078, 16
        %v1212 = vshll.u32 %v1078, 16
        %v1214 = vrot.slane %v1212, 1
        %v1215 = vor.u32 %v1210, %v1214
        %v1217 = vshll.u32 %v1126, 16
        %v1219 = vrot.slane %v1217, 1
        %v1220 = vsel %vm1136, %v1215, %v1219
        %v1222 = vshrl.u32 %v1079, 16
        %v1224 = vshll.u32 %v1079, 16
        %v1226 = vrot.slane %v1224, 1
        %v1227 = vor.u32 %v1222, %v1226
        %v1229 = vshll.u32 %v1127, 16
        %v1231 = vrot.slane %v1229, 1
        %v1232 = vsel %vm1136, %v1227, %v1231
        %v1234 = vshrl.u32 %v1080, 16
        %v1236 = vshll.u32 %v1080, 16
        %v1238 = vrot.slane %v1236, 1
        %v1239 = vor.u32 %v1234, %v1238
        %v1241 = vshll.u32 %v1128, 16
        %v1243 = vrot.slane %v1241, 1
        %v1244 = vsel %vm1136, %v1239, %v1243
        %v1246 = vshrl.u32 %v1081, 16
        %v1248 = vshll.u32 %v1081, 16
        %v1250 = vrot.slane %v1248, 1
        %v1251 = vor.u32 %v1246, %v1250
        %v1253 = vshll.u32 %v1129, 16
        %v1255 = vrot.slane %v1253, 1
        %v1256 = vsel %vm1136, %v1251, %v1255
        %v1258 = vshrl.u32 %v1082, 16
        %v1260 = vshll.u32 %v1082, 16
        %v1262 = vrot.slane %v1260, 1
        %v1263 = vor.u32 %v1258, %v1262
        %v1265 = vshll.u32 %v1130, 16
        %v1267 = vrot.slane %v1265, 1
        %v1268 = vsel %vm1136, %v1263, %v1267
        %v1270 = vshrl.u32 %v1083, 16
        %v1272 = vshll.u32 %v1083, 16
        %v1274 = vrot.slane %v1272, 1
        %v1275 = vor.u32 %v1270, %v1274
        %v1277 = vshll.u32 %v1131, 16
        %v1279 = vrot.slane %v1277, 1
        %v1280 = vsel %vm1136, %v1275, %v1279
        %v1282 = vshrl.u32 %v1084, 16
        %v1284 = vshll.u32 %v1084, 16
        %v1286 = vrot.slane %v1284, 1
        %v1287 = vor.u32 %v1282, %v1286
        %v1289 = vshll.u32 %v1132, 16
        %v1291 = vrot.slane %v1289, 1
        %v1292 = vsel %vm1136, %v1287, %v1291
        %v1294 = vshrl.u32 %v1085, 16
        %v1296 = vshll.u32 %v1085, 16
        %v1298 = vrot.slane %v1296, 1
        %v1299 = vor.u32 %v1294, %v1298
        %v1301 = vshll.u32 %v1133, 16
        %v1303 = vrot.slane %v1301, 1
        %v1304 = vsel %vm1136, %v1299, %v1303
        %v1306 = vshrl.u32 %v1086, 16
        %v1308 = vshll.u32 %v1086, 16
        %v1310 = vrot.slane %v1308, 1
        %v1311 = vor.u32 %v1306, %v1310
        %v1313 = vshll.u32 %v1134, 16
        %v1315 = vrot.slane %v1313, 1
        %v1316 = vsel %vm1136, %v1311, %v1315
        %v1318 = vshrl.u32 %v1087, 16
        %v1320 = vshll.u32 %v1087, 16
        %v1322 = vrot.slane %v1320, 1
        %v1323 = vor.u32 %v1318, %v1322
        %v1325 = vshll.u32 %v1135, 16
        %v1327 = vrot.slane %v1325, 1
        %v1328 = vsel %vm1136, %v1323, %v1327
        %1329 = vrot.lane.b32.xlu0 %v1148, 3
        %v1330 = vpop.permute.xlu0 %1329
        %1331 = vrot.lane.b32.xlu0 %v1160, 3
        %v1332 = vpop.permute.xlu0 %1331
        %1333 = vrot.lane.b32.xlu0 %v1172, 3
        %v1334 = vpop.permute.xlu0 %1333
        %1335 = vrot.lane.b32.xlu0 %v1184, 3
        %v1336 = vpop.permute.xlu0 %1335
        %1337 = vrot.lane.b32.xlu0 %v1196, 3
        %v1338 = vpop.permute.xlu0 %1337
        %1339 = vrot.lane.b32.xlu0 %v1208, 3
        %v1340 = vpop.permute.xlu0 %1339
        %1341 = vrot.lane.b32.xlu0 %v1220, 3
        %v1342 = vpop.permute.xlu0 %1341
        %1343 = vrot.lane.b32.xlu0 %v1232, 3
        %v1344 = vpop.permute.xlu0 %1343
        %1345 = vrot.lane.b32.xlu0 %v1244, 3
        %v1346 = vpop.permute.xlu0 %1345
        %1347 = vrot.lane.b32.xlu0 %v1256, 3
        %v1348 = vpop.permute.xlu0 %1347
        %1349 = vrot.lane.b32.xlu0 %v1268, 3
        %v1350 = vpop.permute.xlu0 %1349
        %1351 = vrot.lane.b32.xlu0 %v1280, 3
        %v1352 = vpop.permute.xlu0 %1351
        %1353 = vrot.lane.b32.xlu0 %v1292, 3
        %v1354 = vpop.permute.xlu0 %1353
        %1355 = vrot.lane.b32.xlu0 %v1304, 3
        %v1356 = vpop.permute.xlu0 %1355
        %1357 = vrot.lane.b32.xlu0 %v1316, 3
        %v1358 = vpop.permute.xlu0 %1357
        %1359 = vrot.lane.b32.xlu0 %v1328, 3
        %v1360 = vpop.permute.xlu0 %1359
        %v1377 = vunpack.c.l.b16 %v863
        %v1378 = vunpack.c.l.b16 %v864
        %v1379 = vunpack.c.l.b16 %v865
        %v1380 = vunpack.c.l.b16 %v866
        %v1381 = vunpack.c.l.b16 %v867
        %v1382 = vunpack.c.l.b16 %v868
        %v1383 = vunpack.c.l.b16 %v869
        %v1384 = vunpack.c.l.b16 %v870
        %v1385 = vunpack.c.l.b16 %v871
        %v1386 = vunpack.c.l.b16 %v872
        %v1387 = vunpack.c.l.b16 %v873
        %v1388 = vunpack.c.l.b16 %v874
        %v1389 = vunpack.c.l.b16 %v875
        %v1390 = vunpack.c.l.b16 %v876
        %v1391 = vunpack.c.l.b16 %v877
        %v1392 = vunpack.c.l.b16 %v878
        %v1393 = vpack.c.b16 %v1041, %v1377
        %v1394 = vpack.c.b16 %v1043, %v1378
        %v1395 = vpack.c.b16 %v1045, %v1379
        %v1396 = vpack.c.b16 %v1047, %v1380
        %v1397 = vpack.c.b16 %v1049, %v1381
        %v1398 = vpack.c.b16 %v1051, %v1382
        %v1399 = vpack.c.b16 %v1053, %v1383
        %v1400 = vpack.c.b16 %v1055, %v1384
        %v1401 = vpack.c.b16 %v1057, %v1385
        %v1402 = vpack.c.b16 %v1059, %v1386
        %v1403 = vpack.c.b16 %v1061, %v1387
        %v1404 = vpack.c.b16 %v1063, %v1388
        %v1405 = vpack.c.b16 %v1065, %v1389
        %v1406 = vpack.c.b16 %v1067, %v1390
        %v1407 = vpack.c.b16 %v1069, %v1391
        %v1408 = vpack.c.b16 %v1071, %v1392
        %vm1409 = vcmask 1046528
        %v1410 = vrot.slane %v1393, 1
        %v1411 = vrot.slane %v1120, 1
        %v1412 = vsel %vm1409, %v1410, %v1411
        %v1413 = vrot.slane %v1394, 1
        %v1414 = vrot.slane %v1121, 1
        %v1415 = vsel %vm1409, %v1413, %v1414
        %v1416 = vrot.slane %v1395, 1
        %v1417 = vrot.slane %v1122, 1
        %v1418 = vsel %vm1409, %v1416, %v1417
        %v1419 = vrot.slane %v1396, 1
        %v1420 = vrot.slane %v1123, 1
        %v1421 = vsel %vm1409, %v1419, %v1420
        %v1422 = vrot.slane %v1397, 1
        %v1423 = vrot.slane %v1124, 1
        %v1424 = vsel %vm1409, %v1422, %v1423
        %v1425 = vrot.slane %v1398, 1
        %v1426 = vrot.slane %v1125, 1
        %v1427 = vsel %vm1409, %v1425, %v1426
        %v1428 = vrot.slane %v1399, 1
        %v1429 = vrot.slane %v1126, 1
        %v1430 = vsel %vm1409, %v1428, %v1429
        %v1431 = vrot.slane %v1400, 1
        %v1432 = vrot.slane %v1127, 1
        %v1433 = vsel %vm1409, %v1431, %v1432
        %v1434 = vrot.slane %v1401, 1
        %v1435 = vrot.slane %v1128, 1
        %v1436 = vsel %vm1409, %v1434, %v1435
        %v1437 = vrot.slane %v1402, 1
        %v1438 = vrot.slane %v1129, 1
        %v1439 = vsel %vm1409, %v1437, %v1438
        %v1440 = vrot.slane %v1403, 1
        %v1441 = vrot.slane %v1130, 1
        %v1442 = vsel %vm1409, %v1440, %v1441
        %v1443 = vrot.slane %v1404, 1
        %v1444 = vrot.slane %v1131, 1
        %v1445 = vsel %vm1409, %v1443, %v1444
        %v1446 = vrot.slane %v1405, 1
        %v1447 = vrot.slane %v1132, 1
        %v1448 = vsel %vm1409, %v1446, %v1447
        %v1449 = vrot.slane %v1406, 1
        %v1450 = vrot.slane %v1133, 1
        %v1451 = vsel %vm1409, %v1449, %v1450
        %v1452 = vrot.slane %v1407, 1
        %v1453 = vrot.slane %v1134, 1
        %v1454 = vsel %vm1409, %v1452, %v1453
        %v1455 = vrot.slane %v1408, 1
        %v1456 = vrot.slane %v1135, 1
        %v1457 = vsel %vm1409, %v1455, %v1456
        %1458 = vrot.lane.b32.xlu0 %v1412, 6
        %v1459 = vpop.permute.xlu0 %1458
        %1460 = vrot.lane.b32.xlu0 %v1415, 6
        %v1461 = vpop.permute.xlu0 %1460
        %1462 = vrot.lane.b32.xlu0 %v1418, 6
        %v1463 = vpop.permute.xlu0 %1462
        %1464 = vrot.lane.b32.xlu0 %v1421, 6
        %v1465 = vpop.permute.xlu0 %1464
        %1466 = vrot.lane.b32.xlu0 %v1424, 6
        %v1467 = vpop.permute.xlu0 %1466
        %1468 = vrot.lane.b32.xlu0 %v1427, 6
        %v1469 = vpop.permute.xlu0 %1468
        %1470 = vrot.lane.b32.xlu0 %v1430, 6
        %v1471 = vpop.permute.xlu0 %1470
        %1472 = vrot.lane.b32.xlu0 %v1433, 6
        %v1473 = vpop.permute.xlu0 %1472
        %1474 = vrot.lane.b32.xlu0 %v1436, 6
        %v1475 = vpop.permute.xlu0 %1474
        %1476 = vrot.lane.b32.xlu0 %v1439, 6
        %v1477 = vpop.permute.xlu0 %1476
        %1478 = vrot.lane.b32.xlu0 %v1442, 6
        %v1479 = vpop.permute.xlu0 %1478
        %1480 = vrot.lane.b32.xlu0 %v1445, 6
        %v1481 = vpop.permute.xlu0 %1480
        %1482 = vrot.lane.b32.xlu0 %v1448, 6
        %v1483 = vpop.permute.xlu0 %1482
        %1484 = vrot.lane.b32.xlu0 %v1451, 6
        %v1485 = vpop.permute.xlu0 %1484
        %1486 = vrot.lane.b32.xlu0 %v1454, 6
        %v1487 = vpop.permute.xlu0 %1486
        %1488 = vrot.lane.b32.xlu0 %v1457, 6
        %v1489 = vpop.permute.xlu0 %1488
        %v1522 = vunpack.c.l.b16 %v879
        %v1523 = vunpack.c.l.b16 %v880
        %v1524 = vunpack.c.l.b16 %v881
        %v1525 = vunpack.c.l.b16 %v882
        %v1526 = vunpack.c.l.b16 %v883
        %v1527 = vunpack.c.l.b16 %v884
        %v1528 = vunpack.c.l.b16 %v885
        %v1529 = vunpack.c.l.b16 %v886
        %v1530 = vunpack.c.l.b16 %v887
        %v1531 = vunpack.c.l.b16 %v888
        %v1532 = vunpack.c.l.b16 %v889
        %v1533 = vunpack.c.l.b16 %v890
        %v1534 = vunpack.c.l.b16 %v891
        %v1535 = vunpack.c.l.b16 %v892
        %v1536 = vunpack.c.l.b16 %v893
        %v1537 = vunpack.c.l.b16 %v894
        %v1538 = vunpack.c.l.b16 %v895
        %v1539 = vunpack.c.l.b16 %v896
        %v1540 = vunpack.c.l.b16 %v897
        %v1541 = vunpack.c.l.b16 %v898
        %v1542 = vunpack.c.l.b16 %v899
        %v1543 = vunpack.c.l.b16 %v900
        %v1544 = vunpack.c.l.b16 %v901
        %v1545 = vunpack.c.l.b16 %v902
        %v1546 = vunpack.c.l.b16 %v903
        %v1547 = vunpack.c.l.b16 %v904
        %v1548 = vunpack.c.l.b16 %v905
        %v1549 = vunpack.c.l.b16 %v906
        %v1550 = vunpack.c.l.b16 %v907
        %v1551 = vunpack.c.l.b16 %v908
        %v1552 = vunpack.c.l.b16 %v909
        %v1553 = vunpack.c.l.b16 %v910
        %v1554 = vpack.c.b16 %v1523, %v1522
        %v1555 = vpack.c.b16 %v1525, %v1524
        %v1556 = vpack.c.b16 %v1527, %v1526
        %v1557 = vpack.c.b16 %v1529, %v1528
        %v1558 = vpack.c.b16 %v1531, %v1530
        %v1559 = vpack.c.b16 %v1533, %v1532
        %v1560 = vpack.c.b16 %v1535, %v1534
        %v1561 = vpack.c.b16 %v1537, %v1536
        %v1562 = vpack.c.b16 %v1539, %v1538
        %v1563 = vpack.c.b16 %v1541, %v1540
        %v1564 = vpack.c.b16 %v1543, %v1542
        %v1565 = vpack.c.b16 %v1545, %v1544
        %v1566 = vpack.c.b16 %v1547, %v1546
        %v1567 = vpack.c.b16 %v1549, %v1548
        %v1568 = vpack.c.b16 %v1551, %v1550
        %v1569 = vpack.c.b16 %v1553, %v1552
        %1570 = vrot.lane.b32.xlu0 %v1554, 9
        %v1571 = vpop.permute.xlu0 %1570
        %1572 = vrot.lane.b32.xlu0 %v1555, 9
        %v1573 = vpop.permute.xlu0 %1572
        %1574 = vrot.lane.b32.xlu0 %v1556, 9
        %v1575 = vpop.permute.xlu0 %1574
        %1576 = vrot.lane.b32.xlu0 %v1557, 9
        %v1577 = vpop.permute.xlu0 %1576
        %1578 = vrot.lane.b32.xlu0 %v1558, 9
        %v1579 = vpop.permute.xlu0 %1578
        %1580 = vrot.lane.b32.xlu0 %v1559, 9
        %v1581 = vpop.permute.xlu0 %1580
        %1582 = vrot.lane.b32.xlu0 %v1560, 9
        %v1583 = vpop.permute.xlu0 %1582
        %1584 = vrot.lane.b32.xlu0 %v1561, 9
        %v1585 = vpop.permute.xlu0 %1584
        %1586 = vrot.lane.b32.xlu0 %v1562, 9
        %v1587 = vpop.permute.xlu0 %1586
        %1588 = vrot.lane.b32.xlu0 %v1563, 9
        %v1589 = vpop.permute.xlu0 %1588
        %1590 = vrot.lane.b32.xlu0 %v1564, 9
        %v1591 = vpop.permute.xlu0 %1590
        %1592 = vrot.lane.b32.xlu0 %v1565, 9
        %v1593 = vpop.permute.xlu0 %1592
        %1594 = vrot.lane.b32.xlu0 %v1566, 9
        %v1595 = vpop.permute.xlu0 %1594
        %1596 = vrot.lane.b32.xlu0 %v1567, 9
        %v1597 = vpop.permute.xlu0 %1596
        %1598 = vrot.lane.b32.xlu0 %v1568, 9
        %v1599 = vpop.permute.xlu0 %1598
        %1600 = vrot.lane.b32.xlu0 %v1569, 9
        %v1601 = vpop.permute.xlu0 %1600
        %v1618 = vunpack.c.l.b16 %v911
        %v1619 = vunpack.c.l.b16 %v912
        %v1620 = vunpack.c.l.b16 %v913
        %v1621 = vunpack.c.l.b16 %v914
        %v1622 = vunpack.c.l.b16 %v915
        %v1623 = vunpack.c.l.b16 %v916
        %v1624 = vunpack.c.l.b16 %v917
        %v1625 = vunpack.c.l.b16 %v918
        %v1626 = vunpack.c.l.b16 %v919
        %v1627 = vunpack.c.l.b16 %v920
        %v1628 = vunpack.c.l.b16 %v921
        %v1629 = vunpack.c.l.b16 %v922
        %v1630 = vunpack.c.l.b16 %v923
        %v1631 = vunpack.c.l.b16 %v924
        %v1632 = vunpack.c.l.b16 %v925
        %v1633 = vunpack.c.l.b16 %v926
        %v1634 = vpack.c.b16 %v1618, %v1618
        %v1635 = vpack.c.b16 %v1619, %v1619
        %v1636 = vpack.c.b16 %v1620, %v1620
        %v1637 = vpack.c.b16 %v1621, %v1621
        %v1638 = vpack.c.b16 %v1622, %v1622
        %v1639 = vpack.c.b16 %v1623, %v1623
        %v1640 = vpack.c.b16 %v1624, %v1624
        %v1641 = vpack.c.b16 %v1625, %v1625
        %v1642 = vpack.c.b16 %v1626, %v1626
        %v1643 = vpack.c.b16 %v1627, %v1627
        %v1644 = vpack.c.b16 %v1628, %v1628
        %v1645 = vpack.c.b16 %v1629, %v1629
        %v1646 = vpack.c.b16 %v1630, %v1630
        %v1647 = vpack.c.b16 %v1631, %v1631
        %v1648 = vpack.c.b16 %v1632, %v1632
        %v1649 = vpack.c.b16 %v1633, %v1633
        %v1651 = vshrl.u32 %v1554, 16
        %v1653 = vshll.u32 %v1554, 16
        %v1655 = vrot.slane %v1653, 1
        %v1656 = vor.u32 %v1651, %v1655
        %v1658 = vshll.u32 %v1634, 16
        %v1660 = vrot.slane %v1658, 1
        %v1661 = vsel %vm1136, %v1656, %v1660
        %v1663 = vshrl.u32 %v1555, 16
        %v1665 = vshll.u32 %v1555, 16
        %v1667 = vrot.slane %v1665, 1
        %v1668 = vor.u32 %v1663, %v1667
        %v1670 = vshll.u32 %v1635, 16
        %v1672 = vrot.slane %v1670, 1
        %v1673 = vsel %vm1136, %v1668, %v1672
        %v1675 = vshrl.u32 %v1556, 16
        %v1677 = vshll.u32 %v1556, 16
        %v1679 = vrot.slane %v1677, 1
        %v1680 = vor.u32 %v1675, %v1679
        %v1682 = vshll.u32 %v1636, 16
        %v1684 = vrot.slane %v1682, 1
        %v1685 = vsel %vm1136, %v1680, %v1684
        %v1687 = vshrl.u32 %v1557, 16
        %v1689 = vshll.u32 %v1557, 16
        %v1691 = vrot.slane %v1689, 1
        %v1692 = vor.u32 %v1687, %v1691
        %v1694 = vshll.u32 %v1637, 16
        %v1696 = vrot.slane %v1694, 1
        %v1697 = vsel %vm1136, %v1692, %v1696
        %v1699 = vshrl.u32 %v1558, 16
        %v1701 = vshll.u32 %v1558, 16
        %v1703 = vrot.slane %v1701, 1
        %v1704 = vor.u32 %v1699, %v1703
        %v1706 = vshll.u32 %v1638, 16
        %v1708 = vrot.slane %v1706, 1
        %v1709 = vsel %vm1136, %v1704, %v1708
        %v1711 = vshrl.u32 %v1559, 16
        %v1713 = vshll.u32 %v1559, 16
        %v1715 = vrot.slane %v1713, 1
        %v1716 = vor.u32 %v1711, %v1715
        %v1718 = vshll.u32 %v1639, 16
        %v1720 = vrot.slane %v1718, 1
        %v1721 = vsel %vm1136, %v1716, %v1720
        %v1723 = vshrl.u32 %v1560, 16
        %v1725 = vshll.u32 %v1560, 16
        %v1727 = vrot.slane %v1725, 1
        %v1728 = vor.u32 %v1723, %v1727
        %v1730 = vshll.u32 %v1640, 16
        %v1732 = vrot.slane %v1730, 1
        %v1733 = vsel %vm1136, %v1728, %v1732
        %v1735 = vshrl.u32 %v1561, 16
        %v1737 = vshll.u32 %v1561, 16
        %v1739 = vrot.slane %v1737, 1
        %v1740 = vor.u32 %v1735, %v1739
        %v1742 = vshll.u32 %v1641, 16
        %v1744 = vrot.slane %v1742, 1
        %v1745 = vsel %vm1136, %v1740, %v1744
        %v1747 = vshrl.u32 %v1562, 16
        %v1749 = vshll.u32 %v1562, 16
        %v1751 = vrot.slane %v1749, 1
        %v1752 = vor.u32 %v1747, %v1751
        %v1754 = vshll.u32 %v1642, 16
        %v1756 = vrot.slane %v1754, 1
        %v1757 = vsel %vm1136, %v1752, %v1756
        %v1759 = vshrl.u32 %v1563, 16
        %v1761 = vshll.u32 %v1563, 16
        %v1763 = vrot.slane %v1761, 1
        %v1764 = vor.u32 %v1759, %v1763
        %v1766 = vshll.u32 %v1643, 16
        %v1768 = vrot.slane %v1766, 1
        %v1769 = vsel %vm1136, %v1764, %v1768
        %v1771 = vshrl.u32 %v1564, 16
        %v1773 = vshll.u32 %v1564, 16
        %v1775 = vrot.slane %v1773, 1
        %v1776 = vor.u32 %v1771, %v1775
        %v1778 = vshll.u32 %v1644, 16
        %v1780 = vrot.slane %v1778, 1
        %v1781 = vsel %vm1136, %v1776, %v1780
        %v1783 = vshrl.u32 %v1565, 16
        %v1785 = vshll.u32 %v1565, 16
        %v1787 = vrot.slane %v1785, 1
        %v1788 = vor.u32 %v1783, %v1787
        %v1790 = vshll.u32 %v1645, 16
        %v1792 = vrot.slane %v1790, 1
        %v1793 = vsel %vm1136, %v1788, %v1792
        %v1795 = vshrl.u32 %v1566, 16
        %v1797 = vshll.u32 %v1566, 16
        %v1799 = vrot.slane %v1797, 1
        %v1800 = vor.u32 %v1795, %v1799
        %v1802 = vshll.u32 %v1646, 16
        %v1804 = vrot.slane %v1802, 1
        %v1805 = vsel %vm1136, %v1800, %v1804
        %v1807 = vshrl.u32 %v1567, 16
        %v1809 = vshll.u32 %v1567, 16
        %v1811 = vrot.slane %v1809, 1
        %v1812 = vor.u32 %v1807, %v1811
        %v1814 = vshll.u32 %v1647, 16
        %v1816 = vrot.slane %v1814, 1
        %v1817 = vsel %vm1136, %v1812, %v1816
        %v1819 = vshrl.u32 %v1568, 16
        %v1821 = vshll.u32 %v1568, 16
        %v1823 = vrot.slane %v1821, 1
        %v1824 = vor.u32 %v1819, %v1823
        %v1826 = vshll.u32 %v1648, 16
        %v1828 = vrot.slane %v1826, 1
        %v1829 = vsel %vm1136, %v1824, %v1828
        %v1831 = vshrl.u32 %v1569, 16
        %v1833 = vshll.u32 %v1569, 16
        %v1835 = vrot.slane %v1833, 1
        %v1836 = vor.u32 %v1831, %v1835
        %v1838 = vshll.u32 %v1649, 16
        %v1840 = vrot.slane %v1838, 1
        %v1841 = vsel %vm1136, %v1836, %v1840
        %1842 = vrot.lane.b32.xlu0 %v1661, 12
        %v1843 = vpop.permute.xlu0 %1842
        %1844 = vrot.lane.b32.xlu0 %v1673, 12
        %v1845 = vpop.permute.xlu0 %1844
        %1846 = vrot.lane.b32.xlu0 %v1685, 12
        %v1847 = vpop.permute.xlu0 %1846
        %1848 = vrot.lane.b32.xlu0 %v1697, 12
        %v1849 = vpop.permute.xlu0 %1848
        %1850 = vrot.lane.b32.xlu0 %v1709, 12
        %v1851 = vpop.permute.xlu0 %1850
        %1852 = vrot.lane.b32.xlu0 %v1721, 12
        %v1853 = vpop.permute.xlu0 %1852
        %1854 = vrot.lane.b32.xlu0 %v1733, 12
        %v1855 = vpop.permute.xlu0 %1854
        %1856 = vrot.lane.b32.xlu0 %v1745, 12
        %v1857 = vpop.permute.xlu0 %1856
        %1858 = vrot.lane.b32.xlu0 %v1757, 12
        %v1859 = vpop.permute.xlu0 %1858
        %1860 = vrot.lane.b32.xlu0 %v1769, 12
        %v1861 = vpop.permute.xlu0 %1860
        %1862 = vrot.lane.b32.xlu0 %v1781, 12
        %v1863 = vpop.permute.xlu0 %1862
        %1864 = vrot.lane.b32.xlu0 %v1793, 12
        %v1865 = vpop.permute.xlu0 %1864
        %1866 = vrot.lane.b32.xlu0 %v1805, 12
        %v1867 = vpop.permute.xlu0 %1866
        %1868 = vrot.lane.b32.xlu0 %v1817, 12
        %v1869 = vpop.permute.xlu0 %1868
        %1870 = vrot.lane.b32.xlu0 %v1829, 12
        %v1871 = vpop.permute.xlu0 %1870
        %1872 = vrot.lane.b32.xlu0 %v1841, 12
        %v1873 = vpop.permute.xlu0 %1872
        %v1890 = vunpack.c.l.b16 %v927
        %v1891 = vunpack.c.l.b16 %v928
        %v1892 = vunpack.c.l.b16 %v929
        %v1893 = vunpack.c.l.b16 %v930
        %v1894 = vunpack.c.l.b16 %v931
        %v1895 = vunpack.c.l.b16 %v932
        %v1896 = vunpack.c.l.b16 %v933
        %v1897 = vunpack.c.l.b16 %v934
        %v1898 = vunpack.c.l.b16 %v935
        %v1899 = vunpack.c.l.b16 %v936
        %v1900 = vunpack.c.l.b16 %v937
        %v1901 = vunpack.c.l.b16 %v938
        %v1902 = vunpack.c.l.b16 %v939
        %v1903 = vunpack.c.l.b16 %v940
        %v1904 = vunpack.c.l.b16 %v941
        %v1905 = vunpack.c.l.b16 %v942
        %v1906 = vpack.c.b16 %v1523, %v1890
        %v1907 = vpack.c.b16 %v1525, %v1891
        %v1908 = vpack.c.b16 %v1527, %v1892
        %v1909 = vpack.c.b16 %v1529, %v1893
        %v1910 = vpack.c.b16 %v1531, %v1894
        %v1911 = vpack.c.b16 %v1533, %v1895
        %v1912 = vpack.c.b16 %v1535, %v1896
        %v1913 = vpack.c.b16 %v1537, %v1897
        %v1914 = vpack.c.b16 %v1539, %v1898
        %v1915 = vpack.c.b16 %v1541, %v1899
        %v1916 = vpack.c.b16 %v1543, %v1900
        %v1917 = vpack.c.b16 %v1545, %v1901
        %v1918 = vpack.c.b16 %v1547, %v1902
        %v1919 = vpack.c.b16 %v1549, %v1903
        %v1920 = vpack.c.b16 %v1551, %v1904
        %v1921 = vpack.c.b16 %v1553, %v1905
        %v1922 = vrot.slane %v1906, 1
        %v1923 = vrot.slane %v1634, 1
        %v1924 = vsel %vm1409, %v1922, %v1923
        %v1925 = vrot.slane %v1907, 1
        %v1926 = vrot.slane %v1635, 1
        %v1927 = vsel %vm1409, %v1925, %v1926
        %v1928 = vrot.slane %v1908, 1
        %v1929 = vrot.slane %v1636, 1
        %v1930 = vsel %vm1409, %v1928, %v1929
        %v1931 = vrot.slane %v1909, 1
        %v1932 = vrot.slane %v1637, 1
        %v1933 = vsel %vm1409, %v1931, %v1932
        %v1934 = vrot.slane %v1910, 1
        %v1935 = vrot.slane %v1638, 1
        %v1936 = vsel %vm1409, %v1934, %v1935
        %v1937 = vrot.slane %v1911, 1
        %v1938 = vrot.slane %v1639, 1
        %v1939 = vsel %vm1409, %v1937, %v1938
        %v1940 = vrot.slane %v1912, 1
        %v1941 = vrot.slane %v1640, 1
        %v1942 = vsel %vm1409, %v1940, %v1941
        %v1943 = vrot.slane %v1913, 1
        %v1944 = vrot.slane %v1641, 1
        %v1945 = vsel %vm1409, %v1943, %v1944
        %v1946 = vrot.slane %v1914, 1
        %v1947 = vrot.slane %v1642, 1
        %v1948 = vsel %vm1409, %v1946, %v1947
        %v1949 = vrot.slane %v1915, 1
        %v1950 = vrot.slane %v1643, 1
        %v1951 = vsel %vm1409, %v1949, %v1950
        %v1952 = vrot.slane %v1916, 1
        %v1953 = vrot.slane %v1644, 1
        %v1954 = vsel %vm1409, %v1952, %v1953
        %v1955 = vrot.slane %v1917, 1
        %v1956 = vrot.slane %v1645, 1
        %v1957 = vsel %vm1409, %v1955, %v1956
        %v1958 = vrot.slane %v1918, 1
        %v1959 = vrot.slane %v1646, 1
        %v1960 = vsel %vm1409, %v1958, %v1959
        %v1961 = vrot.slane %v1919, 1
        %v1962 = vrot.slane %v1647, 1
        %v1963 = vsel %vm1409, %v1961, %v1962
        %v1964 = vrot.slane %v1920, 1
        %v1965 = vrot.slane %v1648, 1
        %v1966 = vsel %vm1409, %v1964, %v1965
        %v1967 = vrot.slane %v1921, 1
        %v1968 = vrot.slane %v1649, 1
        %v1969 = vsel %vm1409, %v1967, %v1968
        %1970 = vrot.lane.b32.xlu0 %v1924, 15
        %v1971 = vpop.permute.xlu0 %1970
        %1972 = vrot.lane.b32.xlu0 %v1927, 15
        %v1973 = vpop.permute.xlu0 %1972
        %1974 = vrot.lane.b32.xlu0 %v1930, 15
        %v1975 = vpop.permute.xlu0 %1974
        %1976 = vrot.lane.b32.xlu0 %v1933, 15
        %v1977 = vpop.permute.xlu0 %1976
        %1978 = vrot.lane.b32.xlu0 %v1936, 15
        %v1979 = vpop.permute.xlu0 %1978
        %1980 = vrot.lane.b32.xlu0 %v1939, 15
        %v1981 = vpop.permute.xlu0 %1980
        %1982 = vrot.lane.b32.xlu0 %v1942, 15
        %v1983 = vpop.permute.xlu0 %1982
        %1984 = vrot.lane.b32.xlu0 %v1945, 15
        %v1985 = vpop.permute.xlu0 %1984
        %1986 = vrot.lane.b32.xlu0 %v1948, 15
        %v1987 = vpop.permute.xlu0 %1986
        %1988 = vrot.lane.b32.xlu0 %v1951, 15
        %v1989 = vpop.permute.xlu0 %1988
        %1990 = vrot.lane.b32.xlu0 %v1954, 15
        %v1991 = vpop.permute.xlu0 %1990
        %1992 = vrot.lane.b32.xlu0 %v1957, 15
        %v1993 = vpop.permute.xlu0 %1992
        %1994 = vrot.lane.b32.xlu0 %v1960, 15
        %v1995 = vpop.permute.xlu0 %1994
        %1996 = vrot.lane.b32.xlu0 %v1963, 15
        %v1997 = vpop.permute.xlu0 %1996
        %1998 = vrot.lane.b32.xlu0 %v1966, 15
        %v1999 = vpop.permute.xlu0 %1998
        %2000 = vrot.lane.b32.xlu0 %v1969, 15
        %v2001 = vpop.permute.xlu0 %2000
        %v2034 = vunpack.c.l.b16 %v944
        %v2035 = vunpack.c.l.b16 %v945
        %v2036 = vunpack.c.l.b16 %v946
        %v2037 = vunpack.c.l.b16 %v947
        %v2038 = vunpack.c.l.b16 %v948
        %v2039 = vunpack.c.l.b16 %v949
        %v2040 = vunpack.c.l.b16 %v950
        %v2041 = vunpack.c.l.b16 %v951
        %v2042 = vunpack.c.l.b16 %v952
        %v2043 = vunpack.c.l.b16 %v953
        %v2044 = vunpack.c.l.b16 %v954
        %v2045 = vunpack.c.l.b16 %v955
        %v2046 = vunpack.c.l.b16 %v956
        %v2047 = vunpack.c.l.b16 %v957
        %v2048 = vunpack.c.l.b16 %v958
        %v2049 = vunpack.c.l.b16 %v959
        %v2050 = vunpack.c.l.b16 %v960
        %v2051 = vunpack.c.l.b16 %v961
        %v2052 = vunpack.c.l.b16 %v962
        %v2053 = vunpack.c.l.b16 %v963
        %v2054 = vunpack.c.l.b16 %v964
        %v2055 = vunpack.c.l.b16 %v965
        %v2056 = vunpack.c.l.b16 %v966
        %v2057 = vunpack.c.l.b16 %v967
        %v2058 = vunpack.c.l.b16 %v968
        %v2059 = vunpack.c.l.b16 %v969
        %v2060 = vunpack.c.l.b16 %v970
        %v2061 = vunpack.c.l.b16 %v971
        %v2062 = vunpack.c.l.b16 %v972
        %v2063 = vunpack.c.l.b16 %v973
        %v2064 = vunpack.c.l.b16 %v974
        %v2065 = vunpack.c.l.b16 %v975
        %v2066 = vpack.c.b16 %v2035, %v2034
        %v2067 = vpack.c.b16 %v2037, %v2036
        %v2068 = vpack.c.b16 %v2039, %v2038
        %v2069 = vpack.c.b16 %v2041, %v2040
        %v2070 = vpack.c.b16 %v2043, %v2042
        %v2071 = vpack.c.b16 %v2045, %v2044
        %v2072 = vpack.c.b16 %v2047, %v2046
        %v2073 = vpack.c.b16 %v2049, %v2048
        %v2074 = vpack.c.b16 %v2051, %v2050
        %v2075 = vpack.c.b16 %v2053, %v2052
        %v2076 = vpack.c.b16 %v2055, %v2054
        %v2077 = vpack.c.b16 %v2057, %v2056
        %v2078 = vpack.c.b16 %v2059, %v2058
        %v2079 = vpack.c.b16 %v2061, %v2060
        %v2080 = vpack.c.b16 %v2063, %v2062
        %v2081 = vpack.c.b16 %v2065, %v2064
        %2082 = vrot.lane.b32.xlu0 %v2066, 18
        %v2083 = vpop.permute.xlu0 %2082
        %2084 = vrot.lane.b32.xlu0 %v2067, 18
        %v2085 = vpop.permute.xlu0 %2084
        %2086 = vrot.lane.b32.xlu0 %v2068, 18
        %v2087 = vpop.permute.xlu0 %2086
        %2088 = vrot.lane.b32.xlu0 %v2069, 18
        %v2089 = vpop.permute.xlu0 %2088
        %2090 = vrot.lane.b32.xlu0 %v2070, 18
        %v2091 = vpop.permute.xlu0 %2090
        %2092 = vrot.lane.b32.xlu0 %v2071, 18
        %v2093 = vpop.permute.xlu0 %2092
        %2094 = vrot.lane.b32.xlu0 %v2072, 18
        %v2095 = vpop.permute.xlu0 %2094
        %2096 = vrot.lane.b32.xlu0 %v2073, 18
        %v2097 = vpop.permute.xlu0 %2096
        %2098 = vrot.lane.b32.xlu0 %v2074, 18
        %v2099 = vpop.permute.xlu0 %2098
        %2100 = vrot.lane.b32.xlu0 %v2075, 18
        %v2101 = vpop.permute.xlu0 %2100
        %2102 = vrot.lane.b32.xlu0 %v2076, 18
        %v2103 = vpop.permute.xlu0 %2102
        %2104 = vrot.lane.b32.xlu0 %v2077, 18
        %v2105 = vpop.permute.xlu0 %2104
        %2106 = vrot.lane.b32.xlu0 %v2078, 18
        %v2107 = vpop.permute.xlu0 %2106
        %2108 = vrot.lane.b32.xlu0 %v2079, 18
        %v2109 = vpop.permute.xlu0 %2108
        %2110 = vrot.lane.b32.xlu0 %v2080, 18
        %v2111 = vpop.permute.xlu0 %2110
        %2112 = vrot.lane.b32.xlu0 %v2081, 18
        %v2113 = vpop.permute.xlu0 %2112
        %v2130 = vunpack.c.l.b16 %v976
        %v2131 = vunpack.c.l.b16 %v977
        %v2132 = vunpack.c.l.b16 %v978
        %v2133 = vunpack.c.l.b16 %v979
        %v2134 = vunpack.c.l.b16 %v980
        %v2135 = vunpack.c.l.b16 %v981
        %v2136 = vunpack.c.l.b16 %v982
        %v2137 = vunpack.c.l.b16 %v983
        %v2138 = vunpack.c.l.b16 %v984
        %v2139 = vunpack.c.l.b16 %v985
        %v2140 = vunpack.c.l.b16 %v986
        %v2141 = vunpack.c.l.b16 %v987
        %v2142 = vunpack.c.l.b16 %v988
        %v2143 = vunpack.c.l.b16 %v989
        %v2144 = vunpack.c.l.b16 %v990
        %v2145 = vunpack.c.l.b16 %v991
        %v2146 = vpack.c.b16 %v2130, %v2130
        %v2147 = vpack.c.b16 %v2131, %v2131
        %v2148 = vpack.c.b16 %v2132, %v2132
        %v2149 = vpack.c.b16 %v2133, %v2133
        %v2150 = vpack.c.b16 %v2134, %v2134
        %v2151 = vpack.c.b16 %v2135, %v2135
        %v2152 = vpack.c.b16 %v2136, %v2136
        %v2153 = vpack.c.b16 %v2137, %v2137
        %v2154 = vpack.c.b16 %v2138, %v2138
        %v2155 = vpack.c.b16 %v2139, %v2139
        %v2156 = vpack.c.b16 %v2140, %v2140
        %v2157 = vpack.c.b16 %v2141, %v2141
        %v2158 = vpack.c.b16 %v2142, %v2142
        %v2159 = vpack.c.b16 %v2143, %v2143
        %v2160 = vpack.c.b16 %v2144, %v2144
        %v2161 = vpack.c.b16 %v2145, %v2145
        %v2163 = vshrl.u32 %v2066, 16
        %v2165 = vshll.u32 %v2066, 16
        %v2167 = vrot.slane %v2165, 1
        %v2168 = vor.u32 %v2163, %v2167
        %v2170 = vshll.u32 %v2146, 16
        %v2172 = vrot.slane %v2170, 1
        %v2173 = vsel %vm1136, %v2168, %v2172
        %v2175 = vshrl.u32 %v2067, 16
        %v2177 = vshll.u32 %v2067, 16
        %v2179 = vrot.slane %v2177, 1
        %v2180 = vor.u32 %v2175, %v2179
        %v2182 = vshll.u32 %v2147, 16
        %v2184 = vrot.slane %v2182, 1
        %v2185 = vsel %vm1136, %v2180, %v2184
        %v2187 = vshrl.u32 %v2068, 16
        %v2189 = vshll.u32 %v2068, 16
        %v2191 = vrot.slane %v2189, 1
        %v2192 = vor.u32 %v2187, %v2191
        %v2194 = vshll.u32 %v2148, 16
        %v2196 = vrot.slane %v2194, 1
        %v2197 = vsel %vm1136, %v2192, %v2196
        %v2199 = vshrl.u32 %v2069, 16
        %v2201 = vshll.u32 %v2069, 16
        %v2203 = vrot.slane %v2201, 1
        %v2204 = vor.u32 %v2199, %v2203
        %v2206 = vshll.u32 %v2149, 16
        %v2208 = vrot.slane %v2206, 1
        %v2209 = vsel %vm1136, %v2204, %v2208
        %v2211 = vshrl.u32 %v2070, 16
        %v2213 = vshll.u32 %v2070, 16
        %v2215 = vrot.slane %v2213, 1
        %v2216 = vor.u32 %v2211, %v2215
        %v2218 = vshll.u32 %v2150, 16
        %v2220 = vrot.slane %v2218, 1
        %v2221 = vsel %vm1136, %v2216, %v2220
        %v2223 = vshrl.u32 %v2071, 16
        %v2225 = vshll.u32 %v2071, 16
        %v2227 = vrot.slane %v2225, 1
        %v2228 = vor.u32 %v2223, %v2227
        %v2230 = vshll.u32 %v2151, 16
        %v2232 = vrot.slane %v2230, 1
        %v2233 = vsel %vm1136, %v2228, %v2232
        %v2235 = vshrl.u32 %v2072, 16
        %v2237 = vshll.u32 %v2072, 16
        %v2239 = vrot.slane %v2237, 1
        %v2240 = vor.u32 %v2235, %v2239
        %v2242 = vshll.u32 %v2152, 16
        %v2244 = vrot.slane %v2242, 1
        %v2245 = vsel %vm1136, %v2240, %v2244
        %v2247 = vshrl.u32 %v2073, 16
        %v2249 = vshll.u32 %v2073, 16
        %v2251 = vrot.slane %v2249, 1
        %v2252 = vor.u32 %v2247, %v2251
        %v2254 = vshll.u32 %v2153, 16
        %v2256 = vrot.slane %v2254, 1
        %v2257 = vsel %vm1136, %v2252, %v2256
        %v2259 = vshrl.u32 %v2074, 16
        %v2261 = vshll.u32 %v2074, 16
        %v2263 = vrot.slane %v2261, 1
        %v2264 = vor.u32 %v2259, %v2263
        %v2266 = vshll.u32 %v2154, 16
        %v2268 = vrot.slane %v2266, 1
        %v2269 = vsel %vm1136, %v2264, %v2268
        %v2271 = vshrl.u32 %v2075, 16
        %v2273 = vshll.u32 %v2075, 16
        %v2275 = vrot.slane %v2273, 1
        %v2276 = vor.u32 %v2271, %v2275
        %v2278 = vshll.u32 %v2155, 16
        %v2280 = vrot.slane %v2278, 1
        %v2281 = vsel %vm1136, %v2276, %v2280
        %v2283 = vshrl.u32 %v2076, 16
        %v2285 = vshll.u32 %v2076, 16
        %v2287 = vrot.slane %v2285, 1
        %v2288 = vor.u32 %v2283, %v2287
        %v2290 = vshll.u32 %v2156, 16
        %v2292 = vrot.slane %v2290, 1
        %v2293 = vsel %vm1136, %v2288, %v2292
        %v2295 = vshrl.u32 %v2077, 16
        %v2297 = vshll.u32 %v2077, 16
        %v2299 = vrot.slane %v2297, 1
        %v2300 = vor.u32 %v2295, %v2299
        %v2302 = vshll.u32 %v2157, 16
        %v2304 = vrot.slane %v2302, 1
        %v2305 = vsel %vm1136, %v2300, %v2304
        %v2307 = vshrl.u32 %v2078, 16
        %v2309 = vshll.u32 %v2078, 16
        %v2311 = vrot.slane %v2309, 1
        %v2312 = vor.u32 %v2307, %v2311
        %v2314 = vshll.u32 %v2158, 16
        %v2316 = vrot.slane %v2314, 1
        %v2317 = vsel %vm1136, %v2312, %v2316
        %v2319 = vshrl.u32 %v2079, 16
        %v2321 = vshll.u32 %v2079, 16
        %v2323 = vrot.slane %v2321, 1
        %v2324 = vor.u32 %v2319, %v2323
        %v2326 = vshll.u32 %v2159, 16
        %v2328 = vrot.slane %v2326, 1
        %v2329 = vsel %vm1136, %v2324, %v2328
        %v2331 = vshrl.u32 %v2080, 16
        %v2333 = vshll.u32 %v2080, 16
        %v2335 = vrot.slane %v2333, 1
        %v2336 = vor.u32 %v2331, %v2335
        %v2338 = vshll.u32 %v2160, 16
        %v2340 = vrot.slane %v2338, 1
        %v2341 = vsel %vm1136, %v2336, %v2340
        %v2343 = vshrl.u32 %v2081, 16
        %v2345 = vshll.u32 %v2081, 16
        %v2347 = vrot.slane %v2345, 1
        %v2348 = vor.u32 %v2343, %v2347
        %v2350 = vshll.u32 %v2161, 16
        %v2352 = vrot.slane %v2350, 1
        %v2353 = vsel %vm1136, %v2348, %v2352
        %2354 = vrot.lane.b32.xlu0 %v2173, 21
        %v2355 = vpop.permute.xlu0 %2354
        %2356 = vrot.lane.b32.xlu0 %v2185, 21
        %v2357 = vpop.permute.xlu0 %2356
        %2358 = vrot.lane.b32.xlu0 %v2197, 21
        %v2359 = vpop.permute.xlu0 %2358
        %2360 = vrot.lane.b32.xlu0 %v2209, 21
        %v2361 = vpop.permute.xlu0 %2360
        %2362 = vrot.lane.b32.xlu0 %v2221, 21
        %v2363 = vpop.permute.xlu0 %2362
        %2364 = vrot.lane.b32.xlu0 %v2233, 21
        %v2365 = vpop.permute.xlu0 %2364
        %2366 = vrot.lane.b32.xlu0 %v2245, 21
        %v2367 = vpop.permute.xlu0 %2366
        %2368 = vrot.lane.b32.xlu0 %v2257, 21
        %v2369 = vpop.permute.xlu0 %2368
        %2370 = vrot.lane.b32.xlu0 %v2269, 21
        %v2371 = vpop.permute.xlu0 %2370
        %2372 = vrot.lane.b32.xlu0 %v2281, 21
        %v2373 = vpop.permute.xlu0 %2372
        %2374 = vrot.lane.b32.xlu0 %v2293, 21
        %v2375 = vpop.permute.xlu0 %2374
        %2376 = vrot.lane.b32.xlu0 %v2305, 21
        %v2377 = vpop.permute.xlu0 %2376
        %2378 = vrot.lane.b32.xlu0 %v2317, 21
        %v2379 = vpop.permute.xlu0 %2378
        %2380 = vrot.lane.b32.xlu0 %v2329, 21
        %v2381 = vpop.permute.xlu0 %2380
        %2382 = vrot.lane.b32.xlu0 %v2341, 21
        %v2383 = vpop.permute.xlu0 %2382
        %2384 = vrot.lane.b32.xlu0 %v2353, 21
        %v2385 = vpop.permute.xlu0 %2384
        %v2402 = vunpack.c.l.b16 %v992
        %v2403 = vunpack.c.l.b16 %v993
        %v2404 = vunpack.c.l.b16 %v994
        %v2405 = vunpack.c.l.b16 %v995
        %v2406 = vunpack.c.l.b16 %v996
        %v2407 = vunpack.c.l.b16 %v997
        %v2408 = vunpack.c.l.b16 %v998
        %v2409 = vunpack.c.l.b16 %v999
        %v2410 = vunpack.c.l.b16 %v1000
        %v2411 = vunpack.c.l.b16 %v1001
        %v2412 = vunpack.c.l.b16 %v1002
        %v2413 = vunpack.c.l.b16 %v1003
        %v2414 = vunpack.c.l.b16 %v1004
        %v2415 = vunpack.c.l.b16 %v1005
        %v2416 = vunpack.c.l.b16 %v1006
        %v2417 = vunpack.c.l.b16 %v1007
        %v2418 = vpack.c.b16 %v2035, %v2402
        %v2419 = vpack.c.b16 %v2037, %v2403
        %v2420 = vpack.c.b16 %v2039, %v2404
        %v2421 = vpack.c.b16 %v2041, %v2405
        %v2422 = vpack.c.b16 %v2043, %v2406
        %v2423 = vpack.c.b16 %v2045, %v2407
        %v2424 = vpack.c.b16 %v2047, %v2408
        %v2425 = vpack.c.b16 %v2049, %v2409
        %v2426 = vpack.c.b16 %v2051, %v2410
        %v2427 = vpack.c.b16 %v2053, %v2411
        %v2428 = vpack.c.b16 %v2055, %v2412
        %v2429 = vpack.c.b16 %v2057, %v2413
        %v2430 = vpack.c.b16 %v2059, %v2414
        %v2431 = vpack.c.b16 %v2061, %v2415
        %v2432 = vpack.c.b16 %v2063, %v2416
        %v2433 = vpack.c.b16 %v2065, %v2417
        %v2434 = vrot.slane %v2418, 1
        %v2435 = vrot.slane %v2146, 1
        %v2436 = vsel %vm1409, %v2434, %v2435
        %v2437 = vrot.slane %v2419, 1
        %v2438 = vrot.slane %v2147, 1
        %v2439 = vsel %vm1409, %v2437, %v2438
        %v2440 = vrot.slane %v2420, 1
        %v2441 = vrot.slane %v2148, 1
        %v2442 = vsel %vm1409, %v2440, %v2441
        %v2443 = vrot.slane %v2421, 1
        %v2444 = vrot.slane %v2149, 1
        %v2445 = vsel %vm1409, %v2443, %v2444
        %v2446 = vrot.slane %v2422, 1
        %v2447 = vrot.slane %v2150, 1
        %v2448 = vsel %vm1409, %v2446, %v2447
        %v2449 = vrot.slane %v2423, 1
        %v2450 = vrot.slane %v2151, 1
        %v2451 = vsel %vm1409, %v2449, %v2450
        %v2452 = vrot.slane %v2424, 1
        %v2453 = vrot.slane %v2152, 1
        %v2454 = vsel %vm1409, %v2452, %v2453
        %v2455 = vrot.slane %v2425, 1
        %v2456 = vrot.slane %v2153, 1
        %v2457 = vsel %vm1409, %v2455, %v2456
        %v2458 = vrot.slane %v2426, 1
        %v2459 = vrot.slane %v2154, 1
        %v2460 = vsel %vm1409, %v2458, %v2459
        %v2461 = vrot.slane %v2427, 1
        %v2462 = vrot.slane %v2155, 1
        %v2463 = vsel %vm1409, %v2461, %v2462
        %v2464 = vrot.slane %v2428, 1
        %v2465 = vrot.slane %v2156, 1
        %v2466 = vsel %vm1409, %v2464, %v2465
        %v2467 = vrot.slane %v2429, 1
        %v2468 = vrot.slane %v2157, 1
        %v2469 = vsel %vm1409, %v2467, %v2468
        %v2470 = vrot.slane %v2430, 1
        %v2471 = vrot.slane %v2158, 1
        %v2472 = vsel %vm1409, %v2470, %v2471
        %v2473 = vrot.slane %v2431, 1
        %v2474 = vrot.slane %v2159, 1
        %v2475 = vsel %vm1409, %v2473, %v2474
        %v2476 = vrot.slane %v2432, 1
        %v2477 = vrot.slane %v2160, 1
        %v2478 = vsel %vm1409, %v2476, %v2477
        %v2479 = vrot.slane %v2433, 1
        %v2480 = vrot.slane %v2161, 1
        %v2481 = vsel %vm1409, %v2479, %v2480
        %2482 = vrot.lane.b32.xlu0 %v2436, 24
        %v2483 = vpop.permute.xlu0 %2482
        %2484 = vrot.lane.b32.xlu0 %v2439, 24
        %v2485 = vpop.permute.xlu0 %2484
        %2486 = vrot.lane.b32.xlu0 %v2442, 24
        %v2487 = vpop.permute.xlu0 %2486
        %2488 = vrot.lane.b32.xlu0 %v2445, 24
        %v2489 = vpop.permute.xlu0 %2488
        %2490 = vrot.lane.b32.xlu0 %v2448, 24
        %v2491 = vpop.permute.xlu0 %2490
        %2492 = vrot.lane.b32.xlu0 %v2451, 24
        %v2493 = vpop.permute.xlu0 %2492
        %2494 = vrot.lane.b32.xlu0 %v2454, 24
        %v2495 = vpop.permute.xlu0 %2494
        %2496 = vrot.lane.b32.xlu0 %v2457, 24
        %v2497 = vpop.permute.xlu0 %2496
        %2498 = vrot.lane.b32.xlu0 %v2460, 24
        %v2499 = vpop.permute.xlu0 %2498
        %2500 = vrot.lane.b32.xlu0 %v2463, 24
        %v2501 = vpop.permute.xlu0 %2500
        %2502 = vrot.lane.b32.xlu0 %v2466, 24
        %v2503 = vpop.permute.xlu0 %2502
        %2504 = vrot.lane.b32.xlu0 %v2469, 24
        %v2505 = vpop.permute.xlu0 %2504
        %2506 = vrot.lane.b32.xlu0 %v2472, 24
        %v2507 = vpop.permute.xlu0 %2506
        %2508 = vrot.lane.b32.xlu0 %v2475, 24
        %v2509 = vpop.permute.xlu0 %2508
        %2510 = vrot.lane.b32.xlu0 %v2478, 24
        %v2511 = vpop.permute.xlu0 %2510
        %2512 = vrot.lane.b32.xlu0 %v2481, 24
        %v2513 = vpop.permute.xlu0 %2512
        %vm2514 = vcmask 23552
        %v2516 = vsel %vm2514, %v1072, %v1330
        %v2518 = vsel %vm2514, %v1073, %v1332
        %v2520 = vsel %vm2514, %v1074, %v1334
        %v2522 = vsel %vm2514, %v1075, %v1336
        %v2524 = vsel %vm2514, %v1076, %v1338
        %v2526 = vsel %vm2514, %v1077, %v1340
        %v2528 = vsel %vm2514, %v1078, %v1342
        %v2530 = vsel %vm2514, %v1079, %v1344
        %v2532 = vsel %vm2514, %v1080, %v1346
        %v2534 = vsel %vm2514, %v1081, %v1348
        %v2536 = vsel %vm2514, %v1082, %v1350
        %v2538 = vsel %vm2514, %v1083, %v1352
        %v2540 = vsel %vm2514, %v1084, %v1354
        %v2542 = vsel %vm2514, %v1085, %v1356
        %v2544 = vsel %vm2514, %v1086, %v1358
        %v2546 = vsel %vm2514, %v1087, %v1360
        %vm2547 = vcmask 48128
        %v2549 = vsel %vm2547, %v2516, %v1459
        %v2551 = vsel %vm2547, %v2518, %v1461
        %v2553 = vsel %vm2547, %v2520, %v1463
        %v2555 = vsel %vm2547, %v2522, %v1465
        %v2557 = vsel %vm2547, %v2524, %v1467
        %v2559 = vsel %vm2547, %v2526, %v1469
        %v2561 = vsel %vm2547, %v2528, %v1471
        %v2563 = vsel %vm2547, %v2530, %v1473
        %v2565 = vsel %vm2547, %v2532, %v1475
        %v2567 = vsel %vm2547, %v2534, %v1477
        %v2569 = vsel %vm2547, %v2536, %v1479
        %v2571 = vsel %vm2547, %v2538, %v1481
        %v2573 = vsel %vm2547, %v2540, %v1483
        %v2575 = vsel %vm2547, %v2542, %v1485
        %v2577 = vsel %vm2547, %v2544, %v1487
        %v2579 = vsel %vm2547, %v2546, %v1489
        %vm2580 = vcmask 72704
        %v2582 = vsel %vm2580, %v2549, %v1571
        %v2584 = vsel %vm2580, %v2551, %v1573
        %v2586 = vsel %vm2580, %v2553, %v1575
        %v2588 = vsel %vm2580, %v2555, %v1577
        %v2590 = vsel %vm2580, %v2557, %v1579
        %v2592 = vsel %vm2580, %v2559, %v1581
        %v2594 = vsel %vm2580, %v2561, %v1583
        %v2596 = vsel %vm2580, %v2563, %v1585
        %v2598 = vsel %vm2580, %v2565, %v1587
        %v2600 = vsel %vm2580, %v2567, %v1589
        %v2602 = vsel %vm2580, %v2569, %v1591
        %v2604 = vsel %vm2580, %v2571, %v1593
        %v2606 = vsel %vm2580, %v2573, %v1595
        %v2608 = vsel %vm2580, %v2575, %v1597
        %v2610 = vsel %vm2580, %v2577, %v1599
        %v2612 = vsel %vm2580, %v2579, %v1601
        %vm2613 = vcmask 97280
        %v2615 = vsel %vm2613, %v2582, %v1843
        %v2617 = vsel %vm2613, %v2584, %v1845
        %v2619 = vsel %vm2613, %v2586, %v1847
        %v2621 = vsel %vm2613, %v2588, %v1849
        %v2623 = vsel %vm2613, %v2590, %v1851
        %v2625 = vsel %vm2613, %v2592, %v1853
        %v2627 = vsel %vm2613, %v2594, %v1855
        %v2629 = vsel %vm2613, %v2596, %v1857
        %v2631 = vsel %vm2613, %v2598, %v1859
        %v2633 = vsel %vm2613, %v2600, %v1861
        %v2635 = vsel %vm2613, %v2602, %v1863
        %v2637 = vsel %vm2613, %v2604, %v1865
        %v2639 = vsel %vm2613, %v2606, %v1867
        %v2641 = vsel %vm2613, %v2608, %v1869
        %v2643 = vsel %vm2613, %v2610, %v1871
        %v2645 = vsel %vm2613, %v2612, %v1873
        %vm2646 = vcmask 121856
        %v2648 = vsel %vm2646, %v2615, %v1971
        %v2650 = vsel %vm2646, %v2617, %v1973
        %v2652 = vsel %vm2646, %v2619, %v1975
        %v2654 = vsel %vm2646, %v2621, %v1977
        %v2656 = vsel %vm2646, %v2623, %v1979
        %v2658 = vsel %vm2646, %v2625, %v1981
        %v2660 = vsel %vm2646, %v2627, %v1983
        %v2662 = vsel %vm2646, %v2629, %v1985
        %v2664 = vsel %vm2646, %v2631, %v1987
        %v2666 = vsel %vm2646, %v2633, %v1989
        %v2668 = vsel %vm2646, %v2635, %v1991
        %v2670 = vsel %vm2646, %v2637, %v1993
        %v2672 = vsel %vm2646, %v2639, %v1995
        %v2674 = vsel %vm2646, %v2641, %v1997
        %v2676 = vsel %vm2646, %v2643, %v1999
        %v2678 = vsel %vm2646, %v2645, %v2001
        %vm2679 = vcmask 146432
        %v2681 = vsel %vm2679, %v2648, %v2083
        %v2683 = vsel %vm2679, %v2650, %v2085
        %v2685 = vsel %vm2679, %v2652, %v2087
        %v2687 = vsel %vm2679, %v2654, %v2089
        %v2689 = vsel %vm2679, %v2656, %v2091
        %v2691 = vsel %vm2679, %v2658, %v2093
        %v2693 = vsel %vm2679, %v2660, %v2095
        %v2695 = vsel %vm2679, %v2662, %v2097
        %v2697 = vsel %vm2679, %v2664, %v2099
        %v2699 = vsel %vm2679, %v2666, %v2101
        %v2701 = vsel %vm2679, %v2668, %v2103
        %v2703 = vsel %vm2679, %v2670, %v2105
        %v2705 = vsel %vm2679, %v2672, %v2107
        %v2707 = vsel %vm2679, %v2674, %v2109
        %v2709 = vsel %vm2679, %v2676, %v2111
        %v2711 = vsel %vm2679, %v2678, %v2113
        %vm2712 = vcmask 171008
        %v2714 = vsel %vm2712, %v2681, %v2355
        %v2716 = vsel %vm2712, %v2683, %v2357
        %v2718 = vsel %vm2712, %v2685, %v2359
        %v2720 = vsel %vm2712, %v2687, %v2361
        %v2722 = vsel %vm2712, %v2689, %v2363
        %v2724 = vsel %vm2712, %v2691, %v2365
        %v2726 = vsel %vm2712, %v2693, %v2367
        %v2728 = vsel %vm2712, %v2695, %v2369
        %v2730 = vsel %vm2712, %v2697, %v2371
        %v2732 = vsel %vm2712, %v2699, %v2373
        %v2734 = vsel %vm2712, %v2701, %v2375
        %v2736 = vsel %vm2712, %v2703, %v2377
        %v2738 = vsel %vm2712, %v2705, %v2379
        %v2740 = vsel %vm2712, %v2707, %v2381
        %v2742 = vsel %vm2712, %v2709, %v2383
        %v2744 = vsel %vm2712, %v2711, %v2385
        %vm2745 = vcmask 195584
        %v2747 = vsel %vm2745, %v2714, %v2483
        %v2749 = vsel %vm2745, %v2716, %v2485
        %v2751 = vsel %vm2745, %v2718, %v2487
        %v2753 = vsel %vm2745, %v2720, %v2489
        %v2755 = vsel %vm2745, %v2722, %v2491
        %v2757 = vsel %vm2745, %v2724, %v2493
        %v2759 = vsel %vm2745, %v2726, %v2495
        %v2761 = vsel %vm2745, %v2728, %v2497
        %v2763 = vsel %vm2745, %v2730, %v2499
        %v2765 = vsel %vm2745, %v2732, %v2501
        %v2767 = vsel %vm2745, %v2734, %v2503
        %v2769 = vsel %vm2745, %v2736, %v2505
        %v2771 = vsel %vm2745, %v2738, %v2507
        %v2773 = vsel %vm2745, %v2740, %v2509
        %v2775 = vsel %vm2745, %v2742, %v2511
        %v2777 = vsel %vm2745, %v2744, %v2513
        %v2778 = vld [vmem:[%s1] sm:$0xf]
        %v2779 = vld [vmem:[%s1 + $0x4] sm:$0xf]
        %v2780 = vld [vmem:[%s1 + $0x8] sm:$0xf]
        %v2781 = vld [vmem:[%s1 + $0xc] sm:$0x3]
        %v2782 = vld [vmem:[%s2] sm:$0x1]
        %v2784 = vlaneseq
        %v2785 = vshrl.u32 %v2784, 7
        %v2786 = vsub.s32 0, %v2785
        %v2787 = vrot.slane %v2782, %v2786
        %v2793 = vunpack.c.l.b16 %v2778
        %v2794 = vunpack.c.l.b16 %v2779
        %v2795 = vunpack.c.l.b16 %v2780
        %v2796 = vunpack.c.l.b16 %v2781
        %v2797 = vpack.c.b16 %v2794, %v2793
        %v2798 = vpack.c.b16 %v2796, %v2795
        %vm2800 = vcmask 220160
        %v2801 = vsel %vm2800, %v2747, 0
        %v2803 = vsel %vm2800, %v2749, 0
        %v2805 = vsel %vm2800, %v2751, 0
        %v2807 = vsel %vm2800, %v2753, 0
        %v2809 = vsel %vm2800, %v2755, 0
        %v2811 = vsel %vm2800, %v2757, 0
        %v2813 = vsel %vm2800, %v2759, 0
        %v2815 = vsel %vm2800, %v2761, 0
        %v2817 = vsel %vm2800, %v2763, 0
        %v2819 = vsel %vm2800, %v2765, 0
        %v2821 = vsel %vm2800, %v2767, 0
        %v2823 = vsel %vm2800, %v2769, 0
        %v2825 = vsel %vm2800, %v2771, 0
        %v2827 = vsel %vm2800, %v2773, 0
        %v2829 = vsel %vm2800, %v2775, 0
        %v2831 = vsel %vm2800, %v2777, 0
        %vm2833 = vcmask 1044480
        %vm2834 = vcmask 1045504
        %v2835 = vsel %vm2833, 4294967295, 65535
        %v2836 = vsel %vm2834, %v2835, 0
        %v2838 = vand.u32 %v2798, %v2836
        %2840 = vmatprep.subr.bf16.mxu0 0
        %2841 = vmatpush1.bf16.msra.mxu0 0
        %2842 = vmatprep.subr.bf16.mxu0 0
        %2843 = vmatpush1.bf16.msra.mxu0 0
        %2844 = vmatprep.subr.bf16.mxu0 0
        %2845 = vmatpush1.bf16.msra.mxu0 0
        %2846 = vmatprep.subr.bf16.mxu0 0
        %2847 = vmatpush1.bf16.msra.mxu0 0
        %2848 = vmatprep.subr.bf16.mxu0 0
        %2849 = vmatpush1.bf16.msra.mxu0 0
        %2850 = vmatprep.subr.bf16.mxu0 0
        %2851 = vmatpush1.bf16.msra.mxu0 0
        %2852 = vmatprep.subr.bf16.mxu0 0
        %2853 = vmatpush1.bf16.msra.mxu0 %v2838
        %2854 = vmatprep.subr.bf16.mxu0 0
        %2855 = vmatpush1.bf16.msra.mxu0 %v2797
        %2856 = vmatprep.subr.bf16.mxu0 0
        %2857 = vmatpush2.bf16.msra.mxu0 0
        %2858 = vmatprep.subr.bf16.mxu0 0
        %2859 = vmatpush2.bf16.msra.mxu0 0
        %2860 = vmatprep.subr.bf16.mxu0 0
        %2861 = vmatpush2.bf16.msra.mxu0 0
        %2862 = vmatprep.subr.bf16.mxu0 0
        %2863 = vmatpush2.bf16.msra.mxu0 0
        %2864 = vmatprep.subr.bf16.mxu0 0
        %2865 = vmatpush2.bf16.msra.mxu0 0
        %2866 = vmatprep.subr.bf16.mxu0 0
        %2867 = vmatpush2.bf16.msra.mxu0 0
        %2868 = vmatprep.subr.bf16.mxu0 0
        %2869 = vmatpush2.bf16.msra.mxu0 0
        %2870 = vmatprep.subr.bf16.mxu0 0
        %2871 = vmatpush2.bf16.msra.mxu0 0
        %2872 = vmatprep.mubr.bf16.mxu0 0
        %2873 = vmatmul.mubr.bf16.gmra.mxu0 %v2801
        %v2874 = vpop.f32.mrf.mxu0
        %v2875 = vadd.f32 %v2787, %v2874
        %v2876 = vpop.f32.mrf.mxu0
        %v2877 = vpop.f32.mrf.mxu0
        %v2878 = vadd.f32 %v2787, %v2877
        %v2879 = vpop.f32.mrf.mxu0
        %2880 = vmatprep.mubr.bf16.mxu0 0
        %2881 = vmatmul.mubr.bf16.gmra.mxu0 %v2803
        %v2882 = vpop.f32.mrf.mxu0
        %v2883 = vadd.f32 %v2787, %v2882
        %v2884 = vpop.f32.mrf.mxu0
        %v2885 = vpop.f32.mrf.mxu0
        %v2886 = vadd.f32 %v2787, %v2885
        %v2887 = vpop.f32.mrf.mxu0
        %2888 = vmatprep.mubr.bf16.mxu0 0
        %2889 = vmatmul.mubr.bf16.gmra.mxu0 %v2805
        %v2890 = vpop.f32.mrf.mxu0
        %v2891 = vadd.f32 %v2787, %v2890
        %v2892 = vpop.f32.mrf.mxu0
        %v2893 = vpop.f32.mrf.mxu0
        %v2894 = vadd.f32 %v2787, %v2893
        %v2895 = vpop.f32.mrf.mxu0
        %2896 = vmatprep.mubr.bf16.mxu0 0
        %2897 = vmatmul.mubr.bf16.gmra.mxu0 %v2807
        %v2898 = vpop.f32.mrf.mxu0
        %v2899 = vadd.f32 %v2787, %v2898
        %v2900 = vpop.f32.mrf.mxu0
        %v2901 = vpop.f32.mrf.mxu0
        %v2902 = vadd.f32 %v2787, %v2901
        %v2903 = vpop.f32.mrf.mxu0
        %2904 = vmatprep.mubr.bf16.mxu0 0
        %2905 = vmatmul.mubr.bf16.gmra.mxu0 %v2809
        %v2906 = vpop.f32.mrf.mxu0
        %v2907 = vadd.f32 %v2787, %v2906
        %v2908 = vpop.f32.mrf.mxu0
        %v2909 = vpop.f32.mrf.mxu0
        %v2910 = vadd.f32 %v2787, %v2909
        %v2911 = vpop.f32.mrf.mxu0
        %2912 = vmatprep.mubr.bf16.mxu0 0
        %2913 = vmatmul.mubr.bf16.gmra.mxu0 %v2811
        %v2914 = vpop.f32.mrf.mxu0
        %v2915 = vadd.f32 %v2787, %v2914
        %v2916 = vpop.f32.mrf.mxu0
        %v2917 = vpop.f32.mrf.mxu0
        %v2918 = vadd.f32 %v2787, %v2917
        %v2919 = vpop.f32.mrf.mxu0
        %2920 = vmatprep.mubr.bf16.mxu0 0
        %2921 = vmatmul.mubr.bf16.gmra.mxu0 %v2813
        %v2922 = vpop.f32.mrf.mxu0
        %v2923 = vadd.f32 %v2787, %v2922
        %v2924 = vpop.f32.mrf.mxu0
        %v2925 = vpop.f32.mrf.mxu0
        %v2926 = vadd.f32 %v2787, %v2925
        %v2927 = vpop.f32.mrf.mxu0
        %2928 = vmatprep.mubr.bf16.mxu0 0
        %2929 = vmatmul.mubr.bf16.gmra.mxu0 %v2815
        %v2930 = vpop.f32.mrf.mxu0
        %v2931 = vadd.f32 %v2787, %v2930
        %v2932 = vpop.f32.mrf.mxu0
        %v2933 = vpop.f32.mrf.mxu0
        %v2934 = vadd.f32 %v2787, %v2933
        %v2935 = vpop.f32.mrf.mxu0
        %2936 = vmatprep.mubr.bf16.mxu0 0
        %2937 = vmatmul.mubr.bf16.gmra.mxu0 %v2817
        %v2938 = vpop.f32.mrf.mxu0
        %v2939 = vadd.f32 %v2787, %v2938
        %v2940 = vpop.f32.mrf.mxu0
        %v2941 = vpop.f32.mrf.mxu0
        %v2942 = vadd.f32 %v2787, %v2941
        %v2943 = vpop.f32.mrf.mxu0
        %2944 = vmatprep.mubr.bf16.mxu0 0
        %2945 = vmatmul.mubr.bf16.gmra.mxu0 %v2819
        %v2946 = vpop.f32.mrf.mxu0
        %v2947 = vadd.f32 %v2787, %v2946
        %v2948 = vpop.f32.mrf.mxu0
        %v2949 = vpop.f32.mrf.mxu0
        %v2950 = vadd.f32 %v2787, %v2949
        %v2951 = vpop.f32.mrf.mxu0
        %2952 = vmatprep.mubr.bf16.mxu0 0
        %2953 = vmatmul.mubr.bf16.gmra.mxu0 %v2821
        %v2954 = vpop.f32.mrf.mxu0
        %v2955 = vadd.f32 %v2787, %v2954
        %v2956 = vpop.f32.mrf.mxu0
        %v2957 = vpop.f32.mrf.mxu0
        %v2958 = vadd.f32 %v2787, %v2957
        %v2959 = vpop.f32.mrf.mxu0
        %2960 = vmatprep.mubr.bf16.mxu0 0
        %2961 = vmatmul.mubr.bf16.gmra.mxu0 %v2823
        %v2962 = vpop.f32.mrf.mxu0
        %v2963 = vadd.f32 %v2787, %v2962
        %v2964 = vpop.f32.mrf.mxu0
        %v2965 = vpop.f32.mrf.mxu0
        %v2966 = vadd.f32 %v2787, %v2965
        %v2967 = vpop.f32.mrf.mxu0
        %2968 = vmatprep.mubr.bf16.mxu0 0
        %2969 = vmatmul.mubr.bf16.gmra.mxu0 %v2825
        %v2970 = vpop.f32.mrf.mxu0
        %v2971 = vadd.f32 %v2787, %v2970
        %v2972 = vpop.f32.mrf.mxu0
        %v2973 = vpop.f32.mrf.mxu0
        %v2974 = vadd.f32 %v2787, %v2973
        %v2975 = vpop.f32.mrf.mxu0
        %2976 = vmatprep.mubr.bf16.mxu0 0
        %2977 = vmatmul.mubr.bf16.gmra.mxu0 %v2827
        %v2978 = vpop.f32.mrf.mxu0
        %v2979 = vadd.f32 %v2787, %v2978
        %v2980 = vpop.f32.mrf.mxu0
        %v2981 = vpop.f32.mrf.mxu0
        %v2982 = vadd.f32 %v2787, %v2981
        %v2983 = vpop.f32.mrf.mxu0
        %2984 = vmatprep.mubr.bf16.mxu0 0
        %2985 = vmatmul.mubr.bf16.gmra.mxu0 %v2829
        %v2986 = vpop.f32.mrf.mxu0
        %v2987 = vadd.f32 %v2787, %v2986
        %v2988 = vpop.f32.mrf.mxu0
        %v2989 = vpop.f32.mrf.mxu0
        %v2990 = vadd.f32 %v2787, %v2989
        %v2991 = vpop.f32.mrf.mxu0
        %2992 = vmatprep.mubr.bf16.mxu0 0
        %2993 = vmatmul.mubr.bf16.gmra.mxu0 %v2831
        %v2994 = vpop.f32.mrf.mxu0
        %v2995 = vadd.f32 %v2787, %v2994
        %v2996 = vpop.f32.mrf.mxu0
        %v2997 = vpop.f32.mrf.mxu0
        %v2998 = vadd.f32 %v2787, %v2997
        %v2999 = vpop.f32.mrf.mxu0
        %3000 = vdwg.mxu0
        %v3001 = vmax.f32 %v2875, 0.0
        %v3002 = vmax.f32 %v2878, 0.0
        %v3003 = vmax.f32 %v2883, 0.0
        %v3004 = vmax.f32 %v2886, 0.0
        %v3005 = vmax.f32 %v2891, 0.0
        %v3006 = vmax.f32 %v2894, 0.0
        %v3007 = vmax.f32 %v2899, 0.0
        %v3008 = vmax.f32 %v2902, 0.0
        %v3009 = vmax.f32 %v2907, 0.0
        %v3010 = vmax.f32 %v2910, 0.0
        %v3011 = vmax.f32 %v2915, 0.0
        %v3012 = vmax.f32 %v2918, 0.0
        %v3013 = vmax.f32 %v2923, 0.0
        %v3014 = vmax.f32 %v2926, 0.0
        %v3015 = vmax.f32 %v2931, 0.0
        %v3016 = vmax.f32 %v2934, 0.0
        %v3017 = vmax.f32 %v2939, 0.0
        %v3018 = vmax.f32 %v2942, 0.0
        %v3019 = vmax.f32 %v2947, 0.0
        %v3020 = vmax.f32 %v2950, 0.0
        %v3021 = vmax.f32 %v2955, 0.0
        %v3022 = vmax.f32 %v2958, 0.0
        %v3023 = vmax.f32 %v2963, 0.0
        %v3024 = vmax.f32 %v2966, 0.0
        %v3025 = vmax.f32 %v2971, 0.0
        %v3026 = vmax.f32 %v2974, 0.0
        %v3027 = vmax.f32 %v2979, 0.0
        %v3028 = vmax.f32 %v2982, 0.0
        %v3029 = vmax.f32 %v2987, 0.0
        %v3030 = vmax.f32 %v2990, 0.0
        %v3031 = vmax.f32 %v2995, 0.0
        %v3032 = vmax.f32 %v2998, 0.0
        %vm3033 = vcmask 125952
        %3034 = vst.msk [vmem:[#allocation3] sm:$0xf] %vm3033, 0
        %3035 = vst.msk [vmem:[#allocation3 + $0x4] sm:$0xf] %vm3033, 0
        %vm3036 = vcmask 122880
        %3037 = vst.msk [vmem:[#allocation3 + $0x8] sm:$0x1] %vm3036, 0
        %s3038 = scalar_lea.vmem [#allocation3], 204
        %3039 = vst.msk [vmem:[%s3038] sm:$0xf] %vm3033, 0
        %3040 = vst.msk [vmem:[%s3038 + $0x4] sm:$0xf] %vm3033, 0
        %3041 = vst.msk [vmem:[%s3038 + $0x8] sm:$0x1] %vm3036, 0
        %vm3042 = vcmask 122880
        %vm3043 = vmand %vm3042, %vm266
        %v3044 = vld [vmem:[#allocation3] sm:$0x1]
        %v3045 = vsel %vm3043, 0, %v3044
        %3046 = vst [vmem:[#allocation3] sm:$0x1] %v3045
        %v3047 = vld [vmem:[#allocation3 + $0xc] sm:$0x1]
        %v3048 = vsel %vm3043, 0, %v3047
        %3049 = vst [vmem:[#allocation3 + $0xc] sm:$0x1] %v3048
        %v3050 = vld [vmem:[#allocation3 + $0x18] sm:$0x1]
        %v3051 = vsel %vm3043, 0, %v3050
        %3052 = vst [vmem:[#allocation3 + $0x18] sm:$0x1] %v3051
        %v3053 = vld [vmem:[#allocation3 + $0x24] sm:$0x1]
        %v3054 = vsel %vm3043, 0, %v3053
        %3055 = vst [vmem:[#allocation3 + $0x24] sm:$0x1] %v3054
        %v3056 = vld [vmem:[#allocation3 + $0x30] sm:$0x1]
        %v3057 = vsel %vm3043, 0, %v3056
        %3058 = vst [vmem:[#allocation3 + $0x30] sm:$0x1] %v3057
        %v3059 = vld [vmem:[#allocation3 + $0x3c] sm:$0x1]
        %v3060 = vsel %vm3043, 0, %v3059
        %3061 = vst [vmem:[#allocation3 + $0x3c] sm:$0x1] %v3060
        %v3062 = vld [vmem:[#allocation3 + $0x48] sm:$0x1]
        %v3063 = vsel %vm3043, 0, %v3062
        %3064 = vst [vmem:[#allocation3 + $0x48] sm:$0x1] %v3063
        %v3065 = vld [vmem:[#allocation3 + $0x54] sm:$0x1]
        %v3066 = vsel %vm3043, 0, %v3065
        %3067 = vst [vmem:[#allocation3 + $0x54] sm:$0x1] %v3066
        %v3068 = vld [vmem:[#allocation3 + $0x60] sm:$0x1]
        %v3069 = vsel %vm3043, 0, %v3068
        %3070 = vst [vmem:[#allocation3 + $0x60] sm:$0x1] %v3069
        %v3071 = vld [vmem:[#allocation3 + $0x6c] sm:$0x1]
        %v3072 = vsel %vm3043, 0, %v3071
        %3073 = vst [vmem:[#allocation3 + $0x6c] sm:$0x1] %v3072
        %v3074 = vld [vmem:[#allocation3 + $0x78] sm:$0x1]
        %v3075 = vsel %vm3043, 0, %v3074
        %3076 = vst [vmem:[#allocation3 + $0x78] sm:$0x1] %v3075
        %v3077 = vld [vmem:[#allocation3 + $0x84] sm:$0x1]
        %v3078 = vsel %vm3043, 0, %v3077
        %3079 = vst [vmem:[#allocation3 + $0x84] sm:$0x1] %v3078
        %v3080 = vld [vmem:[#allocation3 + $0x90] sm:$0x1]
        %v3081 = vsel %vm3043, 0, %v3080
        %3082 = vst [vmem:[#allocation3 + $0x90] sm:$0x1] %v3081
        %v3083 = vld [vmem:[#allocation3 + $0x9c] sm:$0x1]
        %v3084 = vsel %vm3043, 0, %v3083
        %3085 = vst [vmem:[#allocation3 + $0x9c] sm:$0x1] %v3084
        %v3086 = vld [vmem:[#allocation3 + $0xa8] sm:$0x1]
        %v3087 = vsel %vm3043, 0, %v3086
        %3088 = vst [vmem:[#allocation3 + $0xa8] sm:$0x1] %v3087
        %v3089 = vld [vmem:[#allocation3 + $0xb4] sm:$0x1]
        %v3090 = vsel %vm3043, 0, %v3089
        %3091 = vst [vmem:[#allocation3 + $0xb4] sm:$0x1] %v3090
        %v3092 = vld [vmem:[#allocation3 + $0xc0] sm:$0x1]
        %v3093 = vsel %vm3043, 0, %v3092
        %3094 = vst [vmem:[#allocation3 + $0xc0] sm:$0x1] %v3093
        %v3095 = vld [vmem:[#allocation3 + $0xcc] sm:$0x1]
        %v3096 = vsel %vm3043, 0, %v3095
        %3097 = vst [vmem:[#allocation3 + $0xcc] sm:$0x1] %v3096
        %vm3098 = vmand %vm3042, %vm322
        %v3099 = vld [vmem:[#allocation3 + $0x8] sm:$0x1]
        %v3100 = vsel %vm3098, 0, %v3099
        %3101 = vst [vmem:[#allocation3 + $0x8] sm:$0x1] %v3100
        %v3102 = vld [vmem:[#allocation3 + $0x14] sm:$0x1]
        %v3103 = vsel %vm3098, 0, %v3102
        %3104 = vst [vmem:[#allocation3 + $0x14] sm:$0x1] %v3103
        %v3105 = vld [vmem:[#allocation3 + $0x20] sm:$0x1]
        %v3106 = vsel %vm3098, 0, %v3105
        %3107 = vst [vmem:[#allocation3 + $0x20] sm:$0x1] %v3106
        %v3108 = vld [vmem:[#allocation3 + $0x2c] sm:$0x1]
        %v3109 = vsel %vm3098, 0, %v3108
        %3110 = vst [vmem:[#allocation3 + $0x2c] sm:$0x1] %v3109
        %v3111 = vld [vmem:[#allocation3 + $0x38] sm:$0x1]
        %v3112 = vsel %vm3098, 0, %v3111
        %3113 = vst [vmem:[#allocation3 + $0x38] sm:$0x1] %v3112
        %v3114 = vld [vmem:[#allocation3 + $0x44] sm:$0x1]
        %v3115 = vsel %vm3098, 0, %v3114
        %3116 = vst [vmem:[#allocation3 + $0x44] sm:$0x1] %v3115
        %v3117 = vld [vmem:[#allocation3 + $0x50] sm:$0x1]
        %v3118 = vsel %vm3098, 0, %v3117
        %3119 = vst [vmem:[#allocation3 + $0x50] sm:$0x1] %v3118
        %v3120 = vld [vmem:[#allocation3 + $0x5c] sm:$0x1]
        %v3121 = vsel %vm3098, 0, %v3120
        %3122 = vst [vmem:[#allocation3 + $0x5c] sm:$0x1] %v3121
        %v3123 = vld [vmem:[#allocation3 + $0x68] sm:$0x1]
        %v3124 = vsel %vm3098, 0, %v3123
        %3125 = vst [vmem:[#allocation3 + $0x68] sm:$0x1] %v3124
        %v3126 = vld [vmem:[#allocation3 + $0x74] sm:$0x1]
        %v3127 = vsel %vm3098, 0, %v3126
        %3128 = vst [vmem:[#allocation3 + $0x74] sm:$0x1] %v3127
        %v3129 = vld [vmem:[#allocation3 + $0x80] sm:$0x1]
        %v3130 = vsel %vm3098, 0, %v3129
        %3131 = vst [vmem:[#allocation3 + $0x80] sm:$0x1] %v3130
        %v3132 = vld [vmem:[#allocation3 + $0x8c] sm:$0x1]
        %v3133 = vsel %vm3098, 0, %v3132
        %3134 = vst [vmem:[#allocation3 + $0x8c] sm:$0x1] %v3133
        %v3135 = vld [vmem:[#allocation3 + $0x98] sm:$0x1]
        %v3136 = vsel %vm3098, 0, %v3135
        %3137 = vst [vmem:[#allocation3 + $0x98] sm:$0x1] %v3136
        %v3138 = vld [vmem:[#allocation3 + $0xa4] sm:$0x1]
        %v3139 = vsel %vm3098, 0, %v3138
        %3140 = vst [vmem:[#allocation3 + $0xa4] sm:$0x1] %v3139
        %v3141 = vld [vmem:[#allocation3 + $0xb0] sm:$0x1]
        %v3142 = vsel %vm3098, 0, %v3141
        %3143 = vst [vmem:[#allocation3 + $0xb0] sm:$0x1] %v3142
        %v3144 = vld [vmem:[#allocation3 + $0xbc] sm:$0x1]
        %v3145 = vsel %vm3098, 0, %v3144
        %3146 = vst [vmem:[#allocation3 + $0xbc] sm:$0x1] %v3145
        %v3147 = vld [vmem:[#allocation3 + $0xc8] sm:$0x1]
        %v3148 = vsel %vm3098, 0, %v3147
        %3149 = vst [vmem:[#allocation3 + $0xc8] sm:$0x1] %v3148
        %v3150 = vld [vmem:[#allocation3 + $0xd4] sm:$0x1]
        %v3151 = vsel %vm3098, 0, %v3150
        %3152 = vst [vmem:[#allocation3 + $0xd4] sm:$0x1] %v3151
        %v3153 = vpack.c.bf16 %v3002, %v3001
        %v3154 = vpack.c.bf16 %v3004, %v3003
        %v3155 = vpack.c.bf16 %v3006, %v3005
        %v3156 = vpack.c.bf16 %v3008, %v3007
        %v3157 = vpack.c.bf16 %v3010, %v3009
        %v3158 = vpack.c.bf16 %v3012, %v3011
        %v3159 = vpack.c.bf16 %v3014, %v3013
        %v3160 = vpack.c.bf16 %v3016, %v3015
        %v3161 = vpack.c.bf16 %v3018, %v3017
        %v3162 = vpack.c.bf16 %v3020, %v3019
        %v3163 = vpack.c.bf16 %v3022, %v3021
        %v3164 = vpack.c.bf16 %v3024, %v3023
        %v3165 = vpack.c.bf16 %v3026, %v3025
        %v3166 = vpack.c.bf16 %v3028, %v3027
        %v3167 = vpack.c.bf16 %v3030, %v3029
        %v3168 = vpack.c.bf16 %v3032, %v3031
        %v3185 = vunpack.c.l.b16 %v3153
        %v3186 = vunpack.c.h.b16 %v3153
        %v3187 = vunpack.c.l.b16 %v3154
        %v3188 = vunpack.c.h.b16 %v3154
        %v3189 = vunpack.c.l.b16 %v3155
        %v3190 = vunpack.c.h.b16 %v3155
        %v3191 = vunpack.c.l.b16 %v3156
        %v3192 = vunpack.c.h.b16 %v3156
        %v3193 = vunpack.c.l.b16 %v3157
        %v3194 = vunpack.c.h.b16 %v3157
        %v3195 = vunpack.c.l.b16 %v3158
        %v3196 = vunpack.c.h.b16 %v3158
        %v3197 = vunpack.c.l.b16 %v3159
        %v3198 = vunpack.c.h.b16 %v3159
        %v3199 = vunpack.c.l.b16 %v3160
        %v3200 = vunpack.c.h.b16 %v3160
        %v3201 = vunpack.c.l.b16 %v3161
        %v3202 = vunpack.c.h.b16 %v3161
        %v3203 = vunpack.c.l.b16 %v3162
        %v3204 = vunpack.c.h.b16 %v3162
        %v3205 = vunpack.c.l.b16 %v3163
        %v3206 = vunpack.c.h.b16 %v3163
        %v3207 = vunpack.c.l.b16 %v3164
        %v3208 = vunpack.c.h.b16 %v3164
        %v3209 = vunpack.c.l.b16 %v3165
        %v3210 = vunpack.c.h.b16 %v3165
        %v3211 = vunpack.c.l.b16 %v3166
        %v3212 = vunpack.c.h.b16 %v3166
        %v3213 = vunpack.c.l.b16 %v3167
        %v3214 = vunpack.c.h.b16 %v3167
        %v3215 = vunpack.c.l.b16 %v3168
        %v3216 = vunpack.c.h.b16 %v3168
        %v3217 = vpack.c.b16 %v3185, %v3185
        %v3218 = vpack.c.b16 %v3186, %v3186
        %v3219 = vpack.c.b16 %v3187, %v3187
        %v3220 = vpack.c.b16 %v3188, %v3188
        %v3221 = vpack.c.b16 %v3189, %v3189
        %v3222 = vpack.c.b16 %v3190, %v3190
        %v3223 = vpack.c.b16 %v3191, %v3191
        %v3224 = vpack.c.b16 %v3192, %v3192
        %v3225 = vpack.c.b16 %v3193, %v3193
        %v3226 = vpack.c.b16 %v3194, %v3194
        %v3227 = vpack.c.b16 %v3195, %v3195
        %v3228 = vpack.c.b16 %v3196, %v3196
        %v3229 = vpack.c.b16 %v3197, %v3197
        %v3230 = vpack.c.b16 %v3198, %v3198
        %v3231 = vpack.c.b16 %v3199, %v3199
        %v3232 = vpack.c.b16 %v3200, %v3200
        %v3233 = vpack.c.b16 %v3201, %v3201
        %v3234 = vpack.c.b16 %v3202, %v3202
        %v3235 = vpack.c.b16 %v3203, %v3203
        %v3236 = vpack.c.b16 %v3204, %v3204
        %v3237 = vpack.c.b16 %v3205, %v3205
        %v3238 = vpack.c.b16 %v3206, %v3206
        %v3239 = vpack.c.b16 %v3207, %v3207
        %v3240 = vpack.c.b16 %v3208, %v3208
        %v3241 = vpack.c.b16 %v3209, %v3209
        %v3242 = vpack.c.b16 %v3210, %v3210
        %v3243 = vpack.c.b16 %v3211, %v3211
        %v3244 = vpack.c.b16 %v3212, %v3212
        %v3245 = vpack.c.b16 %v3213, %v3213
        %v3246 = vpack.c.b16 %v3214, %v3214
        %v3247 = vpack.c.b16 %v3215, %v3215
        %v3248 = vpack.c.b16 %v3216, %v3216
        %v3250 = vshrl.u32 %v3217, 16
        %v3252 = vrot.slane %v3250, 7
        %v3253 = vshll.u32 %v3217, 16
        %v3255 = vor.u32 %v3252, %v3253
        %v3256 = vrot.slane %v3252, 4
        %v3258 = vshrl.u32 %v3218, 16
        %v3260 = vrot.slane %v3258, 7
        %v3261 = vshll.u32 %v3218, 16
        %v3263 = vor.u32 %v3260, %v3261
        %v3264 = vsel %vm379, %v3256, %v3263
        %v3265 = vrot.slane %v3260, 4
        %v3267 = vshrl.u32 %v3219, 16
        %v3269 = vrot.slane %v3267, 7
        %v3270 = vshll.u32 %v3219, 16
        %v3272 = vor.u32 %v3269, %v3270
        %v3273 = vrot.slane %v3269, 4
        %v3275 = vshrl.u32 %v3220, 16
        %v3277 = vrot.slane %v3275, 7
        %v3278 = vshll.u32 %v3220, 16
        %v3280 = vor.u32 %v3277, %v3278
        %v3281 = vsel %vm379, %v3273, %v3280
        %v3282 = vrot.slane %v3277, 4
        %v3284 = vshrl.u32 %v3221, 16
        %v3286 = vrot.slane %v3284, 7
        %v3287 = vshll.u32 %v3221, 16
        %v3289 = vor.u32 %v3286, %v3287
        %v3290 = vrot.slane %v3286, 4
        %v3292 = vshrl.u32 %v3222, 16
        %v3294 = vrot.slane %v3292, 7
        %v3295 = vshll.u32 %v3222, 16
        %v3297 = vor.u32 %v3294, %v3295
        %v3298 = vsel %vm379, %v3290, %v3297
        %v3299 = vrot.slane %v3294, 4
        %v3301 = vshrl.u32 %v3223, 16
        %v3303 = vrot.slane %v3301, 7
        %v3304 = vshll.u32 %v3223, 16
        %v3306 = vor.u32 %v3303, %v3304
        %v3307 = vrot.slane %v3303, 4
        %v3309 = vshrl.u32 %v3224, 16
        %v3311 = vrot.slane %v3309, 7
        %v3312 = vshll.u32 %v3224, 16
        %v3314 = vor.u32 %v3311, %v3312
        %v3315 = vsel %vm379, %v3307, %v3314
        %v3316 = vrot.slane %v3311, 4
        %v3318 = vshrl.u32 %v3225, 16
        %v3320 = vrot.slane %v3318, 7
        %v3321 = vshll.u32 %v3225, 16
        %v3323 = vor.u32 %v3320, %v3321
        %v3324 = vrot.slane %v3320, 4
        %v3326 = vshrl.u32 %v3226, 16
        %v3328 = vrot.slane %v3326, 7
        %v3329 = vshll.u32 %v3226, 16
        %v3331 = vor.u32 %v3328, %v3329
        %v3332 = vsel %vm379, %v3324, %v3331
        %v3333 = vrot.slane %v3328, 4
        %v3335 = vshrl.u32 %v3227, 16
        %v3337 = vrot.slane %v3335, 7
        %v3338 = vshll.u32 %v3227, 16
        %v3340 = vor.u32 %v3337, %v3338
        %v3341 = vrot.slane %v3337, 4
        %v3343 = vshrl.u32 %v3228, 16
        %v3345 = vrot.slane %v3343, 7
        %v3346 = vshll.u32 %v3228, 16
        %v3348 = vor.u32 %v3345, %v3346
        %v3349 = vsel %vm379, %v3341, %v3348
        %v3350 = vrot.slane %v3345, 4
        %v3352 = vshrl.u32 %v3229, 16
        %v3354 = vrot.slane %v3352, 7
        %v3355 = vshll.u32 %v3229, 16
        %v3357 = vor.u32 %v3354, %v3355
        %v3358 = vrot.slane %v3354, 4
        %v3360 = vshrl.u32 %v3230, 16
        %v3362 = vrot.slane %v3360, 7
        %v3363 = vshll.u32 %v3230, 16
        %v3365 = vor.u32 %v3362, %v3363
        %v3366 = vsel %vm379, %v3358, %v3365
        %v3367 = vrot.slane %v3362, 4
        %v3369 = vshrl.u32 %v3231, 16
        %v3371 = vrot.slane %v3369, 7
        %v3372 = vshll.u32 %v3231, 16
        %v3374 = vor.u32 %v3371, %v3372
        %v3375 = vrot.slane %v3371, 4
        %v3377 = vshrl.u32 %v3232, 16
        %v3379 = vrot.slane %v3377, 7
        %v3380 = vshll.u32 %v3232, 16
        %v3382 = vor.u32 %v3379, %v3380
        %v3383 = vsel %vm379, %v3375, %v3382
        %v3384 = vrot.slane %v3379, 4
        %v3386 = vshrl.u32 %v3233, 16
        %v3388 = vrot.slane %v3386, 7
        %v3389 = vshll.u32 %v3233, 16
        %v3391 = vor.u32 %v3388, %v3389
        %v3392 = vrot.slane %v3388, 4
        %v3394 = vshrl.u32 %v3234, 16
        %v3396 = vrot.slane %v3394, 7
        %v3397 = vshll.u32 %v3234, 16
        %v3399 = vor.u32 %v3396, %v3397
        %v3400 = vsel %vm379, %v3392, %v3399
        %v3401 = vrot.slane %v3396, 4
        %v3403 = vshrl.u32 %v3235, 16
        %v3405 = vrot.slane %v3403, 7
        %v3406 = vshll.u32 %v3235, 16
        %v3408 = vor.u32 %v3405, %v3406
        %v3409 = vrot.slane %v3405, 4
        %v3411 = vshrl.u32 %v3236, 16
        %v3413 = vrot.slane %v3411, 7
        %v3414 = vshll.u32 %v3236, 16
        %v3416 = vor.u32 %v3413, %v3414
        %v3417 = vsel %vm379, %v3409, %v3416
        %v3418 = vrot.slane %v3413, 4
        %v3420 = vshrl.u32 %v3237, 16
        %v3422 = vrot.slane %v3420, 7
        %v3423 = vshll.u32 %v3237, 16
        %v3425 = vor.u32 %v3422, %v3423
        %v3426 = vrot.slane %v3422, 4
        %v3428 = vshrl.u32 %v3238, 16
        %v3430 = vrot.slane %v3428, 7
        %v3431 = vshll.u32 %v3238, 16
        %v3433 = vor.u32 %v3430, %v3431
        %v3434 = vsel %vm379, %v3426, %v3433
        %v3435 = vrot.slane %v3430, 4
        %v3437 = vshrl.u32 %v3239, 16
        %v3439 = vrot.slane %v3437, 7
        %v3440 = vshll.u32 %v3239, 16
        %v3442 = vor.u32 %v3439, %v3440
        %v3443 = vrot.slane %v3439, 4
        %v3445 = vshrl.u32 %v3240, 16
        %v3447 = vrot.slane %v3445, 7
        %v3448 = vshll.u32 %v3240, 16
        %v3450 = vor.u32 %v3447, %v3448
        %v3451 = vsel %vm379, %v3443, %v3450
        %v3452 = vrot.slane %v3447, 4
        %v3454 = vshrl.u32 %v3241, 16
        %v3456 = vrot.slane %v3454, 7
        %v3457 = vshll.u32 %v3241, 16
        %v3459 = vor.u32 %v3456, %v3457
        %v3460 = vrot.slane %v3456, 4
        %v3462 = vshrl.u32 %v3242, 16
        %v3464 = vrot.slane %v3462, 7
        %v3465 = vshll.u32 %v3242, 16
        %v3467 = vor.u32 %v3464, %v3465
        %v3468 = vsel %vm379, %v3460, %v3467
        %v3469 = vrot.slane %v3464, 4
        %v3471 = vshrl.u32 %v3243, 16
        %v3473 = vrot.slane %v3471, 7
        %v3474 = vshll.u32 %v3243, 16
        %v3476 = vor.u32 %v3473, %v3474
        %v3477 = vrot.slane %v3473, 4
        %v3479 = vshrl.u32 %v3244, 16
        %v3481 = vrot.slane %v3479, 7
        %v3482 = vshll.u32 %v3244, 16
        %v3484 = vor.u32 %v3481, %v3482
        %v3485 = vsel %vm379, %v3477, %v3484
        %v3486 = vrot.slane %v3481, 4
        %v3488 = vshrl.u32 %v3245, 16
        %v3490 = vrot.slane %v3488, 7
        %v3491 = vshll.u32 %v3245, 16
        %v3493 = vor.u32 %v3490, %v3491
        %v3494 = vrot.slane %v3490, 4
        %v3496 = vshrl.u32 %v3246, 16
        %v3498 = vrot.slane %v3496, 7
        %v3499 = vshll.u32 %v3246, 16
        %v3501 = vor.u32 %v3498, %v3499
        %v3502 = vsel %vm379, %v3494, %v3501
        %v3503 = vrot.slane %v3498, 4
        %v3505 = vshrl.u32 %v3247, 16
        %v3507 = vrot.slane %v3505, 7
        %v3508 = vshll.u32 %v3247, 16
        %v3510 = vor.u32 %v3507, %v3508
        %v3511 = vrot.slane %v3507, 4
        %v3513 = vshrl.u32 %v3248, 16
        %v3515 = vrot.slane %v3513, 7
        %v3516 = vshll.u32 %v3248, 16
        %v3518 = vor.u32 %v3515, %v3516
        %v3519 = vsel %vm379, %v3511, %v3518
        %v3520 = vrot.slane %v3515, 4
        %s3569 = scalar_lea.vmem [#allocation3], 12
        %vm3570 = vcmask 125952
        %vm3571 = vmand %vm3570, %vm322
        %v3572 = vld [vmem:[%s3569] sm:$0xf]
        %v3573 = vsel %vm3571, %v3255, %v3572
        %3574 = vst [vmem:[%s3569] sm:$0xf] %v3573
        %3575 = vst.msk [vmem:[%s3569 + $0x4] sm:$0xf] %vm3033, %v3264
        %v3576 = vld [vmem:[%s3569 + $0x8] sm:$0x1]
        %v3577 = vsel %vm3043, %v3265, %v3576
        %3578 = vst [vmem:[%s3569 + $0x8] sm:$0x1] %v3577
        %v3579 = vld [vmem:[%s3569 + $0xc] sm:$0xf]
        %v3580 = vsel %vm3571, %v3272, %v3579
        %3581 = vst [vmem:[%s3569 + $0xc] sm:$0xf] %v3580
        %3582 = vst.msk [vmem:[%s3569 + $0x10] sm:$0xf] %vm3033, %v3281
        %v3583 = vld [vmem:[%s3569 + $0x14] sm:$0x1]
        %v3584 = vsel %vm3043, %v3282, %v3583
        %3585 = vst [vmem:[%s3569 + $0x14] sm:$0x1] %v3584
        %v3586 = vld [vmem:[%s3569 + $0x18] sm:$0xf]
        %v3587 = vsel %vm3571, %v3289, %v3586
        %3588 = vst [vmem:[%s3569 + $0x18] sm:$0xf] %v3587
        %3589 = vst.msk [vmem:[%s3569 + $0x1c] sm:$0xf] %vm3033, %v3298
        %v3590 = vld [vmem:[%s3569 + $0x20] sm:$0x1]
        %v3591 = vsel %vm3043, %v3299, %v3590
        %3592 = vst [vmem:[%s3569 + $0x20] sm:$0x1] %v3591
        %v3593 = vld [vmem:[%s3569 + $0x24] sm:$0xf]
        %v3594 = vsel %vm3571, %v3306, %v3593
        %3595 = vst [vmem:[%s3569 + $0x24] sm:$0xf] %v3594
        %3596 = vst.msk [vmem:[%s3569 + $0x28] sm:$0xf] %vm3033, %v3315
        %v3597 = vld [vmem:[%s3569 + $0x2c] sm:$0x1]
        %v3598 = vsel %vm3043, %v3316, %v3597
        %3599 = vst [vmem:[%s3569 + $0x2c] sm:$0x1] %v3598
        %v3600 = vld [vmem:[%s3569 + $0x30] sm:$0xf]
        %v3601 = vsel %vm3571, %v3323, %v3600
        %3602 = vst [vmem:[%s3569 + $0x30] sm:$0xf] %v3601
        %3603 = vst.msk [vmem:[%s3569 + $0x34] sm:$0xf] %vm3033, %v3332
        %v3604 = vld [vmem:[%s3569 + $0x38] sm:$0x1]
        %v3605 = vsel %vm3043, %v3333, %v3604
        %3606 = vst [vmem:[%s3569 + $0x38] sm:$0x1] %v3605
        %v3607 = vld [vmem:[%s3569 + $0x3c] sm:$0xf]
        %v3608 = vsel %vm3571, %v3340, %v3607
        %3609 = vst [vmem:[%s3569 + $0x3c] sm:$0xf] %v3608
        %3610 = vst.msk [vmem:[%s3569 + $0x40] sm:$0xf] %vm3033, %v3349
        %v3611 = vld [vmem:[%s3569 + $0x44] sm:$0x1]
        %v3612 = vsel %vm3043, %v3350, %v3611
        %3613 = vst [vmem:[%s3569 + $0x44] sm:$0x1] %v3612
        %v3614 = vld [vmem:[%s3569 + $0x48] sm:$0xf]
        %v3615 = vsel %vm3571, %v3357, %v3614
        %3616 = vst [vmem:[%s3569 + $0x48] sm:$0xf] %v3615
        %3617 = vst.msk [vmem:[%s3569 + $0x4c] sm:$0xf] %vm3033, %v3366
        %v3618 = vld [vmem:[%s3569 + $0x50] sm:$0x1]
        %v3619 = vsel %vm3043, %v3367, %v3618
        %3620 = vst [vmem:[%s3569 + $0x50] sm:$0x1] %v3619
        %v3621 = vld [vmem:[%s3569 + $0x54] sm:$0xf]
        %v3622 = vsel %vm3571, %v3374, %v3621
        %3623 = vst [vmem:[%s3569 + $0x54] sm:$0xf] %v3622
        %3624 = vst.msk [vmem:[%s3569 + $0x58] sm:$0xf] %vm3033, %v3383
        %v3625 = vld [vmem:[%s3569 + $0x5c] sm:$0x1]
        %v3626 = vsel %vm3043, %v3384, %v3625
        %3627 = vst [vmem:[%s3569 + $0x5c] sm:$0x1] %v3626
        %v3628 = vld [vmem:[%s3569 + $0x60] sm:$0xf]
        %v3629 = vsel %vm3571, %v3391, %v3628
        %3630 = vst [vmem:[%s3569 + $0x60] sm:$0xf] %v3629
        %3631 = vst.msk [vmem:[%s3569 + $0x64] sm:$0xf] %vm3033, %v3400
        %v3632 = vld [vmem:[%s3569 + $0x68] sm:$0x1]
        %v3633 = vsel %vm3043, %v3401, %v3632
        %3634 = vst [vmem:[%s3569 + $0x68] sm:$0x1] %v3633
        %v3635 = vld [vmem:[%s3569 + $0x6c] sm:$0xf]
        %v3636 = vsel %vm3571, %v3408, %v3635
        %3637 = vst [vmem:[%s3569 + $0x6c] sm:$0xf] %v3636
        %3638 = vst.msk [vmem:[%s3569 + $0x70] sm:$0xf] %vm3033, %v3417
        %v3639 = vld [vmem:[%s3569 + $0x74] sm:$0x1]
        %v3640 = vsel %vm3043, %v3418, %v3639
        %3641 = vst [vmem:[%s3569 + $0x74] sm:$0x1] %v3640
        %v3642 = vld [vmem:[%s3569 + $0x78] sm:$0xf]
        %v3643 = vsel %vm3571, %v3425, %v3642
        %3644 = vst [vmem:[%s3569 + $0x78] sm:$0xf] %v3643
        %3645 = vst.msk [vmem:[%s3569 + $0x7c] sm:$0xf] %vm3033, %v3434
        %v3646 = vld [vmem:[%s3569 + $0x80] sm:$0x1]
        %v3647 = vsel %vm3043, %v3435, %v3646
        %3648 = vst [vmem:[%s3569 + $0x80] sm:$0x1] %v3647
        %v3649 = vld [vmem:[%s3569 + $0x84] sm:$0xf]
        %v3650 = vsel %vm3571, %v3442, %v3649
        %3651 = vst [vmem:[%s3569 + $0x84] sm:$0xf] %v3650
        %3652 = vst.msk [vmem:[%s3569 + $0x88] sm:$0xf] %vm3033, %v3451
        %v3653 = vld [vmem:[%s3569 + $0x8c] sm:$0x1]
        %v3654 = vsel %vm3043, %v3452, %v3653
        %3655 = vst [vmem:[%s3569 + $0x8c] sm:$0x1] %v3654
        %v3656 = vld [vmem:[%s3569 + $0x90] sm:$0xf]
        %v3657 = vsel %vm3571, %v3459, %v3656
        %3658 = vst [vmem:[%s3569 + $0x90] sm:$0xf] %v3657
        %3659 = vst.msk [vmem:[%s3569 + $0x94] sm:$0xf] %vm3033, %v3468
        %v3660 = vld [vmem:[%s3569 + $0x98] sm:$0x1]
        %v3661 = vsel %vm3043, %v3469, %v3660
        %3662 = vst [vmem:[%s3569 + $0x98] sm:$0x1] %v3661
        %v3663 = vld [vmem:[%s3569 + $0x9c] sm:$0xf]
        %v3664 = vsel %vm3571, %v3476, %v3663
        %3665 = vst [vmem:[%s3569 + $0x9c] sm:$0xf] %v3664
        %3666 = vst.msk [vmem:[%s3569 + $0xa0] sm:$0xf] %vm3033, %v3485
        %v3667 = vld [vmem:[%s3569 + $0xa4] sm:$0x1]
        %v3668 = vsel %vm3043, %v3486, %v3667
        %3669 = vst [vmem:[%s3569 + $0xa4] sm:$0x1] %v3668
        %v3670 = vld [vmem:[%s3569 + $0xa8] sm:$0xf]
        %v3671 = vsel %vm3571, %v3493, %v3670
        %3672 = vst [vmem:[%s3569 + $0xa8] sm:$0xf] %v3671
        %3673 = vst.msk [vmem:[%s3569 + $0xac] sm:$0xf] %vm3033, %v3502
        %v3674 = vld [vmem:[%s3569 + $0xb0] sm:$0x1]
        %v3675 = vsel %vm3043, %v3503, %v3674
        %3676 = vst [vmem:[%s3569 + $0xb0] sm:$0x1] %v3675
        %v3677 = vld [vmem:[%s3569 + $0xb4] sm:$0xf]
        %v3678 = vsel %vm3571, %v3510, %v3677
        %3679 = vst [vmem:[%s3569 + $0xb4] sm:$0xf] %v3678
        %3680 = vst.msk [vmem:[%s3569 + $0xb8] sm:$0xf] %vm3033, %v3519
        %v3681 = vld [vmem:[%s3569 + $0xbc] sm:$0x1]
        %v3682 = vsel %vm3043, %v3520, %v3681
        %3683 = vst [vmem:[%s3569 + $0xbc] sm:$0x1] %v3682
        %v3684 = vld [vmem:[#allocation3] sm:$0xf]
        %v3685 = vld [vmem:[#allocation3 + $0x4] sm:$0xf]
        %v3686 = vld [vmem:[#allocation3 + $0xc] sm:$0xf]
        %v3687 = vld [vmem:[#allocation3 + $0x10] sm:$0xf]
        %v3688 = vld [vmem:[#allocation3 + $0x18] sm:$0xf]
        %v3689 = vld [vmem:[#allocation3 + $0x1c] sm:$0xf]
        %v3690 = vld [vmem:[#allocation3 + $0x24] sm:$0xf]
        %v3691 = vld [vmem:[#allocation3 + $0x28] sm:$0xf]
        %v3692 = vld [vmem:[#allocation3 + $0x30] sm:$0xf]
        %v3693 = vld [vmem:[#allocation3 + $0x34] sm:$0xf]
        %v3694 = vld [vmem:[#allocation3 + $0x3c] sm:$0xf]
        %v3695 = vld [vmem:[#allocation3 + $0x40] sm:$0xf]
        %v3696 = vld [vmem:[#allocation3 + $0x48] sm:$0xf]
        %v3697 = vld [vmem:[#allocation3 + $0x4c] sm:$0xf]
        %v3698 = vld [vmem:[#allocation3 + $0x54] sm:$0xf]
        %v3699 = vld [vmem:[#allocation3 + $0x58] sm:$0xf]
        %v3700 = vld [vmem:[#allocation3 + $0x60] sm:$0xf]
        %v3701 = vld [vmem:[#allocation3 + $0x64] sm:$0xf]
        %v3702 = vld [vmem:[#allocation3 + $0x6c] sm:$0xf]
        %v3703 = vld [vmem:[#allocation3 + $0x70] sm:$0xf]
        %v3704 = vld [vmem:[#allocation3 + $0x78] sm:$0xf]
        %v3705 = vld [vmem:[#allocation3 + $0x7c] sm:$0xf]
        %v3706 = vld [vmem:[#allocation3 + $0x84] sm:$0xf]
        %v3707 = vld [vmem:[#allocation3 + $0x88] sm:$0xf]
        %v3708 = vld [vmem:[#allocation3 + $0x90] sm:$0xf]
        %v3709 = vld [vmem:[#allocation3 + $0x94] sm:$0xf]
        %v3710 = vld [vmem:[#allocation3 + $0x9c] sm:$0xf]
        %v3711 = vld [vmem:[#allocation3 + $0xa0] sm:$0xf]
        %v3712 = vld [vmem:[#allocation3 + $0xa8] sm:$0xf]
        %v3713 = vld [vmem:[#allocation3 + $0xac] sm:$0xf]
        %v3714 = vld [vmem:[#allocation3 + $0xb4] sm:$0xf]
        %v3715 = vld [vmem:[#allocation3 + $0xb8] sm:$0xf]
        %v3716 = vld [vmem:[#allocation3 + $0x8] sm:$0x1]
        %v3717 = vld [vmem:[#allocation3 + $0x14] sm:$0x1]
        %v3718 = vld [vmem:[#allocation3 + $0x20] sm:$0x1]
        %v3719 = vld [vmem:[#allocation3 + $0x2c] sm:$0x1]
        %v3720 = vld [vmem:[#allocation3 + $0x38] sm:$0x1]
        %v3721 = vld [vmem:[#allocation3 + $0x44] sm:$0x1]
        %v3722 = vld [vmem:[#allocation3 + $0x50] sm:$0x1]
        %v3723 = vld [vmem:[#allocation3 + $0x5c] sm:$0x1]
        %v3724 = vld [vmem:[#allocation3 + $0x68] sm:$0x1]
        %v3725 = vld [vmem:[#allocation3 + $0x74] sm:$0x1]
        %v3726 = vld [vmem:[#allocation3 + $0x80] sm:$0x1]
        %v3727 = vld [vmem:[#allocation3 + $0x8c] sm:$0x1]
        %v3728 = vld [vmem:[#allocation3 + $0x98] sm:$0x1]
        %v3729 = vld [vmem:[#allocation3 + $0xa4] sm:$0x1]
        %v3730 = vld [vmem:[#allocation3 + $0xb0] sm:$0x1]
        %v3731 = vld [vmem:[#allocation3 + $0xbc] sm:$0x1]
        %v3732 = vld [vmem:[#allocation3] sm:$0xe]
        %v3733 = vld [vmem:[#allocation3 + $0xc] sm:$0xe]
        %v3734 = vld [vmem:[#allocation3 + $0x18] sm:$0xe]
        %v3735 = vld [vmem:[#allocation3 + $0x24] sm:$0xe]
        %v3736 = vld [vmem:[#allocation3 + $0x30] sm:$0xe]
        %v3737 = vld [vmem:[#allocation3 + $0x3c] sm:$0xe]
        %v3738 = vld [vmem:[#allocation3 + $0x48] sm:$0xe]
        %v3739 = vld [vmem:[#allocation3 + $0x54] sm:$0xe]
        %v3740 = vld [vmem:[#allocation3 + $0x60] sm:$0xe]
        %v3741 = vld [vmem:[#allocation3 + $0x6c] sm:$0xe]
        %v3742 = vld [vmem:[#allocation3 + $0x78] sm:$0xe]
        %v3743 = vld [vmem:[#allocation3 + $0x84] sm:$0xe]
        %v3744 = vld [vmem:[#allocation3 + $0x90] sm:$0xe]
        %v3745 = vld [vmem:[#allocation3 + $0x9c] sm:$0xe]
        %v3746 = vld [vmem:[#allocation3 + $0xa8] sm:$0xe]
        %v3747 = vld [vmem:[#allocation3 + $0xb4] sm:$0xe]
        %v3748 = vld [vmem:[%s3569] sm:$0xf]
        %v3749 = vld [vmem:[%s3569 + $0x4] sm:$0xf]
        %v3750 = vld [vmem:[%s3569 + $0xc] sm:$0xf]
        %v3751 = vld [vmem:[%s3569 + $0x10] sm:$0xf]
        %v3752 = vld [vmem:[%s3569 + $0x18] sm:$0xf]
        %v3753 = vld [vmem:[%s3569 + $0x1c] sm:$0xf]
        %v3754 = vld [vmem:[%s3569 + $0x24] sm:$0xf]
        %v3755 = vld [vmem:[%s3569 + $0x28] sm:$0xf]
        %v3756 = vld [vmem:[%s3569 + $0x30] sm:$0xf]
        %v3757 = vld [vmem:[%s3569 + $0x34] sm:$0xf]
        %v3758 = vld [vmem:[%s3569 + $0x3c] sm:$0xf]
        %v3759 = vld [vmem:[%s3569 + $0x40] sm:$0xf]
        %v3760 = vld [vmem:[%s3569 + $0x48] sm:$0xf]
        %v3761 = vld [vmem:[%s3569 + $0x4c] sm:$0xf]
        %v3762 = vld [vmem:[%s3569 + $0x54] sm:$0xf]
        %v3763 = vld [vmem:[%s3569 + $0x58] sm:$0xf]
        %v3764 = vld [vmem:[%s3569 + $0x60] sm:$0xf]
        %v3765 = vld [vmem:[%s3569 + $0x64] sm:$0xf]
        %v3766 = vld [vmem:[%s3569 + $0x6c] sm:$0xf]
        %v3767 = vld [vmem:[%s3569 + $0x70] sm:$0xf]
        %v3768 = vld [vmem:[%s3569 + $0x78] sm:$0xf]
        %v3769 = vld [vmem:[%s3569 + $0x7c] sm:$0xf]
        %v3770 = vld [vmem:[%s3569 + $0x84] sm:$0xf]
        %v3771 = vld [vmem:[%s3569 + $0x88] sm:$0xf]
        %v3772 = vld [vmem:[%s3569 + $0x90] sm:$0xf]
        %v3773 = vld [vmem:[%s3569 + $0x94] sm:$0xf]
        %v3774 = vld [vmem:[%s3569 + $0x9c] sm:$0xf]
        %v3775 = vld [vmem:[%s3569 + $0xa0] sm:$0xf]
        %v3776 = vld [vmem:[%s3569 + $0xa8] sm:$0xf]
        %v3777 = vld [vmem:[%s3569 + $0xac] sm:$0xf]
        %v3778 = vld [vmem:[%s3569 + $0xb4] sm:$0xf]
        %v3779 = vld [vmem:[%s3569 + $0xb8] sm:$0xf]
        %v3780 = vld [vmem:[%s3569 + $0x8] sm:$0x1]
        %v3781 = vld [vmem:[%s3569 + $0x14] sm:$0x1]
        %v3782 = vld [vmem:[%s3569 + $0x20] sm:$0x1]
        %v3783 = vld [vmem:[%s3569 + $0x2c] sm:$0x1]
        %v3784 = vld [vmem:[%s3569 + $0x38] sm:$0x1]
        %v3785 = vld [vmem:[%s3569 + $0x44] sm:$0x1]
        %v3786 = vld [vmem:[%s3569 + $0x50] sm:$0x1]
        %v3787 = vld [vmem:[%s3569 + $0x5c] sm:$0x1]
        %v3788 = vld [vmem:[%s3569 + $0x68] sm:$0x1]
        %v3789 = vld [vmem:[%s3569 + $0x74] sm:$0x1]
        %v3790 = vld [vmem:[%s3569 + $0x80] sm:$0x1]
        %v3791 = vld [vmem:[%s3569 + $0x8c] sm:$0x1]
        %v3792 = vld [vmem:[%s3569 + $0x98] sm:$0x1]
        %v3793 = vld [vmem:[%s3569 + $0xa4] sm:$0x1]
        %v3794 = vld [vmem:[%s3569 + $0xb0] sm:$0x1]
        %v3795 = vld [vmem:[%s3569 + $0xbc] sm:$0x1]
        %v3796 = vld [vmem:[%s3569] sm:$0xe]
        %v3797 = vld [vmem:[%s3569 + $0xc] sm:$0xe]
        %v3798 = vld [vmem:[%s3569 + $0x18] sm:$0xe]
        %v3799 = vld [vmem:[%s3569 + $0x24] sm:$0xe]
        %v3800 = vld [vmem:[%s3569 + $0x30] sm:$0xe]
        %v3801 = vld [vmem:[%s3569 + $0x3c] sm:$0xe]
        %v3802 = vld [vmem:[%s3569 + $0x48] sm:$0xe]
        %v3803 = vld [vmem:[%s3569 + $0x54] sm:$0xe]
        %v3804 = vld [vmem:[%s3569 + $0x60] sm:$0xe]
        %v3805 = vld [vmem:[%s3569 + $0x6c] sm:$0xe]
        %v3806 = vld [vmem:[%s3569 + $0x78] sm:$0xe]
        %v3807 = vld [vmem:[%s3569 + $0x84] sm:$0xe]
        %v3808 = vld [vmem:[%s3569 + $0x90] sm:$0xe]
        %v3809 = vld [vmem:[%s3569 + $0x9c] sm:$0xe]
        %v3810 = vld [vmem:[%s3569 + $0xa8] sm:$0xe]
        %v3811 = vld [vmem:[%s3569 + $0xb4] sm:$0xe]
        %s3812 = scalar_lea.vmem [#allocation3], 24
        %v3813 = vld [vmem:[%s3812] sm:$0xf]
        %v3814 = vld [vmem:[%s3812 + $0x4] sm:$0xf]
        %v3815 = vld [vmem:[%s3812 + $0xc] sm:$0xf]
        %v3816 = vld [vmem:[%s3812 + $0x10] sm:$0xf]
        %v3817 = vld [vmem:[%s3812 + $0x18] sm:$0xf]
        %v3818 = vld [vmem:[%s3812 + $0x1c] sm:$0xf]
        %v3819 = vld [vmem:[%s3812 + $0x24] sm:$0xf]
        %v3820 = vld [vmem:[%s3812 + $0x28] sm:$0xf]
        %v3821 = vld [vmem:[%s3812 + $0x30] sm:$0xf]
        %v3822 = vld [vmem:[%s3812 + $0x34] sm:$0xf]
        %v3823 = vld [vmem:[%s3812 + $0x3c] sm:$0xf]
        %v3824 = vld [vmem:[%s3812 + $0x40] sm:$0xf]
        %v3825 = vld [vmem:[%s3812 + $0x48] sm:$0xf]
        %v3826 = vld [vmem:[%s3812 + $0x4c] sm:$0xf]
        %v3827 = vld [vmem:[%s3812 + $0x54] sm:$0xf]
        %v3828 = vld [vmem:[%s3812 + $0x58] sm:$0xf]
        %v3829 = vld [vmem:[%s3812 + $0x60] sm:$0xf]
        %v3830 = vld [vmem:[%s3812 + $0x64] sm:$0xf]
        %v3831 = vld [vmem:[%s3812 + $0x6c] sm:$0xf]
        %v3832 = vld [vmem:[%s3812 + $0x70] sm:$0xf]
        %v3833 = vld [vmem:[%s3812 + $0x78] sm:$0xf]
        %v3834 = vld [vmem:[%s3812 + $0x7c] sm:$0xf]
        %v3835 = vld [vmem:[%s3812 + $0x84] sm:$0xf]
        %v3836 = vld [vmem:[%s3812 + $0x88] sm:$0xf]
        %v3837 = vld [vmem:[%s3812 + $0x90] sm:$0xf]
        %v3838 = vld [vmem:[%s3812 + $0x94] sm:$0xf]
        %v3839 = vld [vmem:[%s3812 + $0x9c] sm:$0xf]
        %v3840 = vld [vmem:[%s3812 + $0xa0] sm:$0xf]
        %v3841 = vld [vmem:[%s3812 + $0xa8] sm:$0xf]
        %v3842 = vld [vmem:[%s3812 + $0xac] sm:$0xf]
        %v3843 = vld [vmem:[%s3812 + $0xb4] sm:$0xf]
        %v3844 = vld [vmem:[%s3812 + $0xb8] sm:$0xf]
        %v3845 = vld [vmem:[%s3812 + $0x8] sm:$0x1]
        %v3846 = vld [vmem:[%s3812 + $0x14] sm:$0x1]
        %v3847 = vld [vmem:[%s3812 + $0x20] sm:$0x1]
        %v3848 = vld [vmem:[%s3812 + $0x2c] sm:$0x1]
        %v3849 = vld [vmem:[%s3812 + $0x38] sm:$0x1]
        %v3850 = vld [vmem:[%s3812 + $0x44] sm:$0x1]
        %v3851 = vld [vmem:[%s3812 + $0x50] sm:$0x1]
        %v3852 = vld [vmem:[%s3812 + $0x5c] sm:$0x1]
        %v3853 = vld [vmem:[%s3812 + $0x68] sm:$0x1]
        %v3854 = vld [vmem:[%s3812 + $0x74] sm:$0x1]
        %v3855 = vld [vmem:[%s3812 + $0x80] sm:$0x1]
        %v3856 = vld [vmem:[%s3812 + $0x8c] sm:$0x1]
        %v3857 = vld [vmem:[%s3812 + $0x98] sm:$0x1]
        %v3858 = vld [vmem:[%s3812 + $0xa4] sm:$0x1]
        %v3859 = vld [vmem:[%s3812 + $0xb0] sm:$0x1]
        %v3860 = vld [vmem:[%s3812 + $0xbc] sm:$0x1]
        %v3861 = vld [vmem:[%s3812] sm:$0xe]
        %v3862 = vld [vmem:[%s3812 + $0xc] sm:$0xe]
        %v3863 = vld [vmem:[%s3812 + $0x18] sm:$0xe]
        %v3864 = vld [vmem:[%s3812 + $0x24] sm:$0xe]
        %v3865 = vld [vmem:[%s3812 + $0x30] sm:$0xe]
        %v3866 = vld [vmem:[%s3812 + $0x3c] sm:$0xe]
        %v3867 = vld [vmem:[%s3812 + $0x48] sm:$0xe]
        %v3868 = vld [vmem:[%s3812 + $0x54] sm:$0xe]
        %v3869 = vld [vmem:[%s3812 + $0x60] sm:$0xe]
        %v3870 = vld [vmem:[%s3812 + $0x6c] sm:$0xe]
        %v3871 = vld [vmem:[%s3812 + $0x78] sm:$0xe]
        %v3872 = vld [vmem:[%s3812 + $0x84] sm:$0xe]
        %v3873 = vld [vmem:[%s3812 + $0x90] sm:$0xe]
        %v3874 = vld [vmem:[%s3812 + $0x9c] sm:$0xe]
        %v3875 = vld [vmem:[%s3812 + $0xa8] sm:$0xe]
        %v3876 = vld [vmem:[%s3812 + $0xb4] sm:$0xe]
        %v3909 = vunpack.c.l.b16 %v3684
        %v3910 = vunpack.c.l.b16 %v3685
        %v3911 = vunpack.c.l.b16 %v3686
        %v3912 = vunpack.c.l.b16 %v3687
        %v3913 = vunpack.c.l.b16 %v3688
        %v3914 = vunpack.c.l.b16 %v3689
        %v3915 = vunpack.c.l.b16 %v3690
        %v3916 = vunpack.c.l.b16 %v3691
        %v3917 = vunpack.c.l.b16 %v3692
        %v3918 = vunpack.c.l.b16 %v3693
        %v3919 = vunpack.c.l.b16 %v3694
        %v3920 = vunpack.c.l.b16 %v3695
        %v3921 = vunpack.c.l.b16 %v3696
        %v3922 = vunpack.c.l.b16 %v3697
        %v3923 = vunpack.c.l.b16 %v3698
        %v3924 = vunpack.c.l.b16 %v3699
        %v3925 = vunpack.c.l.b16 %v3700
        %v3926 = vunpack.c.l.b16 %v3701
        %v3927 = vunpack.c.l.b16 %v3702
        %v3928 = vunpack.c.l.b16 %v3703
        %v3929 = vunpack.c.l.b16 %v3704
        %v3930 = vunpack.c.l.b16 %v3705
        %v3931 = vunpack.c.l.b16 %v3706
        %v3932 = vunpack.c.l.b16 %v3707
        %v3933 = vunpack.c.l.b16 %v3708
        %v3934 = vunpack.c.l.b16 %v3709
        %v3935 = vunpack.c.l.b16 %v3710
        %v3936 = vunpack.c.l.b16 %v3711
        %v3937 = vunpack.c.l.b16 %v3712
        %v3938 = vunpack.c.l.b16 %v3713
        %v3939 = vunpack.c.l.b16 %v3714
        %v3940 = vunpack.c.l.b16 %v3715
        %v3941 = vpack.c.b16 %v3910, %v3909
        %v3942 = vpack.c.b16 %v3912, %v3911
        %v3943 = vpack.c.b16 %v3914, %v3913
        %v3944 = vpack.c.b16 %v3916, %v3915
        %v3945 = vpack.c.b16 %v3918, %v3917
        %v3946 = vpack.c.b16 %v3920, %v3919
        %v3947 = vpack.c.b16 %v3922, %v3921
        %v3948 = vpack.c.b16 %v3924, %v3923
        %v3949 = vpack.c.b16 %v3926, %v3925
        %v3950 = vpack.c.b16 %v3928, %v3927
        %v3951 = vpack.c.b16 %v3930, %v3929
        %v3952 = vpack.c.b16 %v3932, %v3931
        %v3953 = vpack.c.b16 %v3934, %v3933
        %v3954 = vpack.c.b16 %v3936, %v3935
        %v3955 = vpack.c.b16 %v3938, %v3937
        %v3956 = vpack.c.b16 %v3940, %v3939
        %v3973 = vunpack.c.l.b16 %v3716
        %v3974 = vunpack.c.l.b16 %v3717
        %v3975 = vunpack.c.l.b16 %v3718
        %v3976 = vunpack.c.l.b16 %v3719
        %v3977 = vunpack.c.l.b16 %v3720
        %v3978 = vunpack.c.l.b16 %v3721
        %v3979 = vunpack.c.l.b16 %v3722
        %v3980 = vunpack.c.l.b16 %v3723
        %v3981 = vunpack.c.l.b16 %v3724
        %v3982 = vunpack.c.l.b16 %v3725
        %v3983 = vunpack.c.l.b16 %v3726
        %v3984 = vunpack.c.l.b16 %v3727
        %v3985 = vunpack.c.l.b16 %v3728
        %v3986 = vunpack.c.l.b16 %v3729
        %v3987 = vunpack.c.l.b16 %v3730
        %v3988 = vunpack.c.l.b16 %v3731
        %v3989 = vpack.c.b16 %v3973, %v3973
        %v3990 = vpack.c.b16 %v3974, %v3974
        %v3991 = vpack.c.b16 %v3975, %v3975
        %v3992 = vpack.c.b16 %v3976, %v3976
        %v3993 = vpack.c.b16 %v3977, %v3977
        %v3994 = vpack.c.b16 %v3978, %v3978
        %v3995 = vpack.c.b16 %v3979, %v3979
        %v3996 = vpack.c.b16 %v3980, %v3980
        %v3997 = vpack.c.b16 %v3981, %v3981
        %v3998 = vpack.c.b16 %v3982, %v3982
        %v3999 = vpack.c.b16 %v3983, %v3983
        %v4000 = vpack.c.b16 %v3984, %v3984
        %v4001 = vpack.c.b16 %v3985, %v3985
        %v4002 = vpack.c.b16 %v3986, %v3986
        %v4003 = vpack.c.b16 %v3987, %v3987
        %v4004 = vpack.c.b16 %v3988, %v3988
        %v4006 = vshrl.u32 %v3941, 16
        %v4008 = vshll.u32 %v3941, 16
        %v4010 = vrot.slane %v4008, 1
        %v4011 = vor.u32 %v4006, %v4010
        %v4013 = vshll.u32 %v3989, 16
        %v4015 = vrot.slane %v4013, 1
        %v4016 = vsel %vm1136, %v4011, %v4015
        %v4018 = vshrl.u32 %v3942, 16
        %v4020 = vshll.u32 %v3942, 16
        %v4022 = vrot.slane %v4020, 1
        %v4023 = vor.u32 %v4018, %v4022
        %v4025 = vshll.u32 %v3990, 16
        %v4027 = vrot.slane %v4025, 1
        %v4028 = vsel %vm1136, %v4023, %v4027
        %v4030 = vshrl.u32 %v3943, 16
        %v4032 = vshll.u32 %v3943, 16
        %v4034 = vrot.slane %v4032, 1
        %v4035 = vor.u32 %v4030, %v4034
        %v4037 = vshll.u32 %v3991, 16
        %v4039 = vrot.slane %v4037, 1
        %v4040 = vsel %vm1136, %v4035, %v4039
        %v4042 = vshrl.u32 %v3944, 16
        %v4044 = vshll.u32 %v3944, 16
        %v4046 = vrot.slane %v4044, 1
        %v4047 = vor.u32 %v4042, %v4046
        %v4049 = vshll.u32 %v3992, 16
        %v4051 = vrot.slane %v4049, 1
        %v4052 = vsel %vm1136, %v4047, %v4051
        %v4054 = vshrl.u32 %v3945, 16
        %v4056 = vshll.u32 %v3945, 16
        %v4058 = vrot.slane %v4056, 1
        %v4059 = vor.u32 %v4054, %v4058
        %v4061 = vshll.u32 %v3993, 16
        %v4063 = vrot.slane %v4061, 1
        %v4064 = vsel %vm1136, %v4059, %v4063
        %v4066 = vshrl.u32 %v3946, 16
        %v4068 = vshll.u32 %v3946, 16
        %v4070 = vrot.slane %v4068, 1
        %v4071 = vor.u32 %v4066, %v4070
        %v4073 = vshll.u32 %v3994, 16
        %v4075 = vrot.slane %v4073, 1
        %v4076 = vsel %vm1136, %v4071, %v4075
        %v4078 = vshrl.u32 %v3947, 16
        %v4080 = vshll.u32 %v3947, 16
        %v4082 = vrot.slane %v4080, 1
        %v4083 = vor.u32 %v4078, %v4082
        %v4085 = vshll.u32 %v3995, 16
        %v4087 = vrot.slane %v4085, 1
        %v4088 = vsel %vm1136, %v4083, %v4087
        %v4090 = vshrl.u32 %v3948, 16
        %v4092 = vshll.u32 %v3948, 16
        %v4094 = vrot.slane %v4092, 1
        %v4095 = vor.u32 %v4090, %v4094
        %v4097 = vshll.u32 %v3996, 16
        %v4099 = vrot.slane %v4097, 1
        %v4100 = vsel %vm1136, %v4095, %v4099
        %v4102 = vshrl.u32 %v3949, 16
        %v4104 = vshll.u32 %v3949, 16
        %v4106 = vrot.slane %v4104, 1
        %v4107 = vor.u32 %v4102, %v4106
        %v4109 = vshll.u32 %v3997, 16
        %v4111 = vrot.slane %v4109, 1
        %v4112 = vsel %vm1136, %v4107, %v4111
        %v4114 = vshrl.u32 %v3950, 16
        %v4116 = vshll.u32 %v3950, 16
        %v4118 = vrot.slane %v4116, 1
        %v4119 = vor.u32 %v4114, %v4118
        %v4121 = vshll.u32 %v3998, 16
        %v4123 = vrot.slane %v4121, 1
        %v4124 = vsel %vm1136, %v4119, %v4123
        %v4126 = vshrl.u32 %v3951, 16
        %v4128 = vshll.u32 %v3951, 16
        %v4130 = vrot.slane %v4128, 1
        %v4131 = vor.u32 %v4126, %v4130
        %v4133 = vshll.u32 %v3999, 16
        %v4135 = vrot.slane %v4133, 1
        %v4136 = vsel %vm1136, %v4131, %v4135
        %v4138 = vshrl.u32 %v3952, 16
        %v4140 = vshll.u32 %v3952, 16
        %v4142 = vrot.slane %v4140, 1
        %v4143 = vor.u32 %v4138, %v4142
        %v4145 = vshll.u32 %v4000, 16
        %v4147 = vrot.slane %v4145, 1
        %v4148 = vsel %vm1136, %v4143, %v4147
        %v4150 = vshrl.u32 %v3953, 16
        %v4152 = vshll.u32 %v3953, 16
        %v4154 = vrot.slane %v4152, 1
        %v4155 = vor.u32 %v4150, %v4154
        %v4157 = vshll.u32 %v4001, 16
        %v4159 = vrot.slane %v4157, 1
        %v4160 = vsel %vm1136, %v4155, %v4159
        %v4162 = vshrl.u32 %v3954, 16
        %v4164 = vshll.u32 %v3954, 16
        %v4166 = vrot.slane %v4164, 1
        %v4167 = vor.u32 %v4162, %v4166
        %v4169 = vshll.u32 %v4002, 16
        %v4171 = vrot.slane %v4169, 1
        %v4172 = vsel %vm1136, %v4167, %v4171
        %v4174 = vshrl.u32 %v3955, 16
        %v4176 = vshll.u32 %v3955, 16
        %v4178 = vrot.slane %v4176, 1
        %v4179 = vor.u32 %v4174, %v4178
        %v4181 = vshll.u32 %v4003, 16
        %v4183 = vrot.slane %v4181, 1
        %v4184 = vsel %vm1136, %v4179, %v4183
        %v4186 = vshrl.u32 %v3956, 16
        %v4188 = vshll.u32 %v3956, 16
        %v4190 = vrot.slane %v4188, 1
        %v4191 = vor.u32 %v4186, %v4190
        %v4193 = vshll.u32 %v4004, 16
        %v4195 = vrot.slane %v4193, 1
        %v4196 = vsel %vm1136, %v4191, %v4195
        %4197 = vrot.lane.b32.xlu0 %v4016, 16
        %v4198 = vpop.permute.xlu0 %4197
        %4199 = vrot.lane.b32.xlu0 %v4028, 16
        %v4200 = vpop.permute.xlu0 %4199
        %4201 = vrot.lane.b32.xlu0 %v4040, 16
        %v4202 = vpop.permute.xlu0 %4201
        %4203 = vrot.lane.b32.xlu0 %v4052, 16
        %v4204 = vpop.permute.xlu0 %4203
        %4205 = vrot.lane.b32.xlu0 %v4064, 16
        %v4206 = vpop.permute.xlu0 %4205
        %4207 = vrot.lane.b32.xlu0 %v4076, 16
        %v4208 = vpop.permute.xlu0 %4207
        %4209 = vrot.lane.b32.xlu0 %v4088, 16
        %v4210 = vpop.permute.xlu0 %4209
        %4211 = vrot.lane.b32.xlu0 %v4100, 16
        %v4212 = vpop.permute.xlu0 %4211
        %4213 = vrot.lane.b32.xlu0 %v4112, 16
        %v4214 = vpop.permute.xlu0 %4213
        %4215 = vrot.lane.b32.xlu0 %v4124, 16
        %v4216 = vpop.permute.xlu0 %4215
        %4217 = vrot.lane.b32.xlu0 %v4136, 16
        %v4218 = vpop.permute.xlu0 %4217
        %4219 = vrot.lane.b32.xlu0 %v4148, 16
        %v4220 = vpop.permute.xlu0 %4219
        %4221 = vrot.lane.b32.xlu0 %v4160, 16
        %v4222 = vpop.permute.xlu0 %4221
        %4223 = vrot.lane.b32.xlu0 %v4172, 16
        %v4224 = vpop.permute.xlu0 %4223
        %4225 = vrot.lane.b32.xlu0 %v4184, 16
        %v4226 = vpop.permute.xlu0 %4225
        %4227 = vrot.lane.b32.xlu0 %v4196, 16
        %v4228 = vpop.permute.xlu0 %4227
        %v4245 = vunpack.c.l.b16 %v3732
        %v4246 = vunpack.c.l.b16 %v3733
        %v4247 = vunpack.c.l.b16 %v3734
        %v4248 = vunpack.c.l.b16 %v3735
        %v4249 = vunpack.c.l.b16 %v3736
        %v4250 = vunpack.c.l.b16 %v3737
        %v4251 = vunpack.c.l.b16 %v3738
        %v4252 = vunpack.c.l.b16 %v3739
        %v4253 = vunpack.c.l.b16 %v3740
        %v4254 = vunpack.c.l.b16 %v3741
        %v4255 = vunpack.c.l.b16 %v3742
        %v4256 = vunpack.c.l.b16 %v3743
        %v4257 = vunpack.c.l.b16 %v3744
        %v4258 = vunpack.c.l.b16 %v3745
        %v4259 = vunpack.c.l.b16 %v3746
        %v4260 = vunpack.c.l.b16 %v3747
        %v4261 = vpack.c.b16 %v3910, %v4245
        %v4262 = vpack.c.b16 %v3912, %v4246
        %v4263 = vpack.c.b16 %v3914, %v4247
        %v4264 = vpack.c.b16 %v3916, %v4248
        %v4265 = vpack.c.b16 %v3918, %v4249
        %v4266 = vpack.c.b16 %v3920, %v4250
        %v4267 = vpack.c.b16 %v3922, %v4251
        %v4268 = vpack.c.b16 %v3924, %v4252
        %v4269 = vpack.c.b16 %v3926, %v4253
        %v4270 = vpack.c.b16 %v3928, %v4254
        %v4271 = vpack.c.b16 %v3930, %v4255
        %v4272 = vpack.c.b16 %v3932, %v4256
        %v4273 = vpack.c.b16 %v3934, %v4257
        %v4274 = vpack.c.b16 %v3936, %v4258
        %v4275 = vpack.c.b16 %v3938, %v4259
        %v4276 = vpack.c.b16 %v3940, %v4260
        %v4277 = vrot.slane %v4261, 1
        %v4278 = vrot.slane %v3989, 1
        %v4279 = vsel %vm1409, %v4277, %v4278
        %v4280 = vrot.slane %v4262, 1
        %v4281 = vrot.slane %v3990, 1
        %v4282 = vsel %vm1409, %v4280, %v4281
        %v4283 = vrot.slane %v4263, 1
        %v4284 = vrot.slane %v3991, 1
        %v4285 = vsel %vm1409, %v4283, %v4284
        %v4286 = vrot.slane %v4264, 1
        %v4287 = vrot.slane %v3992, 1
        %v4288 = vsel %vm1409, %v4286, %v4287
        %v4289 = vrot.slane %v4265, 1
        %v4290 = vrot.slane %v3993, 1
        %v4291 = vsel %vm1409, %v4289, %v4290
        %v4292 = vrot.slane %v4266, 1
        %v4293 = vrot.slane %v3994, 1
        %v4294 = vsel %vm1409, %v4292, %v4293
        %v4295 = vrot.slane %v4267, 1
        %v4296 = vrot.slane %v3995, 1
        %v4297 = vsel %vm1409, %v4295, %v4296
        %v4298 = vrot.slane %v4268, 1
        %v4299 = vrot.slane %v3996, 1
        %v4300 = vsel %vm1409, %v4298, %v4299
        %v4301 = vrot.slane %v4269, 1
        %v4302 = vrot.slane %v3997, 1
        %v4303 = vsel %vm1409, %v4301, %v4302
        %v4304 = vrot.slane %v4270, 1
        %v4305 = vrot.slane %v3998, 1
        %v4306 = vsel %vm1409, %v4304, %v4305
        %v4307 = vrot.slane %v4271, 1
        %v4308 = vrot.slane %v3999, 1
        %v4309 = vsel %vm1409, %v4307, %v4308
        %v4310 = vrot.slane %v4272, 1
        %v4311 = vrot.slane %v4000, 1
        %v4312 = vsel %vm1409, %v4310, %v4311
        %v4313 = vrot.slane %v4273, 1
        %v4314 = vrot.slane %v4001, 1
        %v4315 = vsel %vm1409, %v4313, %v4314
        %v4316 = vrot.slane %v4274, 1
        %v4317 = vrot.slane %v4002, 1
        %v4318 = vsel %vm1409, %v4316, %v4317
        %v4319 = vrot.slane %v4275, 1
        %v4320 = vrot.slane %v4003, 1
        %v4321 = vsel %vm1409, %v4319, %v4320
        %v4322 = vrot.slane %v4276, 1
        %v4323 = vrot.slane %v4004, 1
        %v4324 = vsel %vm1409, %v4322, %v4323
        %4325 = vrot.lane.b32.xlu0 %v4279, 32
        %v4326 = vpop.permute.xlu0 %4325
        %4327 = vrot.lane.b32.xlu0 %v4282, 32
        %v4328 = vpop.permute.xlu0 %4327
        %4329 = vrot.lane.b32.xlu0 %v4285, 32
        %v4330 = vpop.permute.xlu0 %4329
        %4331 = vrot.lane.b32.xlu0 %v4288, 32
        %v4332 = vpop.permute.xlu0 %4331
        %4333 = vrot.lane.b32.xlu0 %v4291, 32
        %v4334 = vpop.permute.xlu0 %4333
        %4335 = vrot.lane.b32.xlu0 %v4294, 32
        %v4336 = vpop.permute.xlu0 %4335
        %4337 = vrot.lane.b32.xlu0 %v4297, 32
        %v4338 = vpop.permute.xlu0 %4337
        %4339 = vrot.lane.b32.xlu0 %v4300, 32
        %v4340 = vpop.permute.xlu0 %4339
        %4341 = vrot.lane.b32.xlu0 %v4303, 32
        %v4342 = vpop.permute.xlu0 %4341
        %4343 = vrot.lane.b32.xlu0 %v4306, 32
        %v4344 = vpop.permute.xlu0 %4343
        %4345 = vrot.lane.b32.xlu0 %v4309, 32
        %v4346 = vpop.permute.xlu0 %4345
        %4347 = vrot.lane.b32.xlu0 %v4312, 32
        %v4348 = vpop.permute.xlu0 %4347
        %4349 = vrot.lane.b32.xlu0 %v4315, 32
        %v4350 = vpop.permute.xlu0 %4349
        %4351 = vrot.lane.b32.xlu0 %v4318, 32
        %v4352 = vpop.permute.xlu0 %4351
        %4353 = vrot.lane.b32.xlu0 %v4321, 32
        %v4354 = vpop.permute.xlu0 %4353
        %4355 = vrot.lane.b32.xlu0 %v4324, 32
        %v4356 = vpop.permute.xlu0 %4355
        %v4389 = vunpack.c.l.b16 %v3748
        %v4390 = vunpack.c.l.b16 %v3749
        %v4391 = vunpack.c.l.b16 %v3750
        %v4392 = vunpack.c.l.b16 %v3751
        %v4393 = vunpack.c.l.b16 %v3752
        %v4394 = vunpack.c.l.b16 %v3753
        %v4395 = vunpack.c.l.b16 %v3754
        %v4396 = vunpack.c.l.b16 %v3755
        %v4397 = vunpack.c.l.b16 %v3756
        %v4398 = vunpack.c.l.b16 %v3757
        %v4399 = vunpack.c.l.b16 %v3758
        %v4400 = vunpack.c.l.b16 %v3759
        %v4401 = vunpack.c.l.b16 %v3760
        %v4402 = vunpack.c.l.b16 %v3761
        %v4403 = vunpack.c.l.b16 %v3762
        %v4404 = vunpack.c.l.b16 %v3763
        %v4405 = vunpack.c.l.b16 %v3764
        %v4406 = vunpack.c.l.b16 %v3765
        %v4407 = vunpack.c.l.b16 %v3766
        %v4408 = vunpack.c.l.b16 %v3767
        %v4409 = vunpack.c.l.b16 %v3768
        %v4410 = vunpack.c.l.b16 %v3769
        %v4411 = vunpack.c.l.b16 %v3770
        %v4412 = vunpack.c.l.b16 %v3771
        %v4413 = vunpack.c.l.b16 %v3772
        %v4414 = vunpack.c.l.b16 %v3773
        %v4415 = vunpack.c.l.b16 %v3774
        %v4416 = vunpack.c.l.b16 %v3775
        %v4417 = vunpack.c.l.b16 %v3776
        %v4418 = vunpack.c.l.b16 %v3777
        %v4419 = vunpack.c.l.b16 %v3778
        %v4420 = vunpack.c.l.b16 %v3779
        %v4421 = vpack.c.b16 %v4390, %v4389
        %v4422 = vpack.c.b16 %v4392, %v4391
        %v4423 = vpack.c.b16 %v4394, %v4393
        %v4424 = vpack.c.b16 %v4396, %v4395
        %v4425 = vpack.c.b16 %v4398, %v4397
        %v4426 = vpack.c.b16 %v4400, %v4399
        %v4427 = vpack.c.b16 %v4402, %v4401
        %v4428 = vpack.c.b16 %v4404, %v4403
        %v4429 = vpack.c.b16 %v4406, %v4405
        %v4430 = vpack.c.b16 %v4408, %v4407
        %v4431 = vpack.c.b16 %v4410, %v4409
        %v4432 = vpack.c.b16 %v4412, %v4411
        %v4433 = vpack.c.b16 %v4414, %v4413
        %v4434 = vpack.c.b16 %v4416, %v4415
        %v4435 = vpack.c.b16 %v4418, %v4417
        %v4436 = vpack.c.b16 %v4420, %v4419
        %4437 = vrot.lane.b32.xlu0 %v4421, 48
        %v4438 = vpop.permute.xlu0 %4437
        %4439 = vrot.lane.b32.xlu0 %v4422, 48
        %v4440 = vpop.permute.xlu0 %4439
        %4441 = vrot.lane.b32.xlu0 %v4423, 48
        %v4442 = vpop.permute.xlu0 %4441
        %4443 = vrot.lane.b32.xlu0 %v4424, 48
        %v4444 = vpop.permute.xlu0 %4443
        %4445 = vrot.lane.b32.xlu0 %v4425, 48
        %v4446 = vpop.permute.xlu0 %4445
        %4447 = vrot.lane.b32.xlu0 %v4426, 48
        %v4448 = vpop.permute.xlu0 %4447
        %4449 = vrot.lane.b32.xlu0 %v4427, 48
        %v4450 = vpop.permute.xlu0 %4449
        %4451 = vrot.lane.b32.xlu0 %v4428, 48
        %v4452 = vpop.permute.xlu0 %4451
        %4453 = vrot.lane.b32.xlu0 %v4429, 48
        %v4454 = vpop.permute.xlu0 %4453
        %4455 = vrot.lane.b32.xlu0 %v4430, 48
        %v4456 = vpop.permute.xlu0 %4455
        %4457 = vrot.lane.b32.xlu0 %v4431, 48
        %v4458 = vpop.permute.xlu0 %4457
        %4459 = vrot.lane.b32.xlu0 %v4432, 48
        %v4460 = vpop.permute.xlu0 %4459
        %4461 = vrot.lane.b32.xlu0 %v4433, 48
        %v4462 = vpop.permute.xlu0 %4461
        %4463 = vrot.lane.b32.xlu0 %v4434, 48
        %v4464 = vpop.permute.xlu0 %4463
        %4465 = vrot.lane.b32.xlu0 %v4435, 48
        %v4466 = vpop.permute.xlu0 %4465
        %4467 = vrot.lane.b32.xlu0 %v4436, 48
        %v4468 = vpop.permute.xlu0 %4467
        %v4485 = vunpack.c.l.b16 %v3780
        %v4486 = vunpack.c.l.b16 %v3781
        %v4487 = vunpack.c.l.b16 %v3782
        %v4488 = vunpack.c.l.b16 %v3783
        %v4489 = vunpack.c.l.b16 %v3784
        %v4490 = vunpack.c.l.b16 %v3785
        %v4491 = vunpack.c.l.b16 %v3786
        %v4492 = vunpack.c.l.b16 %v3787
        %v4493 = vunpack.c.l.b16 %v3788
        %v4494 = vunpack.c.l.b16 %v3789
        %v4495 = vunpack.c.l.b16 %v3790
        %v4496 = vunpack.c.l.b16 %v3791
        %v4497 = vunpack.c.l.b16 %v3792
        %v4498 = vunpack.c.l.b16 %v3793
        %v4499 = vunpack.c.l.b16 %v3794
        %v4500 = vunpack.c.l.b16 %v3795
        %v4501 = vpack.c.b16 %v4485, %v4485
        %v4502 = vpack.c.b16 %v4486, %v4486
        %v4503 = vpack.c.b16 %v4487, %v4487
        %v4504 = vpack.c.b16 %v4488, %v4488
        %v4505 = vpack.c.b16 %v4489, %v4489
        %v4506 = vpack.c.b16 %v4490, %v4490
        %v4507 = vpack.c.b16 %v4491, %v4491
        %v4508 = vpack.c.b16 %v4492, %v4492
        %v4509 = vpack.c.b16 %v4493, %v4493
        %v4510 = vpack.c.b16 %v4494, %v4494
        %v4511 = vpack.c.b16 %v4495, %v4495
        %v4512 = vpack.c.b16 %v4496, %v4496
        %v4513 = vpack.c.b16 %v4497, %v4497
        %v4514 = vpack.c.b16 %v4498, %v4498
        %v4515 = vpack.c.b16 %v4499, %v4499
        %v4516 = vpack.c.b16 %v4500, %v4500
        %v4518 = vshrl.u32 %v4421, 16
        %v4520 = vshll.u32 %v4421, 16
        %v4522 = vrot.slane %v4520, 1
        %v4523 = vor.u32 %v4518, %v4522
        %v4525 = vshll.u32 %v4501, 16
        %v4527 = vrot.slane %v4525, 1
        %v4528 = vsel %vm1136, %v4523, %v4527
        %v4530 = vshrl.u32 %v4422, 16
        %v4532 = vshll.u32 %v4422, 16
        %v4534 = vrot.slane %v4532, 1
        %v4535 = vor.u32 %v4530, %v4534
        %v4537 = vshll.u32 %v4502, 16
        %v4539 = vrot.slane %v4537, 1
        %v4540 = vsel %vm1136, %v4535, %v4539
        %v4542 = vshrl.u32 %v4423, 16
        %v4544 = vshll.u32 %v4423, 16
        %v4546 = vrot.slane %v4544, 1
        %v4547 = vor.u32 %v4542, %v4546
        %v4549 = vshll.u32 %v4503, 16
        %v4551 = vrot.slane %v4549, 1
        %v4552 = vsel %vm1136, %v4547, %v4551
        %v4554 = vshrl.u32 %v4424, 16
        %v4556 = vshll.u32 %v4424, 16
        %v4558 = vrot.slane %v4556, 1
        %v4559 = vor.u32 %v4554, %v4558
        %v4561 = vshll.u32 %v4504, 16
        %v4563 = vrot.slane %v4561, 1
        %v4564 = vsel %vm1136, %v4559, %v4563
        %v4566 = vshrl.u32 %v4425, 16
        %v4568 = vshll.u32 %v4425, 16
        %v4570 = vrot.slane %v4568, 1
        %v4571 = vor.u32 %v4566, %v4570
        %v4573 = vshll.u32 %v4505, 16
        %v4575 = vrot.slane %v4573, 1
        %v4576 = vsel %vm1136, %v4571, %v4575
        %v4578 = vshrl.u32 %v4426, 16
        %v4580 = vshll.u32 %v4426, 16
        %v4582 = vrot.slane %v4580, 1
        %v4583 = vor.u32 %v4578, %v4582
        %v4585 = vshll.u32 %v4506, 16
        %v4587 = vrot.slane %v4585, 1
        %v4588 = vsel %vm1136, %v4583, %v4587
        %v4590 = vshrl.u32 %v4427, 16
        %v4592 = vshll.u32 %v4427, 16
        %v4594 = vrot.slane %v4592, 1
        %v4595 = vor.u32 %v4590, %v4594
        %v4597 = vshll.u32 %v4507, 16
        %v4599 = vrot.slane %v4597, 1
        %v4600 = vsel %vm1136, %v4595, %v4599
        %v4602 = vshrl.u32 %v4428, 16
        %v4604 = vshll.u32 %v4428, 16
        %v4606 = vrot.slane %v4604, 1
        %v4607 = vor.u32 %v4602, %v4606
        %v4609 = vshll.u32 %v4508, 16
        %v4611 = vrot.slane %v4609, 1
        %v4612 = vsel %vm1136, %v4607, %v4611
        %v4614 = vshrl.u32 %v4429, 16
        %v4616 = vshll.u32 %v4429, 16
        %v4618 = vrot.slane %v4616, 1
        %v4619 = vor.u32 %v4614, %v4618
        %v4621 = vshll.u32 %v4509, 16
        %v4623 = vrot.slane %v4621, 1
        %v4624 = vsel %vm1136, %v4619, %v4623
        %v4626 = vshrl.u32 %v4430, 16
        %v4628 = vshll.u32 %v4430, 16
        %v4630 = vrot.slane %v4628, 1
        %v4631 = vor.u32 %v4626, %v4630
        %v4633 = vshll.u32 %v4510, 16
        %v4635 = vrot.slane %v4633, 1
        %v4636 = vsel %vm1136, %v4631, %v4635
        %v4638 = vshrl.u32 %v4431, 16
        %v4640 = vshll.u32 %v4431, 16
        %v4642 = vrot.slane %v4640, 1
        %v4643 = vor.u32 %v4638, %v4642
        %v4645 = vshll.u32 %v4511, 16
        %v4647 = vrot.slane %v4645, 1
        %v4648 = vsel %vm1136, %v4643, %v4647
        %v4650 = vshrl.u32 %v4432, 16
        %v4652 = vshll.u32 %v4432, 16
        %v4654 = vrot.slane %v4652, 1
        %v4655 = vor.u32 %v4650, %v4654
        %v4657 = vshll.u32 %v4512, 16
        %v4659 = vrot.slane %v4657, 1
        %v4660 = vsel %vm1136, %v4655, %v4659
        %v4662 = vshrl.u32 %v4433, 16
        %v4664 = vshll.u32 %v4433, 16
        %v4666 = vrot.slane %v4664, 1
        %v4667 = vor.u32 %v4662, %v4666
        %v4669 = vshll.u32 %v4513, 16
        %v4671 = vrot.slane %v4669, 1
        %v4672 = vsel %vm1136, %v4667, %v4671
        %v4674 = vshrl.u32 %v4434, 16
        %v4676 = vshll.u32 %v4434, 16
        %v4678 = vrot.slane %v4676, 1
        %v4679 = vor.u32 %v4674, %v4678
        %v4681 = vshll.u32 %v4514, 16
        %v4683 = vrot.slane %v4681, 1
        %v4684 = vsel %vm1136, %v4679, %v4683
        %v4686 = vshrl.u32 %v4435, 16
        %v4688 = vshll.u32 %v4435, 16
        %v4690 = vrot.slane %v4688, 1
        %v4691 = vor.u32 %v4686, %v4690
        %v4693 = vshll.u32 %v4515, 16
        %v4695 = vrot.slane %v4693, 1
        %v4696 = vsel %vm1136, %v4691, %v4695
        %v4698 = vshrl.u32 %v4436, 16
        %v4700 = vshll.u32 %v4436, 16
        %v4702 = vrot.slane %v4700, 1
        %v4703 = vor.u32 %v4698, %v4702
        %v4705 = vshll.u32 %v4516, 16
        %v4707 = vrot.slane %v4705, 1
        %v4708 = vsel %vm1136, %v4703, %v4707
        %4709 = vrot.lane.b32.xlu0 %v4528, 64
        %v4710 = vpop.permute.xlu0 %4709
        %4711 = vrot.lane.b32.xlu0 %v4540, 64
        %v4712 = vpop.permute.xlu0 %4711
        %4713 = vrot.lane.b32.xlu0 %v4552, 64
        %v4714 = vpop.permute.xlu0 %4713
        %4715 = vrot.lane.b32.xlu0 %v4564, 64
        %v4716 = vpop.permute.xlu0 %4715
        %4717 = vrot.lane.b32.xlu0 %v4576, 64
        %v4718 = vpop.permute.xlu0 %4717
        %4719 = vrot.lane.b32.xlu0 %v4588, 64
        %v4720 = vpop.permute.xlu0 %4719
        %4721 = vrot.lane.b32.xlu0 %v4600, 64
        %v4722 = vpop.permute.xlu0 %4721
        %4723 = vrot.lane.b32.xlu0 %v4612, 64
        %v4724 = vpop.permute.xlu0 %4723
        %4725 = vrot.lane.b32.xlu0 %v4624, 64
        %v4726 = vpop.permute.xlu0 %4725
        %4727 = vrot.lane.b32.xlu0 %v4636, 64
        %v4728 = vpop.permute.xlu0 %4727
        %4729 = vrot.lane.b32.xlu0 %v4648, 64
        %v4730 = vpop.permute.xlu0 %4729
        %4731 = vrot.lane.b32.xlu0 %v4660, 64
        %v4732 = vpop.permute.xlu0 %4731
        %4733 = vrot.lane.b32.xlu0 %v4672, 64
        %v4734 = vpop.permute.xlu0 %4733
        %4735 = vrot.lane.b32.xlu0 %v4684, 64
        %v4736 = vpop.permute.xlu0 %4735
        %4737 = vrot.lane.b32.xlu0 %v4696, 64
        %v4738 = vpop.permute.xlu0 %4737
        %4739 = vrot.lane.b32.xlu0 %v4708, 64
        %v4740 = vpop.permute.xlu0 %4739
        %v4757 = vunpack.c.l.b16 %v3796
        %v4758 = vunpack.c.l.b16 %v3797
        %v4759 = vunpack.c.l.b16 %v3798
        %v4760 = vunpack.c.l.b16 %v3799
        %v4761 = vunpack.c.l.b16 %v3800
        %v4762 = vunpack.c.l.b16 %v3801
        %v4763 = vunpack.c.l.b16 %v3802
        %v4764 = vunpack.c.l.b16 %v3803
        %v4765 = vunpack.c.l.b16 %v3804
        %v4766 = vunpack.c.l.b16 %v3805
        %v4767 = vunpack.c.l.b16 %v3806
        %v4768 = vunpack.c.l.b16 %v3807
        %v4769 = vunpack.c.l.b16 %v3808
        %v4770 = vunpack.c.l.b16 %v3809
        %v4771 = vunpack.c.l.b16 %v3810
        %v4772 = vunpack.c.l.b16 %v3811
        %v4773 = vpack.c.b16 %v4390, %v4757
        %v4774 = vpack.c.b16 %v4392, %v4758
        %v4775 = vpack.c.b16 %v4394, %v4759
        %v4776 = vpack.c.b16 %v4396, %v4760
        %v4777 = vpack.c.b16 %v4398, %v4761
        %v4778 = vpack.c.b16 %v4400, %v4762
        %v4779 = vpack.c.b16 %v4402, %v4763
        %v4780 = vpack.c.b16 %v4404, %v4764
        %v4781 = vpack.c.b16 %v4406, %v4765
        %v4782 = vpack.c.b16 %v4408, %v4766
        %v4783 = vpack.c.b16 %v4410, %v4767
        %v4784 = vpack.c.b16 %v4412, %v4768
        %v4785 = vpack.c.b16 %v4414, %v4769
        %v4786 = vpack.c.b16 %v4416, %v4770
        %v4787 = vpack.c.b16 %v4418, %v4771
        %v4788 = vpack.c.b16 %v4420, %v4772
        %v4789 = vrot.slane %v4773, 1
        %v4790 = vrot.slane %v4501, 1
        %v4791 = vsel %vm1409, %v4789, %v4790
        %v4792 = vrot.slane %v4774, 1
        %v4793 = vrot.slane %v4502, 1
        %v4794 = vsel %vm1409, %v4792, %v4793
        %v4795 = vrot.slane %v4775, 1
        %v4796 = vrot.slane %v4503, 1
        %v4797 = vsel %vm1409, %v4795, %v4796
        %v4798 = vrot.slane %v4776, 1
        %v4799 = vrot.slane %v4504, 1
        %v4800 = vsel %vm1409, %v4798, %v4799
        %v4801 = vrot.slane %v4777, 1
        %v4802 = vrot.slane %v4505, 1
        %v4803 = vsel %vm1409, %v4801, %v4802
        %v4804 = vrot.slane %v4778, 1
        %v4805 = vrot.slane %v4506, 1
        %v4806 = vsel %vm1409, %v4804, %v4805
        %v4807 = vrot.slane %v4779, 1
        %v4808 = vrot.slane %v4507, 1
        %v4809 = vsel %vm1409, %v4807, %v4808
        %v4810 = vrot.slane %v4780, 1
        %v4811 = vrot.slane %v4508, 1
        %v4812 = vsel %vm1409, %v4810, %v4811
        %v4813 = vrot.slane %v4781, 1
        %v4814 = vrot.slane %v4509, 1
        %v4815 = vsel %vm1409, %v4813, %v4814
        %v4816 = vrot.slane %v4782, 1
        %v4817 = vrot.slane %v4510, 1
        %v4818 = vsel %vm1409, %v4816, %v4817
        %v4819 = vrot.slane %v4783, 1
        %v4820 = vrot.slane %v4511, 1
        %v4821 = vsel %vm1409, %v4819, %v4820
        %v4822 = vrot.slane %v4784, 1
        %v4823 = vrot.slane %v4512, 1
        %v4824 = vsel %vm1409, %v4822, %v4823
        %v4825 = vrot.slane %v4785, 1
        %v4826 = vrot.slane %v4513, 1
        %v4827 = vsel %vm1409, %v4825, %v4826
        %v4828 = vrot.slane %v4786, 1
        %v4829 = vrot.slane %v4514, 1
        %v4830 = vsel %vm1409, %v4828, %v4829
        %v4831 = vrot.slane %v4787, 1
        %v4832 = vrot.slane %v4515, 1
        %v4833 = vsel %vm1409, %v4831, %v4832
        %v4834 = vrot.slane %v4788, 1
        %v4835 = vrot.slane %v4516, 1
        %v4836 = vsel %vm1409, %v4834, %v4835
        %4837 = vrot.lane.b32.xlu0 %v4791, 80
        %v4838 = vpop.permute.xlu0 %4837
        %4839 = vrot.lane.b32.xlu0 %v4794, 80
        %v4840 = vpop.permute.xlu0 %4839
        %4841 = vrot.lane.b32.xlu0 %v4797, 80
        %v4842 = vpop.permute.xlu0 %4841
        %4843 = vrot.lane.b32.xlu0 %v4800, 80
        %v4844 = vpop.permute.xlu0 %4843
        %4845 = vrot.lane.b32.xlu0 %v4803, 80
        %v4846 = vpop.permute.xlu0 %4845
        %4847 = vrot.lane.b32.xlu0 %v4806, 80
        %v4848 = vpop.permute.xlu0 %4847
        %4849 = vrot.lane.b32.xlu0 %v4809, 80
        %v4850 = vpop.permute.xlu0 %4849
        %4851 = vrot.lane.b32.xlu0 %v4812, 80
        %v4852 = vpop.permute.xlu0 %4851
        %4853 = vrot.lane.b32.xlu0 %v4815, 80
        %v4854 = vpop.permute.xlu0 %4853
        %4855 = vrot.lane.b32.xlu0 %v4818, 80
        %v4856 = vpop.permute.xlu0 %4855
        %4857 = vrot.lane.b32.xlu0 %v4821, 80
        %v4858 = vpop.permute.xlu0 %4857
        %4859 = vrot.lane.b32.xlu0 %v4824, 80
        %v4860 = vpop.permute.xlu0 %4859
        %4861 = vrot.lane.b32.xlu0 %v4827, 80
        %v4862 = vpop.permute.xlu0 %4861
        %4863 = vrot.lane.b32.xlu0 %v4830, 80
        %v4864 = vpop.permute.xlu0 %4863
        %4865 = vrot.lane.b32.xlu0 %v4833, 80
        %v4866 = vpop.permute.xlu0 %4865
        %4867 = vrot.lane.b32.xlu0 %v4836, 80
        %v4868 = vpop.permute.xlu0 %4867
        %v4901 = vunpack.c.l.b16 %v3813
        %v4902 = vunpack.c.l.b16 %v3814
        %v4903 = vunpack.c.l.b16 %v3815
        %v4904 = vunpack.c.l.b16 %v3816
        %v4905 = vunpack.c.l.b16 %v3817
        %v4906 = vunpack.c.l.b16 %v3818
        %v4907 = vunpack.c.l.b16 %v3819
        %v4908 = vunpack.c.l.b16 %v3820
        %v4909 = vunpack.c.l.b16 %v3821
        %v4910 = vunpack.c.l.b16 %v3822
        %v4911 = vunpack.c.l.b16 %v3823
        %v4912 = vunpack.c.l.b16 %v3824
        %v4913 = vunpack.c.l.b16 %v3825
        %v4914 = vunpack.c.l.b16 %v3826
        %v4915 = vunpack.c.l.b16 %v3827
        %v4916 = vunpack.c.l.b16 %v3828
        %v4917 = vunpack.c.l.b16 %v3829
        %v4918 = vunpack.c.l.b16 %v3830
        %v4919 = vunpack.c.l.b16 %v3831
        %v4920 = vunpack.c.l.b16 %v3832
        %v4921 = vunpack.c.l.b16 %v3833
        %v4922 = vunpack.c.l.b16 %v3834
        %v4923 = vunpack.c.l.b16 %v3835
        %v4924 = vunpack.c.l.b16 %v3836
        %v4925 = vunpack.c.l.b16 %v3837
        %v4926 = vunpack.c.l.b16 %v3838
        %v4927 = vunpack.c.l.b16 %v3839
        %v4928 = vunpack.c.l.b16 %v3840
        %v4929 = vunpack.c.l.b16 %v3841
        %v4930 = vunpack.c.l.b16 %v3842
        %v4931 = vunpack.c.l.b16 %v3843
        %v4932 = vunpack.c.l.b16 %v3844
        %v4933 = vpack.c.b16 %v4902, %v4901
        %v4934 = vpack.c.b16 %v4904, %v4903
        %v4935 = vpack.c.b16 %v4906, %v4905
        %v4936 = vpack.c.b16 %v4908, %v4907
        %v4937 = vpack.c.b16 %v4910, %v4909
        %v4938 = vpack.c.b16 %v4912, %v4911
        %v4939 = vpack.c.b16 %v4914, %v4913
        %v4940 = vpack.c.b16 %v4916, %v4915
        %v4941 = vpack.c.b16 %v4918, %v4917
        %v4942 = vpack.c.b16 %v4920, %v4919
        %v4943 = vpack.c.b16 %v4922, %v4921
        %v4944 = vpack.c.b16 %v4924, %v4923
        %v4945 = vpack.c.b16 %v4926, %v4925
        %v4946 = vpack.c.b16 %v4928, %v4927
        %v4947 = vpack.c.b16 %v4930, %v4929
        %v4948 = vpack.c.b16 %v4932, %v4931
        %4949 = vrot.lane.b32.xlu0 %v4933, 96
        %v4950 = vpop.permute.xlu0 %4949
        %4951 = vrot.lane.b32.xlu0 %v4934, 96
        %v4952 = vpop.permute.xlu0 %4951
        %4953 = vrot.lane.b32.xlu0 %v4935, 96
        %v4954 = vpop.permute.xlu0 %4953
        %4955 = vrot.lane.b32.xlu0 %v4936, 96
        %v4956 = vpop.permute.xlu0 %4955
        %4957 = vrot.lane.b32.xlu0 %v4937, 96
        %v4958 = vpop.permute.xlu0 %4957
        %4959 = vrot.lane.b32.xlu0 %v4938, 96
        %v4960 = vpop.permute.xlu0 %4959
        %4961 = vrot.lane.b32.xlu0 %v4939, 96
        %v4962 = vpop.permute.xlu0 %4961
        %4963 = vrot.lane.b32.xlu0 %v4940, 96
        %v4964 = vpop.permute.xlu0 %4963
        %4965 = vrot.lane.b32.xlu0 %v4941, 96
        %v4966 = vpop.permute.xlu0 %4965
        %4967 = vrot.lane.b32.xlu0 %v4942, 96
        %v4968 = vpop.permute.xlu0 %4967
        %4969 = vrot.lane.b32.xlu0 %v4943, 96
        %v4970 = vpop.permute.xlu0 %4969
        %4971 = vrot.lane.b32.xlu0 %v4944, 96
        %v4972 = vpop.permute.xlu0 %4971
        %4973 = vrot.lane.b32.xlu0 %v4945, 96
        %v4974 = vpop.permute.xlu0 %4973
        %4975 = vrot.lane.b32.xlu0 %v4946, 96
        %v4976 = vpop.permute.xlu0 %4975
        %4977 = vrot.lane.b32.xlu0 %v4947, 96
        %v4978 = vpop.permute.xlu0 %4977
        %4979 = vrot.lane.b32.xlu0 %v4948, 96
        %v4980 = vpop.permute.xlu0 %4979
        %v4997 = vunpack.c.l.b16 %v3845
        %v4998 = vunpack.c.l.b16 %v3846
        %v4999 = vunpack.c.l.b16 %v3847
        %v5000 = vunpack.c.l.b16 %v3848
        %v5001 = vunpack.c.l.b16 %v3849
        %v5002 = vunpack.c.l.b16 %v3850
        %v5003 = vunpack.c.l.b16 %v3851
        %v5004 = vunpack.c.l.b16 %v3852
        %v5005 = vunpack.c.l.b16 %v3853
        %v5006 = vunpack.c.l.b16 %v3854
        %v5007 = vunpack.c.l.b16 %v3855
        %v5008 = vunpack.c.l.b16 %v3856
        %v5009 = vunpack.c.l.b16 %v3857
        %v5010 = vunpack.c.l.b16 %v3858
        %v5011 = vunpack.c.l.b16 %v3859
        %v5012 = vunpack.c.l.b16 %v3860
        %v5013 = vpack.c.b16 %v4997, %v4997
        %v5014 = vpack.c.b16 %v4998, %v4998
        %v5015 = vpack.c.b16 %v4999, %v4999
        %v5016 = vpack.c.b16 %v5000, %v5000
        %v5017 = vpack.c.b16 %v5001, %v5001
        %v5018 = vpack.c.b16 %v5002, %v5002
        %v5019 = vpack.c.b16 %v5003, %v5003
        %v5020 = vpack.c.b16 %v5004, %v5004
        %v5021 = vpack.c.b16 %v5005, %v5005
        %v5022 = vpack.c.b16 %v5006, %v5006
        %v5023 = vpack.c.b16 %v5007, %v5007
        %v5024 = vpack.c.b16 %v5008, %v5008
        %v5025 = vpack.c.b16 %v5009, %v5009
        %v5026 = vpack.c.b16 %v5010, %v5010
        %v5027 = vpack.c.b16 %v5011, %v5011
        %v5028 = vpack.c.b16 %v5012, %v5012
        %v5030 = vshrl.u32 %v4933, 16
        %v5032 = vshll.u32 %v4933, 16
        %v5034 = vrot.slane %v5032, 1
        %v5035 = vor.u32 %v5030, %v5034
        %v5037 = vshll.u32 %v5013, 16
        %v5039 = vrot.slane %v5037, 1
        %v5040 = vsel %vm1136, %v5035, %v5039
        %v5042 = vshrl.u32 %v4934, 16
        %v5044 = vshll.u32 %v4934, 16
        %v5046 = vrot.slane %v5044, 1
        %v5047 = vor.u32 %v5042, %v5046
        %v5049 = vshll.u32 %v5014, 16
        %v5051 = vrot.slane %v5049, 1
        %v5052 = vsel %vm1136, %v5047, %v5051
        %v5054 = vshrl.u32 %v4935, 16
        %v5056 = vshll.u32 %v4935, 16
        %v5058 = vrot.slane %v5056, 1
        %v5059 = vor.u32 %v5054, %v5058
        %v5061 = vshll.u32 %v5015, 16
        %v5063 = vrot.slane %v5061, 1
        %v5064 = vsel %vm1136, %v5059, %v5063
        %v5066 = vshrl.u32 %v4936, 16
        %v5068 = vshll.u32 %v4936, 16
        %v5070 = vrot.slane %v5068, 1
        %v5071 = vor.u32 %v5066, %v5070
        %v5073 = vshll.u32 %v5016, 16
        %v5075 = vrot.slane %v5073, 1
        %v5076 = vsel %vm1136, %v5071, %v5075
        %v5078 = vshrl.u32 %v4937, 16
        %v5080 = vshll.u32 %v4937, 16
        %v5082 = vrot.slane %v5080, 1
        %v5083 = vor.u32 %v5078, %v5082
        %v5085 = vshll.u32 %v5017, 16
        %v5087 = vrot.slane %v5085, 1
        %v5088 = vsel %vm1136, %v5083, %v5087
        %v5090 = vshrl.u32 %v4938, 16
        %v5092 = vshll.u32 %v4938, 16
        %v5094 = vrot.slane %v5092, 1
        %v5095 = vor.u32 %v5090, %v5094
        %v5097 = vshll.u32 %v5018, 16
        %v5099 = vrot.slane %v5097, 1
        %v5100 = vsel %vm1136, %v5095, %v5099
        %v5102 = vshrl.u32 %v4939, 16
        %v5104 = vshll.u32 %v4939, 16
        %v5106 = vrot.slane %v5104, 1
        %v5107 = vor.u32 %v5102, %v5106
        %v5109 = vshll.u32 %v5019, 16
        %v5111 = vrot.slane %v5109, 1
        %v5112 = vsel %vm1136, %v5107, %v5111
        %v5114 = vshrl.u32 %v4940, 16
        %v5116 = vshll.u32 %v4940, 16
        %v5118 = vrot.slane %v5116, 1
        %v5119 = vor.u32 %v5114, %v5118
        %v5121 = vshll.u32 %v5020, 16
        %v5123 = vrot.slane %v5121, 1
        %v5124 = vsel %vm1136, %v5119, %v5123
        %v5126 = vshrl.u32 %v4941, 16
        %v5128 = vshll.u32 %v4941, 16
        %v5130 = vrot.slane %v5128, 1
        %v5131 = vor.u32 %v5126, %v5130
        %v5133 = vshll.u32 %v5021, 16
        %v5135 = vrot.slane %v5133, 1
        %v5136 = vsel %vm1136, %v5131, %v5135
        %v5138 = vshrl.u32 %v4942, 16
        %v5140 = vshll.u32 %v4942, 16
        %v5142 = vrot.slane %v5140, 1
        %v5143 = vor.u32 %v5138, %v5142
        %v5145 = vshll.u32 %v5022, 16
        %v5147 = vrot.slane %v5145, 1
        %v5148 = vsel %vm1136, %v5143, %v5147
        %v5150 = vshrl.u32 %v4943, 16
        %v5152 = vshll.u32 %v4943, 16
        %v5154 = vrot.slane %v5152, 1
        %v5155 = vor.u32 %v5150, %v5154
        %v5157 = vshll.u32 %v5023, 16
        %v5159 = vrot.slane %v5157, 1
        %v5160 = vsel %vm1136, %v5155, %v5159
        %v5162 = vshrl.u32 %v4944, 16
        %v5164 = vshll.u32 %v4944, 16
        %v5166 = vrot.slane %v5164, 1
        %v5167 = vor.u32 %v5162, %v5166
        %v5169 = vshll.u32 %v5024, 16
        %v5171 = vrot.slane %v5169, 1
        %v5172 = vsel %vm1136, %v5167, %v5171
        %v5174 = vshrl.u32 %v4945, 16
        %v5176 = vshll.u32 %v4945, 16
        %v5178 = vrot.slane %v5176, 1
        %v5179 = vor.u32 %v5174, %v5178
        %v5181 = vshll.u32 %v5025, 16
        %v5183 = vrot.slane %v5181, 1
        %v5184 = vsel %vm1136, %v5179, %v5183
        %v5186 = vshrl.u32 %v4946, 16
        %v5188 = vshll.u32 %v4946, 16
        %v5190 = vrot.slane %v5188, 1
        %v5191 = vor.u32 %v5186, %v5190
        %v5193 = vshll.u32 %v5026, 16
        %v5195 = vrot.slane %v5193, 1
        %v5196 = vsel %vm1136, %v5191, %v5195
        %v5198 = vshrl.u32 %v4947, 16
        %v5200 = vshll.u32 %v4947, 16
        %v5202 = vrot.slane %v5200, 1
        %v5203 = vor.u32 %v5198, %v5202
        %v5205 = vshll.u32 %v5027, 16
        %v5207 = vrot.slane %v5205, 1
        %v5208 = vsel %vm1136, %v5203, %v5207
        %v5210 = vshrl.u32 %v4948, 16
        %v5212 = vshll.u32 %v4948, 16
        %v5214 = vrot.slane %v5212, 1
        %v5215 = vor.u32 %v5210, %v5214
        %v5217 = vshll.u32 %v5028, 16
        %v5219 = vrot.slane %v5217, 1
        %v5220 = vsel %vm1136, %v5215, %v5219
        %5221 = vrot.lane.b32.xlu0 %v5040, 112
        %v5222 = vpop.permute.xlu0 %5221
        %5223 = vrot.lane.b32.xlu0 %v5052, 112
        %v5224 = vpop.permute.xlu0 %5223
        %5225 = vrot.lane.b32.xlu0 %v5064, 112
        %v5226 = vpop.permute.xlu0 %5225
        %5227 = vrot.lane.b32.xlu0 %v5076, 112
        %v5228 = vpop.permute.xlu0 %5227
        %5229 = vrot.lane.b32.xlu0 %v5088, 112
        %v5230 = vpop.permute.xlu0 %5229
        %5231 = vrot.lane.b32.xlu0 %v5100, 112
        %v5232 = vpop.permute.xlu0 %5231
        %5233 = vrot.lane.b32.xlu0 %v5112, 112
        %v5234 = vpop.permute.xlu0 %5233
        %5235 = vrot.lane.b32.xlu0 %v5124, 112
        %v5236 = vpop.permute.xlu0 %5235
        %5237 = vrot.lane.b32.xlu0 %v5136, 112
        %v5238 = vpop.permute.xlu0 %5237
        %5239 = vrot.lane.b32.xlu0 %v5148, 112
        %v5240 = vpop.permute.xlu0 %5239
        %5241 = vrot.lane.b32.xlu0 %v5160, 112
        %v5242 = vpop.permute.xlu0 %5241
        %5243 = vrot.lane.b32.xlu0 %v5172, 112
        %v5244 = vpop.permute.xlu0 %5243
        %5245 = vrot.lane.b32.xlu0 %v5184, 112
        %v5246 = vpop.permute.xlu0 %5245
        %5247 = vrot.lane.b32.xlu0 %v5196, 112
        %v5248 = vpop.permute.xlu0 %5247
        %5249 = vrot.lane.b32.xlu0 %v5208, 112
        %v5250 = vpop.permute.xlu0 %5249
        %5251 = vrot.lane.b32.xlu0 %v5220, 112
        %v5252 = vpop.permute.xlu0 %5251
        %v5269 = vunpack.c.l.b16 %v3861
        %v5270 = vunpack.c.l.b16 %v3862
        %v5271 = vunpack.c.l.b16 %v3863
        %v5272 = vunpack.c.l.b16 %v3864
        %v5273 = vunpack.c.l.b16 %v3865
        %v5274 = vunpack.c.l.b16 %v3866
        %v5275 = vunpack.c.l.b16 %v3867
        %v5276 = vunpack.c.l.b16 %v3868
        %v5277 = vunpack.c.l.b16 %v3869
        %v5278 = vunpack.c.l.b16 %v3870
        %v5279 = vunpack.c.l.b16 %v3871
        %v5280 = vunpack.c.l.b16 %v3872
        %v5281 = vunpack.c.l.b16 %v3873
        %v5282 = vunpack.c.l.b16 %v3874
        %v5283 = vunpack.c.l.b16 %v3875
        %v5284 = vunpack.c.l.b16 %v3876
        %v5285 = vpack.c.b16 %v4902, %v5269
        %v5286 = vpack.c.b16 %v4904, %v5270
        %v5287 = vpack.c.b16 %v4906, %v5271
        %v5288 = vpack.c.b16 %v4908, %v5272
        %v5289 = vpack.c.b16 %v4910, %v5273
        %v5290 = vpack.c.b16 %v4912, %v5274
        %v5291 = vpack.c.b16 %v4914, %v5275
        %v5292 = vpack.c.b16 %v4916, %v5276
        %v5293 = vpack.c.b16 %v4918, %v5277
        %v5294 = vpack.c.b16 %v4920, %v5278
        %v5295 = vpack.c.b16 %v4922, %v5279
        %v5296 = vpack.c.b16 %v4924, %v5280
        %v5297 = vpack.c.b16 %v4926, %v5281
        %v5298 = vpack.c.b16 %v4928, %v5282
        %v5299 = vpack.c.b16 %v4930, %v5283
        %v5300 = vpack.c.b16 %v4932, %v5284
        %v5301 = vrot.slane %v5285, 1
        %v5302 = vrot.slane %v5013, 1
        %v5303 = vsel %vm1409, %v5301, %v5302
        %v5304 = vrot.slane %v5286, 1
        %v5305 = vrot.slane %v5014, 1
        %v5306 = vsel %vm1409, %v5304, %v5305
        %v5307 = vrot.slane %v5287, 1
        %v5308 = vrot.slane %v5015, 1
        %v5309 = vsel %vm1409, %v5307, %v5308
        %v5310 = vrot.slane %v5288, 1
        %v5311 = vrot.slane %v5016, 1
        %v5312 = vsel %vm1409, %v5310, %v5311
        %v5313 = vrot.slane %v5289, 1
        %v5314 = vrot.slane %v5017, 1
        %v5315 = vsel %vm1409, %v5313, %v5314
        %v5316 = vrot.slane %v5290, 1
        %v5317 = vrot.slane %v5018, 1
        %v5318 = vsel %vm1409, %v5316, %v5317
        %v5319 = vrot.slane %v5291, 1
        %v5320 = vrot.slane %v5019, 1
        %v5321 = vsel %vm1409, %v5319, %v5320
        %v5322 = vrot.slane %v5292, 1
        %v5323 = vrot.slane %v5020, 1
        %v5324 = vsel %vm1409, %v5322, %v5323
        %v5325 = vrot.slane %v5293, 1
        %v5326 = vrot.slane %v5021, 1
        %v5327 = vsel %vm1409, %v5325, %v5326
        %v5328 = vrot.slane %v5294, 1
        %v5329 = vrot.slane %v5022, 1
        %v5330 = vsel %vm1409, %v5328, %v5329
        %v5331 = vrot.slane %v5295, 1
        %v5332 = vrot.slane %v5023, 1
        %v5333 = vsel %vm1409, %v5331, %v5332
        %v5334 = vrot.slane %v5296, 1
        %v5335 = vrot.slane %v5024, 1
        %v5336 = vsel %vm1409, %v5334, %v5335
        %v5337 = vrot.slane %v5297, 1
        %v5338 = vrot.slane %v5025, 1
        %v5339 = vsel %vm1409, %v5337, %v5338
        %v5340 = vrot.slane %v5298, 1
        %v5341 = vrot.slane %v5026, 1
        %v5342 = vsel %vm1409, %v5340, %v5341
        %v5343 = vrot.slane %v5299, 1
        %v5344 = vrot.slane %v5027, 1
        %v5345 = vsel %vm1409, %v5343, %v5344
        %v5346 = vrot.slane %v5300, 1
        %v5347 = vrot.slane %v5028, 1
        %v5348 = vsel %vm1409, %v5346, %v5347
        %vm5349 = vcmask 130048
        %v5351 = vsel %vm5349, %v3941, %v4198
        %v5353 = vsel %vm5349, %v3942, %v4200
        %v5355 = vsel %vm5349, %v3943, %v4202
        %v5357 = vsel %vm5349, %v3944, %v4204
        %v5359 = vsel %vm5349, %v3945, %v4206
        %v5361 = vsel %vm5349, %v3946, %v4208
        %v5363 = vsel %vm5349, %v3947, %v4210
        %v5365 = vsel %vm5349, %v3948, %v4212
        %v5367 = vsel %vm5349, %v3949, %v4214
        %v5369 = vsel %vm5349, %v3950, %v4216
        %v5371 = vsel %vm5349, %v3951, %v4218
        %v5373 = vsel %vm5349, %v3952, %v4220
        %v5375 = vsel %vm5349, %v3953, %v4222
        %v5377 = vsel %vm5349, %v3954, %v4224
        %v5379 = vsel %vm5349, %v3955, %v4226
        %v5381 = vsel %vm5349, %v3956, %v4228
        %vm5382 = vcmask 261120
        %v5384 = vsel %vm5382, %v5351, %v4326
        %v5386 = vsel %vm5382, %v5353, %v4328
        %v5388 = vsel %vm5382, %v5355, %v4330
        %v5390 = vsel %vm5382, %v5357, %v4332
        %v5392 = vsel %vm5382, %v5359, %v4334
        %v5394 = vsel %vm5382, %v5361, %v4336
        %v5396 = vsel %vm5382, %v5363, %v4338
        %v5398 = vsel %vm5382, %v5365, %v4340
        %v5400 = vsel %vm5382, %v5367, %v4342
        %v5402 = vsel %vm5382, %v5369, %v4344
        %v5404 = vsel %vm5382, %v5371, %v4346
        %v5406 = vsel %vm5382, %v5373, %v4348
        %v5408 = vsel %vm5382, %v5375, %v4350
        %v5410 = vsel %vm5382, %v5377, %v4352
        %v5412 = vsel %vm5382, %v5379, %v4354
        %v5414 = vsel %vm5382, %v5381, %v4356
        %vm5415 = vcmask 392192
        %v5417 = vsel %vm5415, %v5384, %v4438
        %v5419 = vsel %vm5415, %v5386, %v4440
        %v5421 = vsel %vm5415, %v5388, %v4442
        %v5423 = vsel %vm5415, %v5390, %v4444
        %v5425 = vsel %vm5415, %v5392, %v4446
        %v5427 = vsel %vm5415, %v5394, %v4448
        %v5429 = vsel %vm5415, %v5396, %v4450
        %v5431 = vsel %vm5415, %v5398, %v4452
        %v5433 = vsel %vm5415, %v5400, %v4454
        %v5435 = vsel %vm5415, %v5402, %v4456
        %v5437 = vsel %vm5415, %v5404, %v4458
        %v5439 = vsel %vm5415, %v5406, %v4460
        %v5441 = vsel %vm5415, %v5408, %v4462
        %v5443 = vsel %vm5415, %v5410, %v4464
        %v5445 = vsel %vm5415, %v5412, %v4466
        %v5447 = vsel %vm5415, %v5414, %v4468
        %vm5448 = vcmask 523264
        %v5450 = vsel %vm5448, %v5417, %v4710
        %v5452 = vsel %vm5448, %v5419, %v4712
        %v5454 = vsel %vm5448, %v5421, %v4714
        %v5456 = vsel %vm5448, %v5423, %v4716
        %v5458 = vsel %vm5448, %v5425, %v4718
        %v5460 = vsel %vm5448, %v5427, %v4720
        %v5462 = vsel %vm5448, %v5429, %v4722
        %v5464 = vsel %vm5448, %v5431, %v4724
        %v5466 = vsel %vm5448, %v5433, %v4726
        %v5468 = vsel %vm5448, %v5435, %v4728
        %v5470 = vsel %vm5448, %v5437, %v4730
        %v5472 = vsel %vm5448, %v5439, %v4732
        %v5474 = vsel %vm5448, %v5441, %v4734
        %v5476 = vsel %vm5448, %v5443, %v4736
        %v5478 = vsel %vm5448, %v5445, %v4738
        %v5480 = vsel %vm5448, %v5447, %v4740
        %vm5481 = vcmask 654336
        %v5483 = vsel %vm5481, %v5450, %v4838
        %v5485 = vsel %vm5481, %v5452, %v4840
        %v5487 = vsel %vm5481, %v5454, %v4842
        %v5489 = vsel %vm5481, %v5456, %v4844
        %v5491 = vsel %vm5481, %v5458, %v4846
        %v5493 = vsel %vm5481, %v5460, %v4848
        %v5495 = vsel %vm5481, %v5462, %v4850
        %v5497 = vsel %vm5481, %v5464, %v4852
        %v5499 = vsel %vm5481, %v5466, %v4854
        %v5501 = vsel %vm5481, %v5468, %v4856
        %v5503 = vsel %vm5481, %v5470, %v4858
        %v5505 = vsel %vm5481, %v5472, %v4860
        %v5507 = vsel %vm5481, %v5474, %v4862
        %v5509 = vsel %vm5481, %v5476, %v4864
        %v5511 = vsel %vm5481, %v5478, %v4866
        %v5513 = vsel %vm5481, %v5480, %v4868
        %vm5514 = vcmask 785408
        %v5516 = vsel %vm5514, %v5483, %v4950
        %v5518 = vsel %vm5514, %v5485, %v4952
        %v5520 = vsel %vm5514, %v5487, %v4954
        %v5522 = vsel %vm5514, %v5489, %v4956
        %v5524 = vsel %vm5514, %v5491, %v4958
        %v5526 = vsel %vm5514, %v5493, %v4960
        %v5528 = vsel %vm5514, %v5495, %v4962
        %v5530 = vsel %vm5514, %v5497, %v4964
        %v5532 = vsel %vm5514, %v5499, %v4966
        %v5534 = vsel %vm5514, %v5501, %v4968
        %v5536 = vsel %vm5514, %v5503, %v4970
        %v5538 = vsel %vm5514, %v5505, %v4972
        %v5540 = vsel %vm5514, %v5507, %v4974
        %v5542 = vsel %vm5514, %v5509, %v4976
        %v5544 = vsel %vm5514, %v5511, %v4978
        %v5546 = vsel %vm5514, %v5513, %v4980
        %vm5547 = vcmask 916480
        %v5549 = vsel %vm5547, %v5516, %v5222
        %v5552 = vsel %vm5547, %v5518, %v5224
        %v5555 = vsel %vm5547, %v5520, %v5226
        %v5558 = vsel %vm5547, %v5522, %v5228
        %v5561 = vsel %vm5547, %v5524, %v5230
        %v5564 = vsel %vm5547, %v5526, %v5232
        %v5567 = vsel %vm5547, %v5528, %v5234
        %v5570 = vsel %vm5547, %v5530, %v5236
        %v5573 = vsel %vm5547, %v5532, %v5238
        %v5576 = vsel %vm5547, %v5534, %v5240
        %v5579 = vsel %vm5547, %v5536, %v5242
        %v5582 = vsel %vm5547, %v5538, %v5244
        %v5585 = vsel %vm5547, %v5540, %v5246
        %v5588 = vsel %vm5547, %v5542, %v5248
        %v5591 = vsel %vm5547, %v5544, %v5250
        %v5594 = vsel %vm5547, %v5546, %v5252
        %v5596 = vld [vmem:[%s3] sm:$0xf]
        %v5597 = vld [vmem:[%s3 + $0x4] sm:$0xf]
        %v5598 = vld [vmem:[%s3 + $0x8] sm:$0xf]
        %v5599 = vld [vmem:[%s3 + $0xc] sm:$0xf]
        %v5600 = vld [vmem:[%s3 + $0x10] sm:$0xf]
        %v5601 = vld [vmem:[%s3 + $0x14] sm:$0xf]
        %v5602 = vld [vmem:[%s3 + $0x18] sm:$0xf]
        %v5603 = vld [vmem:[%s3 + $0x1c] sm:$0xf]
        %v5604 = vld [vmem:[%s3 + $0x20] sm:$0xf]
        %v5605 = vld [vmem:[%s3 + $0x24] sm:$0xf]
        %v5606 = vld [vmem:[%s3 + $0x28] sm:$0xf]
        %v5607 = vld [vmem:[%s3 + $0x2c] sm:$0xf]
        %v5608 = vld [vmem:[%s3 + $0x30] sm:$0xf]
        %v5609 = vld [vmem:[%s3 + $0x34] sm:$0xf]
        %v5610 = vld [vmem:[%s3 + $0x38] sm:$0xf]
        %v5611 = vld [vmem:[%s3 + $0x3c] sm:$0xf]
        %v5612 = vld [vmem:[%s3 + $0x40] sm:$0xf]
        %v5613 = vld [vmem:[%s3 + $0x44] sm:$0xf]
        %v5614 = vld [vmem:[%s4] sm:$0x1]
        %v5616 = vlaneseq
        %v5617 = vshrl.u32 %v5616, 7
        %v5618 = vsub.s32 0, %v5617
        %v5619 = vrot.slane %v5614, %v5618
        %v5639 = vunpack.c.l.b16 %v5596
        %v5640 = vunpack.c.l.b16 %v5597
        %v5641 = vunpack.c.l.b16 %v5598
        %v5642 = vunpack.c.l.b16 %v5599
        %v5643 = vunpack.c.l.b16 %v5600
        %v5644 = vunpack.c.l.b16 %v5601
        %v5645 = vunpack.c.l.b16 %v5602
        %v5646 = vunpack.c.l.b16 %v5603
        %v5647 = vunpack.c.l.b16 %v5604
        %v5648 = vunpack.c.l.b16 %v5605
        %v5649 = vunpack.c.l.b16 %v5606
        %v5650 = vunpack.c.l.b16 %v5607
        %v5651 = vunpack.c.l.b16 %v5608
        %v5652 = vunpack.c.l.b16 %v5609
        %v5653 = vunpack.c.l.b16 %v5610
        %v5654 = vunpack.c.l.b16 %v5611
        %v5655 = vunpack.c.l.b16 %v5612
        %v5656 = vunpack.c.l.b16 %v5613
        %v5657 = vpack.c.b16 %v5640, %v5639
        %v5658 = vpack.c.b16 %v5642, %v5641
        %v5659 = vpack.c.b16 %v5644, %v5643
        %v5660 = vpack.c.b16 %v5646, %v5645
        %v5661 = vpack.c.b16 %v5648, %v5647
        %v5662 = vpack.c.b16 %v5650, %v5649
        %v5663 = vpack.c.b16 %v5652, %v5651
        %v5664 = vpack.c.b16 %v5654, %v5653
        %v5665 = vpack.c.b16 %v5656, %v5655
        %v5676 = vsel %vm5349, %v5303, 0
        %v5679 = vsel %vm5349, %v5306, 0
        %v5682 = vsel %vm5349, %v5309, 0
        %v5685 = vsel %vm5349, %v5312, 0
        %v5688 = vsel %vm5349, %v5315, 0
        %v5691 = vsel %vm5349, %v5318, 0
        %v5694 = vsel %vm5349, %v5321, 0
        %v5697 = vsel %vm5349, %v5324, 0
        %v5700 = vsel %vm5349, %v5327, 0
        %v5703 = vsel %vm5349, %v5330, 0
        %v5706 = vsel %vm5349, %v5333, 0
        %v5709 = vsel %vm5349, %v5336, 0
        %v5712 = vsel %vm5349, %v5339, 0
        %v5715 = vsel %vm5349, %v5342, 0
        %v5718 = vsel %vm5349, %v5345, 0
        %v5721 = vsel %vm5349, %v5348, 0
        %5723 = vmatprep.subr.bf16.mxu0 0
        %5724 = vmatpush1.bf16.msra.mxu0 %v5664
        %5725 = vmatprep.subr.bf16.mxu0 0
        %5726 = vmatpush1.bf16.msra.mxu0 %v5663
        %5727 = vmatprep.subr.bf16.mxu0 0
        %5728 = vmatpush1.bf16.msra.mxu0 %v5662
        %5729 = vmatprep.subr.bf16.mxu0 0
        %5730 = vmatpush1.bf16.msra.mxu0 %v5661
        %5731 = vmatprep.subr.bf16.mxu0 0
        %5732 = vmatpush1.bf16.msra.mxu0 %v5660
        %5733 = vmatprep.subr.bf16.mxu0 0
        %5734 = vmatpush1.bf16.msra.mxu0 %v5659
        %5735 = vmatprep.subr.bf16.mxu0 0
        %5736 = vmatpush1.bf16.msra.mxu0 %v5658
        %5737 = vmatprep.subr.bf16.mxu0 0
        %5738 = vmatpush1.bf16.msra.mxu0 %v5657
        %5739 = vmatprep.subr.bf16.mxu0 0
        %5740 = vmatpush2.bf16.msra.mxu0 0
        %5741 = vmatprep.subr.bf16.mxu0 0
        %5742 = vmatpush2.bf16.msra.mxu0 0
        %5743 = vmatprep.subr.bf16.mxu0 0
        %5744 = vmatpush2.bf16.msra.mxu0 0
        %5745 = vmatprep.subr.bf16.mxu0 0
        %5746 = vmatpush2.bf16.msra.mxu0 0
        %5747 = vmatprep.subr.bf16.mxu0 0
        %5748 = vmatpush2.bf16.msra.mxu0 0
        %5749 = vmatprep.subr.bf16.mxu0 0
        %5750 = vmatpush2.bf16.msra.mxu0 0
        %5751 = vmatprep.subr.bf16.mxu0 0
        %5752 = vmatpush2.bf16.msra.mxu0 0
        %5753 = vmatprep.subr.bf16.mxu0 0
        %5754 = vmatpush2.bf16.msra.mxu0 %v5665
        %5755 = vmatprep.mubr.bf16.mxu0 %v5676
        %5756 = vmatmul.mubr.bf16.gmra.mxu0 %v5549
        %v5757 = vpop.f32.mrf.mxu0
        %v5758 = vadd.f32 %v5619, %v5757
        %v5759 = vpop.f32.mrf.mxu0
        %v5760 = vpop.f32.mrf.mxu0
        %v5761 = vadd.f32 %v5619, %v5760
        %v5762 = vpop.f32.mrf.mxu0
        %5763 = vmatprep.mubr.bf16.mxu0 %v5679
        %5764 = vmatmul.mubr.bf16.gmra.mxu0 %v5552
        %v5765 = vpop.f32.mrf.mxu0
        %v5766 = vadd.f32 %v5619, %v5765
        %v5767 = vpop.f32.mrf.mxu0
        %v5768 = vpop.f32.mrf.mxu0
        %v5769 = vadd.f32 %v5619, %v5768
        %v5770 = vpop.f32.mrf.mxu0
        %5771 = vmatprep.mubr.bf16.mxu0 %v5682
        %5772 = vmatmul.mubr.bf16.gmra.mxu0 %v5555
        %v5773 = vpop.f32.mrf.mxu0
        %v5774 = vadd.f32 %v5619, %v5773
        %v5775 = vpop.f32.mrf.mxu0
        %v5776 = vpop.f32.mrf.mxu0
        %v5777 = vadd.f32 %v5619, %v5776
        %v5778 = vpop.f32.mrf.mxu0
        %5779 = vmatprep.mubr.bf16.mxu0 %v5685
        %5780 = vmatmul.mubr.bf16.gmra.mxu0 %v5558
        %v5781 = vpop.f32.mrf.mxu0
        %v5782 = vadd.f32 %v5619, %v5781
        %v5783 = vpop.f32.mrf.mxu0
        %v5784 = vpop.f32.mrf.mxu0
        %v5785 = vadd.f32 %v5619, %v5784
        %v5786 = vpop.f32.mrf.mxu0
        %5787 = vmatprep.mubr.bf16.mxu0 %v5688
        %5788 = vmatmul.mubr.bf16.gmra.mxu0 %v5561
        %v5789 = vpop.f32.mrf.mxu0
        %v5790 = vadd.f32 %v5619, %v5789
        %v5791 = vpop.f32.mrf.mxu0
        %v5792 = vpop.f32.mrf.mxu0
        %v5793 = vadd.f32 %v5619, %v5792
        %v5794 = vpop.f32.mrf.mxu0
        %5795 = vmatprep.mubr.bf16.mxu0 %v5691
        %5796 = vmatmul.mubr.bf16.gmra.mxu0 %v5564
        %v5797 = vpop.f32.mrf.mxu0
        %v5798 = vadd.f32 %v5619, %v5797
        %v5799 = vpop.f32.mrf.mxu0
        %v5800 = vpop.f32.mrf.mxu0
        %v5801 = vadd.f32 %v5619, %v5800
        %v5802 = vpop.f32.mrf.mxu0
        %5803 = vmatprep.mubr.bf16.mxu0 %v5694
        %5804 = vmatmul.mubr.bf16.gmra.mxu0 %v5567
        %v5805 = vpop.f32.mrf.mxu0
        %v5806 = vadd.f32 %v5619, %v5805
        %v5807 = vpop.f32.mrf.mxu0
        %v5808 = vpop.f32.mrf.mxu0
        %v5809 = vadd.f32 %v5619, %v5808
        %v5810 = vpop.f32.mrf.mxu0
        %5811 = vmatprep.mubr.bf16.mxu0 %v5697
        %5812 = vmatmul.mubr.bf16.gmra.mxu0 %v5570
        %v5813 = vpop.f32.mrf.mxu0
        %v5814 = vadd.f32 %v5619, %v5813
        %v5815 = vpop.f32.mrf.mxu0
        %v5816 = vpop.f32.mrf.mxu0
        %v5817 = vadd.f32 %v5619, %v5816
        %v5818 = vpop.f32.mrf.mxu0
        %5819 = vmatprep.mubr.bf16.mxu0 %v5700
        %5820 = vmatmul.mubr.bf16.gmra.mxu0 %v5573
        %v5821 = vpop.f32.mrf.mxu0
        %v5822 = vadd.f32 %v5619, %v5821
        %v5823 = vpop.f32.mrf.mxu0
        %v5824 = vpop.f32.mrf.mxu0
        %v5825 = vadd.f32 %v5619, %v5824
        %v5826 = vpop.f32.mrf.mxu0
        %5827 = vmatprep.mubr.bf16.mxu0 %v5703
        %5828 = vmatmul.mubr.bf16.gmra.mxu0 %v5576
        %v5829 = vpop.f32.mrf.mxu0
        %v5830 = vadd.f32 %v5619, %v5829
        %v5831 = vpop.f32.mrf.mxu0
        %v5832 = vpop.f32.mrf.mxu0
        %v5833 = vadd.f32 %v5619, %v5832
        %v5834 = vpop.f32.mrf.mxu0
        %5835 = vmatprep.mubr.bf16.mxu0 %v5706
        %5836 = vmatmul.mubr.bf16.gmra.mxu0 %v5579
        %v5837 = vpop.f32.mrf.mxu0
        %v5838 = vadd.f32 %v5619, %v5837
        %v5839 = vpop.f32.mrf.mxu0
        %v5840 = vpop.f32.mrf.mxu0
        %v5841 = vadd.f32 %v5619, %v5840
        %v5842 = vpop.f32.mrf.mxu0
        %5843 = vmatprep.mubr.bf16.mxu0 %v5709
        %5844 = vmatmul.mubr.bf16.gmra.mxu0 %v5582
        %v5845 = vpop.f32.mrf.mxu0
        %v5846 = vadd.f32 %v5619, %v5845
        %v5847 = vpop.f32.mrf.mxu0
        %v5848 = vpop.f32.mrf.mxu0
        %v5849 = vadd.f32 %v5619, %v5848
        %v5850 = vpop.f32.mrf.mxu0
        %5851 = vmatprep.mubr.bf16.mxu0 %v5712
        %5852 = vmatmul.mubr.bf16.gmra.mxu0 %v5585
        %v5853 = vpop.f32.mrf.mxu0
        %v5854 = vadd.f32 %v5619, %v5853
        %v5855 = vpop.f32.mrf.mxu0
        %v5856 = vpop.f32.mrf.mxu0
        %v5857 = vadd.f32 %v5619, %v5856
        %v5858 = vpop.f32.mrf.mxu0
        %5859 = vmatprep.mubr.bf16.mxu0 %v5715
        %5860 = vmatmul.mubr.bf16.gmra.mxu0 %v5588
        %v5861 = vpop.f32.mrf.mxu0
        %v5862 = vadd.f32 %v5619, %v5861
        %v5863 = vpop.f32.mrf.mxu0
        %v5864 = vpop.f32.mrf.mxu0
        %v5865 = vadd.f32 %v5619, %v5864
        %v5866 = vpop.f32.mrf.mxu0
        %5867 = vmatprep.mubr.bf16.mxu0 %v5718
        %5868 = vmatmul.mubr.bf16.gmra.mxu0 %v5591
        %v5869 = vpop.f32.mrf.mxu0
        %v5870 = vadd.f32 %v5619, %v5869
        %v5871 = vpop.f32.mrf.mxu0
        %v5872 = vpop.f32.mrf.mxu0
        %v5873 = vadd.f32 %v5619, %v5872
        %v5874 = vpop.f32.mrf.mxu0
        %5875 = vmatprep.mubr.bf16.mxu0 %v5721
        %5876 = vmatmul.mubr.bf16.gmra.mxu0 %v5594
        %v5877 = vpop.f32.mrf.mxu0
        %v5878 = vadd.f32 %v5619, %v5877
        %v5879 = vpop.f32.mrf.mxu0
        %v5880 = vpop.f32.mrf.mxu0
        %v5881 = vadd.f32 %v5619, %v5880
        %v5882 = vpop.f32.mrf.mxu0
        %5883 = vdwg.mxu0
        %v5884 = vmax.f32 %v5758, 0.0
        %v5885 = vmax.f32 %v5761, 0.0
        %v5886 = vmax.f32 %v5766, 0.0
        %v5887 = vmax.f32 %v5769, 0.0
        %v5888 = vmax.f32 %v5774, 0.0
        %v5889 = vmax.f32 %v5777, 0.0
        %v5890 = vmax.f32 %v5782, 0.0
        %v5891 = vmax.f32 %v5785, 0.0
        %v5892 = vmax.f32 %v5790, 0.0
        %v5893 = vmax.f32 %v5793, 0.0
        %v5894 = vmax.f32 %v5798, 0.0
        %v5895 = vmax.f32 %v5801, 0.0
        %v5896 = vmax.f32 %v5806, 0.0
        %v5897 = vmax.f32 %v5809, 0.0
        %v5898 = vmax.f32 %v5814, 0.0
        %v5899 = vmax.f32 %v5817, 0.0
        %v5900 = vmax.f32 %v5822, 0.0
        %v5901 = vmax.f32 %v5825, 0.0
        %v5902 = vmax.f32 %v5830, 0.0
        %v5903 = vmax.f32 %v5833, 0.0
        %v5904 = vmax.f32 %v5838, 0.0
        %v5905 = vmax.f32 %v5841, 0.0
        %v5906 = vmax.f32 %v5846, 0.0
        %v5907 = vmax.f32 %v5849, 0.0
        %v5908 = vmax.f32 %v5854, 0.0
        %v5909 = vmax.f32 %v5857, 0.0
        %v5910 = vmax.f32 %v5862, 0.0
        %v5911 = vmax.f32 %v5865, 0.0
        %v5912 = vmax.f32 %v5870, 0.0
        %v5913 = vmax.f32 %v5873, 0.0
        %v5914 = vmax.f32 %v5878, 0.0
        %v5915 = vmax.f32 %v5881, 0.0
        %v5916 = vpack.c.bf16 %v5885, %v5884
        %v5917 = vpack.c.bf16 %v5887, %v5886
        %v5918 = vpack.c.bf16 %v5889, %v5888
        %v5919 = vpack.c.bf16 %v5891, %v5890
        %v5920 = vpack.c.bf16 %v5893, %v5892
        %v5921 = vpack.c.bf16 %v5895, %v5894
        %v5922 = vpack.c.bf16 %v5897, %v5896
        %v5923 = vpack.c.bf16 %v5899, %v5898
        %v5924 = vpack.c.bf16 %v5901, %v5900
        %v5925 = vpack.c.bf16 %v5903, %v5902
        %v5926 = vpack.c.bf16 %v5905, %v5904
        %v5927 = vpack.c.bf16 %v5907, %v5906
        %v5928 = vpack.c.bf16 %v5909, %v5908
        %v5929 = vpack.c.bf16 %v5911, %v5910
        %v5930 = vpack.c.bf16 %v5913, %v5912
        %v5931 = vpack.c.bf16 %v5915, %v5914
        %v5948 = vunpack.c.l.b16 %v5916
        %v5949 = vunpack.c.h.b16 %v5916
        %v5950 = vunpack.c.l.b16 %v5917
        %v5951 = vunpack.c.h.b16 %v5917
        %v5952 = vunpack.c.l.b16 %v5918
        %v5953 = vunpack.c.h.b16 %v5918
        %v5954 = vunpack.c.l.b16 %v5919
        %v5955 = vunpack.c.h.b16 %v5919
        %v5956 = vunpack.c.l.b16 %v5920
        %v5957 = vunpack.c.h.b16 %v5920
        %v5958 = vunpack.c.l.b16 %v5921
        %v5959 = vunpack.c.h.b16 %v5921
        %v5960 = vunpack.c.l.b16 %v5922
        %v5961 = vunpack.c.h.b16 %v5922
        %v5962 = vunpack.c.l.b16 %v5923
        %v5963 = vunpack.c.h.b16 %v5923
        %v5964 = vunpack.c.l.b16 %v5924
        %v5965 = vunpack.c.h.b16 %v5924
        %v5966 = vunpack.c.l.b16 %v5925
        %v5967 = vunpack.c.h.b16 %v5925
        %v5968 = vunpack.c.l.b16 %v5926
        %v5969 = vunpack.c.h.b16 %v5926
        %v5970 = vunpack.c.l.b16 %v5927
        %v5971 = vunpack.c.h.b16 %v5927
        %v5972 = vunpack.c.l.b16 %v5928
        %v5973 = vunpack.c.h.b16 %v5928
        %v5974 = vunpack.c.l.b16 %v5929
        %v5975 = vunpack.c.h.b16 %v5929
        %v5976 = vunpack.c.l.b16 %v5930
        %v5977 = vunpack.c.h.b16 %v5930
        %v5978 = vunpack.c.l.b16 %v5931
        %v5979 = vunpack.c.h.b16 %v5931
        %v5980 = vpack.c.b16 %v5948, %v5948
        %v5981 = vpack.c.b16 %v5949, %v5949
        %v5982 = vpack.c.b16 %v5950, %v5950
        %v5983 = vpack.c.b16 %v5951, %v5951
        %v5984 = vpack.c.b16 %v5952, %v5952
        %v5985 = vpack.c.b16 %v5953, %v5953
        %v5986 = vpack.c.b16 %v5954, %v5954
        %v5987 = vpack.c.b16 %v5955, %v5955
        %v5988 = vpack.c.b16 %v5956, %v5956
        %v5989 = vpack.c.b16 %v5957, %v5957
        %v5990 = vpack.c.b16 %v5958, %v5958
        %v5991 = vpack.c.b16 %v5959, %v5959
        %v5992 = vpack.c.b16 %v5960, %v5960
        %v5993 = vpack.c.b16 %v5961, %v5961
        %v5994 = vpack.c.b16 %v5962, %v5962
        %v5995 = vpack.c.b16 %v5963, %v5963
        %v5996 = vpack.c.b16 %v5964, %v5964
        %v5997 = vpack.c.b16 %v5965, %v5965
        %v5998 = vpack.c.b16 %v5966, %v5966
        %v5999 = vpack.c.b16 %v5967, %v5967
        %v6000 = vpack.c.b16 %v5968, %v5968
        %v6001 = vpack.c.b16 %v5969, %v5969
        %v6002 = vpack.c.b16 %v5970, %v5970
        %v6003 = vpack.c.b16 %v5971, %v5971
        %v6004 = vpack.c.b16 %v5972, %v5972
        %v6005 = vpack.c.b16 %v5973, %v5973
        %v6006 = vpack.c.b16 %v5974, %v5974
        %v6007 = vpack.c.b16 %v5975, %v5975
        %v6008 = vpack.c.b16 %v5976, %v5976
        %v6009 = vpack.c.b16 %v5977, %v5977
        %v6010 = vpack.c.b16 %v5978, %v5978
        %v6011 = vpack.c.b16 %v5979, %v5979
        %6044 = vst.msk [vmem:[%s217] sm:$0xf] %vm3033, %v5980
        %6045 = vst.msk [vmem:[%s217 + $0x4] sm:$0xf] %vm3033, %v5981
        %6046 = vst.msk [vmem:[%s217 + $0x8] sm:$0xf] %vm3033, %v5982
        %6047 = vst.msk [vmem:[%s217 + $0xc] sm:$0xf] %vm3033, %v5983
        %6048 = vst.msk [vmem:[%s217 + $0x10] sm:$0xf] %vm3033, %v5984
        %6049 = vst.msk [vmem:[%s217 + $0x14] sm:$0xf] %vm3033, %v5985
        %6050 = vst.msk [vmem:[%s217 + $0x18] sm:$0xf] %vm3033, %v5986
        %6051 = vst.msk [vmem:[%s217 + $0x1c] sm:$0xf] %vm3033, %v5987
        %6052 = vst.msk [vmem:[%s217 + $0x20] sm:$0xf] %vm3033, %v5988
        %6053 = vst.msk [vmem:[%s217 + $0x24] sm:$0xf] %vm3033, %v5989
        %6054 = vst.msk [vmem:[%s217 + $0x28] sm:$0xf] %vm3033, %v5990
        %6055 = vst.msk [vmem:[%s217 + $0x2c] sm:$0xf] %vm3033, %v5991
        %6056 = vst.msk [vmem:[%s217 + $0x30] sm:$0xf] %vm3033, %v5992
        %6057 = vst.msk [vmem:[%s217 + $0x34] sm:$0xf] %vm3033, %v5993
        %6058 = vst.msk [vmem:[%s217 + $0x38] sm:$0xf] %vm3033, %v5994
        %6059 = vst.msk [vmem:[%s217 + $0x3c] sm:$0xf] %vm3033, %v5995
        %6060 = vst.msk [vmem:[%s217 + $0x40] sm:$0xf] %vm3033, %v5996
        %6061 = vst.msk [vmem:[%s217 + $0x44] sm:$0xf] %vm3033, %v5997
        %6062 = vst.msk [vmem:[%s217 + $0x48] sm:$0xf] %vm3033, %v5998
        %6063 = vst.msk [vmem:[%s217 + $0x4c] sm:$0xf] %vm3033, %v5999
        %6064 = vst.msk [vmem:[%s217 + $0x50] sm:$0xf] %vm3033, %v6000
        %6065 = vst.msk [vmem:[%s217 + $0x54] sm:$0xf] %vm3033, %v6001
        %6066 = vst.msk [vmem:[%s217 + $0x58] sm:$0xf] %vm3033, %v6002
        %6067 = vst.msk [vmem:[%s217 + $0x5c] sm:$0xf] %vm3033, %v6003
        %6068 = vst.msk [vmem:[%s217 + $0x60] sm:$0xf] %vm3033, %v6004
        %6069 = vst.msk [vmem:[%s217 + $0x64] sm:$0xf] %vm3033, %v6005
        %6070 = vst.msk [vmem:[%s217 + $0x68] sm:$0xf] %vm3033, %v6006
        %6071 = vst.msk [vmem:[%s217 + $0x6c] sm:$0xf] %vm3033, %v6007
        %6072 = vst.msk [vmem:[%s217 + $0x70] sm:$0xf] %vm3033, %v6008
        %6073 = vst.msk [vmem:[%s217 + $0x74] sm:$0xf] %vm3033, %v6009
        %6074 = vst.msk [vmem:[%s217 + $0x78] sm:$0xf] %vm3033, %v6010
        %6075 = vst.msk [vmem:[%s217 + $0x7c] sm:$0xf] %vm3033, %v6011
        %s6076 = sand.u32 %s137, 1
        %s6077 = scalar_lea.sflag [#allocation5], %s6076
        %s6078 = sand.u32 %s137, 1
        %s6079 = smul.addr %s6078, 128
        %s6080 = scalar_lea.vmem [#allocation4], %s6079
        // Predicated region
        $region41: #{tpu_custom_call.1} parent=39 // pred_check
          %p6081 = pneg %p147
        $region42: #{tpu_custom_call.1} parent=39 // pred_check_branch
          %6083 = sbr.rel (%p6081) target = $region44
        $region43: #{tpu_custom_call.1} parent=39 // pred_region
          %s6085 = ssub.s32 2048, 2048
          %6086 = vsyncadd %s6077, %s6085
          %s6087 = smul.addr %s19, 32
          %s6088 = smul.addr %s6087, 64
          %s6089 = scalar_lea.hbm %s5, %s6088
          %s6090 = sshll.u32 %s6080, 4
          %s6091 = int_to_ptr.vmem [resolvable:$true] %s6090
          %6096 = dma.vmem_to_hbm [thread:$0]  %s6091, 2048, %s6089, %s6077, 64, 64, 4
        $region44: #{tpu_custom_call.1} parent=39 // pred_fallthru
          _
      $region40: #{tpu_custom_call.1} parent=5 // pred_fallthru
        _
      %p6097 = scmp.le.s32.totalorder 2, %s14
      // Predicated region
      $region45: #{tpu_custom_call.1} parent=5 // pred_check
        %p6098 = pneg %p6097
      $region46: #{tpu_custom_call.1} parent=5 // pred_check_branch
        %6100 = sbr.rel (%p6098) target = $region48
      $region47: #{tpu_custom_call.1} parent=5 // pred_region
        %s6101 = ssub.s32 %s14, 2
        // Predicated region
        $region49: #{tpu_custom_call.1} parent=47 // pred_check
          %p6102 = pneg %p153
        $region50: #{tpu_custom_call.1} parent=47 // pred_check_branch
          %6104 = sbr.rel (%p6102) target = $region52
        $region51: #{tpu_custom_call.1} parent=47 // pred_region
          %s6105 = sand.u32 %s138, 1
          %s6106 = scalar_lea.sflag [#allocation5], %s6105
          %s6107 = sand.u32 %s138, 1
          %s6108 = smul.addr %s6107, 128
          %s6109 = scalar_lea.vmem [#allocation4], %s6108
          %6110 = dma.done %s6106, 2048
        $region52: #{tpu_custom_call.1} parent=47 // pred_fallthru
          _
      $region48: #{tpu_custom_call.1} parent=5 // pred_fallthru
        _
    $region6: #{tpu_custom_call.1} parent=1 // loop_footer
      %s18 = sadd.s32 1, %s14
    $region7: #{tpu_custom_call.1} parent=1 // loop_footer_branch
      %13 = sbr.rel target = $region3
    $region8: #{tpu_custom_call.1} parent=1 // loop_exit
      _
    %6111 = vsyncpa [#allocation5], 1
    %s6112 = scalar_lea.sflag [#allocation5], 1
    %6113 = vsyncpa %s6112, 1

</llo_original>
